<compile_context>
chip_gen: v6e
topology: v6e:2x2x1
jax: 0.10.0
libtpu: 0.0.40
codegen_flags: <defaults>
</compile_context>

<pallas_src>
import functools
import math

import jax
import jax.numpy as jnp
import numpy as np
from jax.experimental import pallas as pl
from jax.experimental.pallas import tpu as pltpu

LN_EPS = 1e-5  # PyTorch LayerNorm default


def _ln(x, g, b):
    mu = jnp.mean(x, axis=-1, keepdims=True)
    var = jnp.mean(jnp.square(x - mu), axis=-1, keepdims=True)
    return (x - mu) * jax.lax.rsqrt(var + LN_EPS) * g + b


# ------------------------------------------------------------------
# Fused forward kernel:  grid = (batch, layer)
# ------------------------------------------------------------------
def fused_forward_kernel(
        # activations / mask
        xe_ref, se_ref, ve_ref, mask_ref,
        # OmicsEncoder LayerNorm params
        lxg, lxb, lsg, lsb, lvg, lvb,
        # stacked per-layer encoder weights (leading dim = layer, selected by grid coord)
        wqkv, bqkv, wo, bo, ln1_g, ln1_b, w1, bb1, w2, bb2, ln2_g, ln2_b,
        # output head
        og, ob, ow1, ob1, ow2v, ob2,
        # output + scratch
        y_ref, x_sc, attn_sc,
        *, nhead, dh):
    bf16 = jnp.bfloat16
    f32 = jnp.float32
    D = nhead * dh
    lyr = pl.program_id(1)
    scale = jnp.float32(1.0 / math.sqrt(dh))

    # ---- layer 0: fuse the three LayerNorm'd embeddings into the resident activation ----
    @pl.when(lyr == 0)
    def _():
        x_sc[...] = (_ln(xe_ref[0], lxg[...], lxb[...])
                     + _ln(se_ref[0], lsg[...], lsb[...])
                     + _ln(ve_ref[0], lvg[...], lvb[...]))

    x = x_sc[...]                                  # (S, D) f32, resident across the layer axis

    # ---- multi-head self attention: fused QKV projection (bf16 MXU operands) ----
    qkv = jnp.dot(x.astype(bf16), wqkv[0], preferred_element_type=f32) + bqkv[0]   # (S, 3D)
    mask = mask_ref[0]                             # (S, S) additive f32, shared across heads

    # TODO(synk): for realistic dh (>=128) / long S, switch to a head-batched dot_general
    # with flash-style KV tiling (online softmax); full (S,S) scores per head fit VMEM here.
    for h in range(nhead):                         # nhead small & static -> unrolled
        qh = (qkv[:, h * dh:(h + 1) * dh] * scale).astype(bf16)
        kh = qkv[:, D + h * dh:D + (h + 1) * dh].astype(bf16)
        vh = qkv[:, 2 * D + h * dh:2 * D + (h + 1) * dh].astype(bf16)
        sc = jax.lax.dot_general(qh, kh, (((1,), (1,)), ((), ())),
                                 preferred_element_type=f32) + mask                # (S, S)
        m = jnp.max(sc, axis=-1, keepdims=True)
        e = jnp.exp(sc - m)
        p = e * pl.reciprocal(jnp.sum(e, axis=-1, keepdims=True), approx=True)
        attn_sc[:, h * dh:(h + 1) * dh] = jnp.dot(p.astype(bf16), vh,
                                                  preferred_element_type=f32)

    attn = jnp.dot(attn_sc[...].astype(bf16), wo[0], preferred_element_type=f32) + bo[0]

    # ---- post-norm residual + FFN ----
    x1 = _ln(x + attn, ln1_g[0], ln1_b[0])
    hdd = jnp.maximum(jnp.dot(x1.astype(bf16), w1[0],
                              preferred_element_type=f32) + bb1[0], 0.0)
    ff = jnp.dot(hdd.astype(bf16), w2[0], preferred_element_type=f32) + bb2[0]
    x_sc[...] = _ln(x1 + ff, ln2_g[0], ln2_b[0])

    # ---- last layer: output head, lane-dense (1, S) store ----
    @pl.when(lyr == pl.num_programs(1) - 1)
    def _():
        y = _ln(x_sc[...], og[...], ob[...])
        h2 = jnp.maximum(jnp.dot(y.astype(bf16), ow1[...],
                                 preferred_element_type=f32) + ob1[...], 0.0)
        # D->1 projection emitted as a lane-dense row:  (1,D) x (S,D)^T -> (1,S)
        row = jax.lax.dot_general(ow2v[...], h2, (((1,), (1,)), ((), ())),
                                  preferred_element_type=f32) + ob2[...]
        y_ref[0] = row                              # (1, S)


# ------------------------------------------------------------------
# Full model forward (glue + single fused pallas_call)
# ------------------------------------------------------------------
def transformer_model_forward(batch, params, nhead):
    x_ids = batch["X_input_names"]
    v_ids = batch["X_bin_input"]
    s_ids = batch["X_input_source"]
    attn_mask = batch["X_mask"]               # (B, S, S) bool, True = disallow
    kpm = batch["X_key_padding_mask"]         # (B, S)    bool, True = padding
    B, S = x_ids.shape

    # embedding gathers (glue; padding_idx rows are zeroed at init)
    # TODO(synk): could move in-kernel (scalar-prefetched ids + VMEM-resident tables).
    xe = params["emb_x"][x_ids]
    se = params["emb_s"][s_ids]
    ve = params["emb_v"][v_ids]
    D = xe.shape[-1]
    dh = D // nhead
    L = params["wqkv"].shape[0]

    # Combined additive mask, ONE copy per batch element (broadcast over heads in-kernel).
    # -1e30 stands in for -inf: fully-masked (padding query) rows give a uniform softmax
    # instead of PyTorch's NaN — intentional divergence.
    neg = jnp.float32(-1e30)
    add_mask = jnp.where(attn_mask | kpm[:, None, :], neg, jnp.float32(0.0))      # (B, S, S)

    act_spec = pl.BlockSpec((1, S, D), lambda b, l: (b, 0, 0))
    mask_spec = pl.BlockSpec((1, S, S), lambda b, l: (b, 0, 0))

    def per_layer_spec(arr):                  # stacked (L, ...) weight, indexed by layer coord
        tail = arr.shape[1:]
        return pl.BlockSpec((1,) + tail, lambda b, l, _n=len(tail): (l,) + (0,) * _n)

    def const_spec(arr):                      # same block every grid step (DMA'd once)
        # TODO(synk): pipeline_mode=pl.Buffered(1) would halve VMEM for these constants.
        return pl.BlockSpec(arr.shape, lambda b, l, _n=arr.ndim: (0,) * _n)

    emb_ln = [params["ln_x_g"], params["ln_x_b"],
              params["ln_s_g"], params["ln_s_b"],
              params["ln_v_g"], params["ln_v_b"]]
    layer_ws = [params["wqkv"], params["bqkv"], params["wo"], params["bo"],
                params["ln1_g"], params["ln1_b"], params["w1"], params["b1"],
                params["w2"], params["b2"], params["ln2_g"], params["ln2_b"]]
    head_ws = [params["out_ln_g"], params["out_ln_b"], params["out_w1"],
               params["out_b1"], params["out_w2v"], params["out_b2"]]

    y = pl.pallas_call(
        functools.partial(fused_forward_kernel, nhead=nhead, dh=dh),
        out_shape=jax.ShapeDtypeStruct((B, 1, S), jnp.float32),
        grid=(B, L),
        in_specs=([act_spec, act_spec, act_spec, mask_spec]
                  + [const_spec(w) for w in emb_ln]
                  + [per_layer_spec(w) for w in layer_ws]
                  + [const_spec(w) for w in head_ws]),
        out_specs=pl.BlockSpec((1, 1, S), lambda b, l: (b, 0, 0)),
        scratch_shapes=[pltpu.VMEM((S, D), jnp.float32),    # resident activation x
                        pltpu.VMEM((S, D), jnp.float32)],   # per-head attention outputs
        compiler_params=pltpu.CompilerParams(
            dimension_semantics=("parallel", "arbitrary")),
    )(xe, se, ve, add_mask, *emb_ln, *layer_ws, *head_ws)

    return y[:, 0, :, None]                   # (B, S, 1), matching the PyTorch module


# ------------------------------------------------------------------
# Plain-JAX reference (same math & same bf16 operand precision) for correctness check
# ------------------------------------------------------------------
def reference_forward(batch, params, nhead):
    bf16 = jnp.bfloat16
    f32 = jnp.float32

    def ln(x, g, b):
        mu = jnp.mean(x, axis=-1, keepdims=True)
        var = jnp.mean(jnp.square(x - mu), axis=-1, keepdims=True)
        return (x - mu) * jax.lax.rsqrt(var + LN_EPS) * g + b

    x_ids = batch["X_input_names"]
    v_ids = batch["X_bin_input"]
    s_ids = batch["X_input_source"]
    attn_mask = batch["X_mask"]
    kpm = batch["X_key_padding_mask"]
    B, S = x_ids.shape

    x = (ln(params["emb_x"][x_ids], params["ln_x_g"], params["ln_x_b"])
         + ln(params["emb_s"][s_ids], params["ln_s_g"], params["ln_s_b"])
         + ln(params["emb_v"][v_ids], params["ln_v_g"], params["ln_v_b"]))
    D = x.shape[-1]
    dh = D // nhead
    scale = jnp.float32(1.0 / math.sqrt(dh))
    add = jnp.where(attn_mask | kpm[:, None, :], jnp.float32(-1e30), jnp.float32(0.0))
    L = params["wqkv"].shape[0]

    for l in range(L):
        qkv = jnp.dot(x.astype(bf16), params["wqkv"][l],
                      preferred_element_type=f32) + params["bqkv"][l]
        q, k, v = jnp.split(qkv, 3, axis=-1)
        q = (q.reshape(B, S, nhead, dh).transpose(0, 2, 1, 3) * scale).astype(bf16)
        k = k.reshape(B, S, nhead, dh).transpose(0, 2, 1, 3).astype(bf16)
        v = v.reshape(B, S, nhead, dh).transpose(0, 2, 1, 3).astype(bf16)
        sc = jnp.einsum("bhqd,bhkd->bhqk", q, k, preferred_element_type=f32) + add[:, None]
        p = jax.nn.softmax(sc, axis=-1)
        at = jnp.einsum("bhqk,bhkd->bhqd", p.astype(bf16), v, preferred_element_type=f32)
        at = at.transpose(0, 2, 1, 3).reshape(B, S, D)
        at = jnp.dot(at.astype(bf16), params["wo"][l],
                     preferred_element_type=f32) + params["bo"][l]
        x1 = ln(x + at, params["ln1_g"][l], params["ln1_b"][l])
        h = jax.nn.relu(jnp.dot(x1.astype(bf16), params["w1"][l],
                                preferred_element_type=f32) + params["b1"][l])
        ff = jnp.dot(h.astype(bf16), params["w2"][l],
                     preferred_element_type=f32) + params["b2"][l]
        x = ln(x1 + ff, params["ln2_g"][l], params["ln2_b"][l])

    y = ln(x, params["out_ln_g"], params["out_ln_b"])
    h = jax.nn.relu(jnp.dot(y.astype(bf16), params["out_w1"],
                            preferred_element_type=f32) + params["out_b1"])
    return jnp.sum(h * params["out_w2v"], axis=-1, keepdims=True) + params["out_b2"]


# ------------------------------------------------------------------
# Deterministic parameter init (shapes match the PyTorch module; per-layer weights stacked)
# ------------------------------------------------------------------
def init_params(key, ntoken, n_bins, n_sources, d_model, nhead, d_hid, nlayers, pad_id):
    keys = jax.random.split(key, 64)
    it = iter(keys)

    def nrm(shape, scale=0.02):
        return (scale * jax.random.normal(next(it), shape)).astype(jnp.float32)

    def emb(n, d):
        t = (0.1 * jax.random.normal(next(it), (n, d))).astype(jnp.float32)
        return t.at[pad_id].set(0.0)          # padding_idx row zeroed, as in nn.Embedding

    D, Dh, L = d_model, d_hid, nlayers
    ones = lambda s: jnp.ones(s, jnp.float32)
    zeros = lambda s: jnp.zeros(s, jnp.float32)

    p = {
        "emb_x": emb(ntoken, D), "emb_v": emb(n_bins, D), "emb_s": emb(n_sources, D),
        "ln_x_g": ones((1, D)), "ln_x_b": zeros((1, D)),
        "ln_v_g": ones((1, D)), "ln_v_b": zeros((1, D)),
        "ln_s_g": ones((1, D)), "ln_s_b": zeros((1, D)),
        # stacked per-layer encoder weights; matmul weights stored bf16 (MXU operands)
        "wqkv": nrm((L, D, 3 * D)).astype(jnp.bfloat16), "bqkv": nrm((L, 1, 3 * D)),
        "wo": nrm((L, D, D)).astype(jnp.bfloat16), "bo": nrm((L, 1, D)),
        "ln1_g": ones((L, 1, D)), "ln1_b": zeros((L, 1, D)),
        "w1": nrm((L, D, Dh)).astype(jnp.bfloat16), "b1": nrm((L, 1, Dh)),
        "w2": nrm((L, Dh, D)).astype(jnp.bfloat16), "b2": nrm((L, 1, D)),
        "ln2_g": ones((L, 1, D)), "ln2_b": zeros((L, 1, D)),
        # output head
        "out_ln_g": ones((1, D)), "out_ln_b": zeros((1, D)),
        "out_w1": nrm((D, D)).astype(jnp.bfloat16), "out_b1": nrm((1, D)),
        "out_w2v": nrm((1, D)), "out_b2": nrm((1, 1)),
    }
    return p


if __name__ == "__main__":
    # TransformerModel(ntoken, n_input_bins, n_sources, d_model, nhead, d_hid, nlayers)
    ntoken, n_bins, n_sources = 50, 12, 5
    d_model, nhead, d_hid, nlayers = 32, 4, 64, 2
    pad_id = 0
    B, S = 2, 8

    key = jax.random.PRNGKey(0)
    pkey, dkey = jax.random.split(key)
    params = init_params(pkey, ntoken, n_bins, n_sources, d_model, nhead, d_hid, nlayers, pad_id)

    k1, k2, k3 = jax.random.split(dkey, 3)
    lens = jnp.array([S, S - 2])
    pos = jnp.arange(S)[None, :]
    kpm = pos >= lens[:, None]                                            # (B, S) True = padding
    x_ids = jnp.where(kpm, pad_id, jax.random.randint(k1, (B, S), 1, ntoken))
    v_ids = jnp.where(kpm, pad_id, jax.random.randint(k2, (B, S), 1, n_bins))
    s_ids = jnp.where(kpm, pad_id, jax.random.randint(k3, (B, S), 1, n_sources))
    causal = jnp.triu(jnp.ones((S, S), dtype=bool), k=1)                  # boolean attn mask
    attn_mask = jnp.broadcast_to(causal, (B, S, S))

    batch = {
        "X_input_names": x_ids,
        "X_bin_input": v_ids,
        "X_input_source": s_ids,
        "X_mask": attn_mask,                 # (B, S, S); per-head repeat done by broadcast
        "X_key_padding_mask": kpm,           # (B, S)
    }

    out = transformer_model_forward(batch, params, nhead)
    out = jax.block_until_ready(out)
    assert out.shape == (B, S, 1), out.shape

    ref = reference_forward(batch, params, nhead)
    np.testing.assert_allclose(np.asarray(out), np.asarray(ref), rtol=2e-2, atol=2e-3)

    # TODO(synk): dropout layers are identity here (eval-mode semantics); training-mode dropout
    # would need pltpu.prng_* inside the kernel.
    print("KERNEL_OK")
</pallas_src>

<mosaic_0001>
module attributes {stable_mosaic.version = 11 : i64} {
  func.func @fused_forward_kernel(%arg0: i32, %arg1: i32, %arg2: memref<1x8x32xf32, #tpu.memory_space<vmem>>, %arg3: memref<1x8x32xf32, #tpu.memory_space<vmem>>, %arg4: memref<1x8x32xf32, #tpu.memory_space<vmem>>, %arg5: memref<1x8x8xf32, #tpu.memory_space<vmem>>, %arg6: memref<1x32xf32, #tpu.memory_space<vmem>>, %arg7: memref<1x32xf32, #tpu.memory_space<vmem>>, %arg8: memref<1x32xf32, #tpu.memory_space<vmem>>, %arg9: memref<1x32xf32, #tpu.memory_space<vmem>>, %arg10: memref<1x32xf32, #tpu.memory_space<vmem>>, %arg11: memref<1x32xf32, #tpu.memory_space<vmem>>, %arg12: memref<1x32x96xbf16, #tpu.memory_space<vmem>>, %arg13: memref<1x1x96xf32, #tpu.memory_space<vmem>>, %arg14: memref<1x32x32xbf16, #tpu.memory_space<vmem>>, %arg15: memref<1x1x32xf32, #tpu.memory_space<vmem>>, %arg16: memref<1x1x32xf32, #tpu.memory_space<vmem>>, %arg17: memref<1x1x32xf32, #tpu.memory_space<vmem>>, %arg18: memref<1x32x64xbf16, #tpu.memory_space<vmem>>, %arg19: memref<1x1x64xf32, #tpu.memory_space<vmem>>, %arg20: memref<1x64x32xbf16, #tpu.memory_space<vmem>>, %arg21: memref<1x1x32xf32, #tpu.memory_space<vmem>>, %arg22: memref<1x1x32xf32, #tpu.memory_space<vmem>>, %arg23: memref<1x1x32xf32, #tpu.memory_space<vmem>>, %arg24: memref<1x32xf32, #tpu.memory_space<vmem>>, %arg25: memref<1x32xf32, #tpu.memory_space<vmem>>, %arg26: memref<32x32xbf16, #tpu.memory_space<vmem>>, %arg27: memref<1x32xf32, #tpu.memory_space<vmem>>, %arg28: memref<1x32xf32, #tpu.memory_space<vmem>>, %arg29: memref<1x1xf32, #tpu.memory_space<vmem>>, %arg30: memref<1x1x8xf32, #tpu.memory_space<vmem>>, %arg31: memref<8x32xf32, #tpu.memory_space<vmem>>, %arg32: memref<8x32xf32, #tpu.memory_space<vmem>>) attributes {dimension_semantics = [#tpu.dimension_semantics<parallel>, #tpu.dimension_semantics<arbitrary>], iteration_bounds = array<i64: 2, 2>, scalar_prefetch = 0 : i64, scratch_operands = 2 : i64, tpu.core_type = #tpu.core_type<tc>, window_params = [{transform_indices = @transform_0, window_bounds = array<i64: 1, 8, 32>}, {transform_indices = @transform_1, window_bounds = array<i64: 1, 8, 32>}, {transform_indices = @transform_2, window_bounds = array<i64: 1, 8, 32>}, {transform_indices = @transform_3, window_bounds = array<i64: 1, 8, 8>}, {pipeline_mode = #tpu.pipeline_mode<synchronous>, transform_indices = @transform_4, window_bounds = array<i64: 1, 32>}, {pipeline_mode = #tpu.pipeline_mode<synchronous>, transform_indices = @transform_5, window_bounds = array<i64: 1, 32>}, {pipeline_mode = #tpu.pipeline_mode<synchronous>, transform_indices = @transform_6, window_bounds = array<i64: 1, 32>}, {pipeline_mode = #tpu.pipeline_mode<synchronous>, transform_indices = @transform_7, window_bounds = array<i64: 1, 32>}, {pipeline_mode = #tpu.pipeline_mode<synchronous>, transform_indices = @transform_8, window_bounds = array<i64: 1, 32>}, {pipeline_mode = #tpu.pipeline_mode<synchronous>, transform_indices = @transform_9, window_bounds = array<i64: 1, 32>}, {transform_indices = @transform_10, window_bounds = array<i64: 1, 32, 96>}, {transform_indices = @transform_11, window_bounds = array<i64: 1, 1, 96>}, {transform_indices = @transform_12, window_bounds = array<i64: 1, 32, 32>}, {transform_indices = @transform_13, window_bounds = array<i64: 1, 1, 32>}, {transform_indices = @transform_14, window_bounds = array<i64: 1, 1, 32>}, {transform_indices = @transform_15, window_bounds = array<i64: 1, 1, 32>}, {transform_indices = @transform_16, window_bounds = array<i64: 1, 32, 64>}, {transform_indices = @transform_17, window_bounds = array<i64: 1, 1, 64>}, {transform_indices = @transform_18, window_bounds = array<i64: 1, 64, 32>}, {transform_indices = @transform_19, window_bounds = array<i64: 1, 1, 32>}, {transform_indices = @transform_20, window_bounds = array<i64: 1, 1, 32>}, {transform_indices = @transform_21, window_bounds = array<i64: 1, 1, 32>}, {pipeline_mode = #tpu.pipeline_mode<synchronous>, transform_indices = @transform_22, window_bounds = array<i64: 1, 32>}, {pipeline_mode = #tpu.pipeline_mode<synchronous>, transform_indices = @transform_23, window_bounds = array<i64: 1, 32>}, {pipeline_mode = #tpu.pipeline_mode<synchronous>, transform_indices = @transform_24, window_bounds = array<i64: 32, 32>}, {pipeline_mode = #tpu.pipeline_mode<synchronous>, transform_indices = @transform_25, window_bounds = array<i64: 1, 32>}, {pipeline_mode = #tpu.pipeline_mode<synchronous>, transform_indices = @transform_26, window_bounds = array<i64: 1, 32>}, {pipeline_mode = #tpu.pipeline_mode<synchronous>, transform_indices = @transform_27, window_bounds = array<i64: 1, 1>}, {transform_indices = @transform_28, window_bounds = array<i64: 1, 1, 8>}]} {
    %c0_i32 = arith.constant 0 : i32
    %0 = arith.cmpi eq, %arg1, %c0_i32 : i32
    %1 = arith.extui %0 : i1 to i32
    %c0_i32_0 = arith.constant 0 : i32
    %2 = arith.cmpi ne, %1, %c0_i32_0 : i32
    scf.if %2 {
      %c0_85 = arith.constant 0 : index
      %c0_86 = arith.constant 0 : index
      %c0_87 = arith.constant 0 : index
      %191 = vector.load %arg2[%c0_85, %c0_86, %c0_87] : memref<1x8x32xf32, #tpu.memory_space<vmem>>, vector<1x8x32xf32>
      %192 = vector.shape_cast %191 : vector<1x8x32xf32> to vector<8x32xf32>
      %c0_88 = arith.constant 0 : index
      %c0_89 = arith.constant 0 : index
      %193 = vector.load %arg6[%c0_88, %c0_89] : memref<1x32xf32, #tpu.memory_space<vmem>>, vector<1x32xf32>
      %c0_90 = arith.constant 0 : index
      %c0_91 = arith.constant 0 : index
      %194 = vector.load %arg7[%c0_90, %c0_91] : memref<1x32xf32, #tpu.memory_space<vmem>>, vector<1x32xf32>
      %cst_92 = arith.constant dense<0.000000e+00> : vector<8xf32>
      %195 = vector.multi_reduction <add>, %192, %cst_92 [1] : vector<8x32xf32> to vector<8xf32>
      %196 = vector.shape_cast %195 : vector<8xf32> to vector<8x1xf32>
      %cst_93 = arith.constant 3.200000e+01 : f32
      %197 = vector.broadcast %cst_93 : f32 to vector<8x1xf32>
      %198 = arith.divf %196, %197 : vector<8x1xf32>
      %199 = vector.broadcast %198 : vector<8x1xf32> to vector<8x32xf32>
      %200 = arith.subf %192, %199 : vector<8x32xf32>
      %201 = arith.mulf %200, %200 : vector<8x32xf32>
      %cst_94 = arith.constant dense<0.000000e+00> : vector<8xf32>
      %202 = vector.multi_reduction <add>, %201, %cst_94 [1] : vector<8x32xf32> to vector<8xf32>
      %203 = vector.shape_cast %202 : vector<8xf32> to vector<8x1xf32>
      %cst_95 = arith.constant 3.200000e+01 : f32
      %204 = vector.broadcast %cst_95 : f32 to vector<8x1xf32>
      %205 = arith.divf %203, %204 : vector<8x1xf32>
      %206 = vector.broadcast %198 : vector<8x1xf32> to vector<8x32xf32>
      %207 = arith.subf %192, %206 : vector<8x32xf32>
      %cst_96 = arith.constant 9.99999974E-6 : f32
      %208 = vector.broadcast %cst_96 : f32 to vector<8x1xf32>
      %209 = arith.addf %205, %208 : vector<8x1xf32>
      %210 = math.rsqrt %209 : vector<8x1xf32>
      %211 = vector.broadcast %210 : vector<8x1xf32> to vector<8x32xf32>
      %212 = arith.mulf %207, %211 : vector<8x32xf32>
      %213 = vector.broadcast %193 : vector<1x32xf32> to vector<8x32xf32>
      %214 = arith.mulf %212, %213 : vector<8x32xf32>
      %215 = vector.broadcast %194 : vector<1x32xf32> to vector<8x32xf32>
      %216 = arith.addf %214, %215 : vector<8x32xf32>
      %c0_97 = arith.constant 0 : index
      %c0_98 = arith.constant 0 : index
      %c0_99 = arith.constant 0 : index
      %217 = vector.load %arg3[%c0_97, %c0_98, %c0_99] : memref<1x8x32xf32, #tpu.memory_space<vmem>>, vector<1x8x32xf32>
      %218 = vector.shape_cast %217 : vector<1x8x32xf32> to vector<8x32xf32>
      %c0_100 = arith.constant 0 : index
      %c0_101 = arith.constant 0 : index
      %219 = vector.load %arg8[%c0_100, %c0_101] : memref<1x32xf32, #tpu.memory_space<vmem>>, vector<1x32xf32>
      %c0_102 = arith.constant 0 : index
      %c0_103 = arith.constant 0 : index
      %220 = vector.load %arg9[%c0_102, %c0_103] : memref<1x32xf32, #tpu.memory_space<vmem>>, vector<1x32xf32>
      %cst_104 = arith.constant dense<0.000000e+00> : vector<8xf32>
      %221 = vector.multi_reduction <add>, %218, %cst_104 [1] : vector<8x32xf32> to vector<8xf32>
      %222 = vector.shape_cast %221 : vector<8xf32> to vector<8x1xf32>
      %cst_105 = arith.constant 3.200000e+01 : f32
      %223 = vector.broadcast %cst_105 : f32 to vector<8x1xf32>
      %224 = arith.divf %222, %223 : vector<8x1xf32>
      %225 = vector.broadcast %224 : vector<8x1xf32> to vector<8x32xf32>
      %226 = arith.subf %218, %225 : vector<8x32xf32>
      %227 = arith.mulf %226, %226 : vector<8x32xf32>
      %cst_106 = arith.constant dense<0.000000e+00> : vector<8xf32>
      %228 = vector.multi_reduction <add>, %227, %cst_106 [1] : vector<8x32xf32> to vector<8xf32>
      %229 = vector.shape_cast %228 : vector<8xf32> to vector<8x1xf32>
      %cst_107 = arith.constant 3.200000e+01 : f32
      %230 = vector.broadcast %cst_107 : f32 to vector<8x1xf32>
      %231 = arith.divf %229, %230 : vector<8x1xf32>
      %232 = vector.broadcast %224 : vector<8x1xf32> to vector<8x32xf32>
      %233 = arith.subf %218, %232 : vector<8x32xf32>
      %cst_108 = arith.constant 9.99999974E-6 : f32
      %234 = vector.broadcast %cst_108 : f32 to vector<8x1xf32>
      %235 = arith.addf %231, %234 : vector<8x1xf32>
      %236 = math.rsqrt %235 : vector<8x1xf32>
      %237 = vector.broadcast %236 : vector<8x1xf32> to vector<8x32xf32>
      %238 = arith.mulf %233, %237 : vector<8x32xf32>
      %239 = vector.broadcast %219 : vector<1x32xf32> to vector<8x32xf32>
      %240 = arith.mulf %238, %239 : vector<8x32xf32>
      %241 = vector.broadcast %220 : vector<1x32xf32> to vector<8x32xf32>
      %242 = arith.addf %240, %241 : vector<8x32xf32>
      %243 = arith.addf %216, %242 : vector<8x32xf32>
      %c0_109 = arith.constant 0 : index
      %c0_110 = arith.constant 0 : index
      %c0_111 = arith.constant 0 : index
      %244 = vector.load %arg4[%c0_109, %c0_110, %c0_111] : memref<1x8x32xf32, #tpu.memory_space<vmem>>, vector<1x8x32xf32>
      %245 = vector.shape_cast %244 : vector<1x8x32xf32> to vector<8x32xf32>
      %c0_112 = arith.constant 0 : index
      %c0_113 = arith.constant 0 : index
      %246 = vector.load %arg10[%c0_112, %c0_113] : memref<1x32xf32, #tpu.memory_space<vmem>>, vector<1x32xf32>
      %c0_114 = arith.constant 0 : index
      %c0_115 = arith.constant 0 : index
      %247 = vector.load %arg11[%c0_114, %c0_115] : memref<1x32xf32, #tpu.memory_space<vmem>>, vector<1x32xf32>
      %cst_116 = arith.constant dense<0.000000e+00> : vector<8xf32>
      %248 = vector.multi_reduction <add>, %245, %cst_116 [1] : vector<8x32xf32> to vector<8xf32>
      %249 = vector.shape_cast %248 : vector<8xf32> to vector<8x1xf32>
      %cst_117 = arith.constant 3.200000e+01 : f32
      %250 = vector.broadcast %cst_117 : f32 to vector<8x1xf32>
      %251 = arith.divf %249, %250 : vector<8x1xf32>
      %252 = vector.broadcast %251 : vector<8x1xf32> to vector<8x32xf32>
      %253 = arith.subf %245, %252 : vector<8x32xf32>
      %254 = arith.mulf %253, %253 : vector<8x32xf32>
      %cst_118 = arith.constant dense<0.000000e+00> : vector<8xf32>
      %255 = vector.multi_reduction <add>, %254, %cst_118 [1] : vector<8x32xf32> to vector<8xf32>
      %256 = vector.shape_cast %255 : vector<8xf32> to vector<8x1xf32>
      %cst_119 = arith.constant 3.200000e+01 : f32
      %257 = vector.broadcast %cst_119 : f32 to vector<8x1xf32>
      %258 = arith.divf %256, %257 : vector<8x1xf32>
      %259 = vector.broadcast %251 : vector<8x1xf32> to vector<8x32xf32>
      %260 = arith.subf %245, %259 : vector<8x32xf32>
      %cst_120 = arith.constant 9.99999974E-6 : f32
      %261 = vector.broadcast %cst_120 : f32 to vector<8x1xf32>
      %262 = arith.addf %258, %261 : vector<8x1xf32>
      %263 = math.rsqrt %262 : vector<8x1xf32>
      %264 = vector.broadcast %263 : vector<8x1xf32> to vector<8x32xf32>
      %265 = arith.mulf %260, %264 : vector<8x32xf32>
      %266 = vector.broadcast %246 : vector<1x32xf32> to vector<8x32xf32>
      %267 = arith.mulf %265, %266 : vector<8x32xf32>
      %268 = vector.broadcast %247 : vector<1x32xf32> to vector<8x32xf32>
      %269 = arith.addf %267, %268 : vector<8x32xf32>
      %270 = arith.addf %243, %269 : vector<8x32xf32>
      %c0_121 = arith.constant 0 : index
      %c0_122 = arith.constant 0 : index
      %271 = vector.load %arg31[%c0_121, %c0_122] : memref<8x32xf32, #tpu.memory_space<vmem>>, vector<8x32xf32>
      tpu.vector_store %arg31[%c0_121, %c0_122], %270 {strides = array<i32>} : memref<8x32xf32, #tpu.memory_space<vmem>>, vector<8x32xf32>,
    } else {
    }
    %c0 = arith.constant 0 : index
    %c0_1 = arith.constant 0 : index
    %3 = vector.load %arg31[%c0, %c0_1] : memref<8x32xf32, #tpu.memory_space<vmem>>, vector<8x32xf32>
    %4 = arith.truncf %3 : vector<8x32xf32> to vector<8x32xbf16>
    %c0_2 = arith.constant 0 : index
    %c0_3 = arith.constant 0 : index
    %c0_4 = arith.constant 0 : index
    %5 = vector.load %arg12[%c0_2, %c0_3, %c0_4] : memref<1x32x96xbf16, #tpu.memory_space<vmem>>, vector<1x32x96xbf16>
    %6 = vector.shape_cast %5 : vector<1x32x96xbf16> to vector<32x96xbf16>
    %cst = arith.constant dense<0.000000e+00> : vector<8x96xf32>
    %7 = tpu.matmul %4, %6, %cst {dimension_numbers = #tpu.dot_dimension_numbers<[1], [0], [0], [1], [0, 0, 1, 1], [], []>} : vector<8x32xbf16>, vector<32x96xbf16>, vector<8x96xf32> -> vector<8x96xf32>
    %c0_5 = arith.constant 0 : index
    %c0_6 = arith.constant 0 : index
    %c0_7 = arith.constant 0 : index
    %8 = vector.load %arg13[%c0_5, %c0_6, %c0_7] : memref<1x1x96xf32, #tpu.memory_space<vmem>>, vector<1x1x96xf32>
    %9 = vector.shape_cast %8 : vector<1x1x96xf32> to vector<1x96xf32>
    %10 = vector.broadcast %9 : vector<1x96xf32> to vector<8x96xf32>
    %11 = arith.addf %7, %10 : vector<8x96xf32>
    %c0_8 = arith.constant 0 : index
    %c0_9 = arith.constant 0 : index
    %c0_10 = arith.constant 0 : index
    %12 = vector.load %arg5[%c0_8, %c0_9, %c0_10] : memref<1x8x8xf32, #tpu.memory_space<vmem>>, vector<1x8x8xf32>
    %13 = vector.shape_cast %12 : vector<1x8x8xf32> to vector<8x8xf32>
    %14 = vector.extract_strided_slice %11 {offsets = [0, 0], sizes = [8, 8], strides = [1, 1]} : vector<8x96xf32> to vector<8x8xf32>
    %cst_11 = arith.constant 0.353553385 : f32
    %15 = vector.broadcast %cst_11 : f32 to vector<8x8xf32>
    %16 = arith.mulf %14, %15 : vector<8x8xf32>
    %17 = arith.truncf %16 : vector<8x8xf32> to vector<8x8xbf16>
    %18 = vector.extract_strided_slice %11 {offsets = [0, 32], sizes = [8, 8], strides = [1, 1]} : vector<8x96xf32> to vector<8x8xf32>
    %19 = arith.truncf %18 : vector<8x8xf32> to vector<8x8xbf16>
    %20 = vector.extract_strided_slice %11 {offsets = [0, 64], sizes = [8, 8], strides = [1, 1]} : vector<8x96xf32> to vector<8x8xf32>
    %21 = arith.truncf %20 : vector<8x8xf32> to vector<8x8xbf16>
    %cst_12 = arith.constant dense<0.000000e+00> : vector<8x8xf32>
    %22 = tpu.matmul %17, %19, %cst_12 {dimension_numbers = #tpu.dot_dimension_numbers<[1], [1], [0], [0], [0, 0, 1, 0], [], []>} : vector<8x8xbf16>, vector<8x8xbf16>, vector<8x8xf32> -> vector<8x8xf32>
    %23 = arith.addf %22, %13 : vector<8x8xf32>
    %cst_13 = arith.constant dense<0xFF800000> : vector<8xf32>
    %24 = vector.multi_reduction <maximumf>, %23, %cst_13 [1] : vector<8x8xf32> to vector<8xf32>
    %25 = vector.shape_cast %24 : vector<8xf32> to vector<8x1xf32>
    %26 = vector.broadcast %25 : vector<8x1xf32> to vector<8x8xf32>
    %27 = arith.subf %23, %26 : vector<8x8xf32>
    %28 = math.exp %27 : vector<8x8xf32>
    %cst_14 = arith.constant dense<0.000000e+00> : vector<8xf32>
    %29 = vector.multi_reduction <add>, %28, %cst_14 [1] : vector<8x8xf32> to vector<8xf32>
    %30 = vector.shape_cast %29 : vector<8xf32> to vector<8x1xf32>
    %31 = tpu.reciprocal %30 {approx = true} : vector<8x1xf32> -> vector<8x1xf32>
    %32 = vector.broadcast %31 : vector<8x1xf32> to vector<8x8xf32>
    %33 = arith.mulf %28, %32 : vector<8x8xf32>
    %34 = arith.truncf %33 : vector<8x8xf32> to vector<8x8xbf16>
    %cst_15 = arith.constant dense<0.000000e+00> : vector<8x8xf32>
    %35 = tpu.matmul %34, %21, %cst_15 {dimension_numbers = #tpu.dot_dimension_numbers<[1], [0], [0], [1], [0, 0, 1, 1], [], []>} : vector<8x8xbf16>, vector<8x8xbf16>, vector<8x8xf32> -> vector<8x8xf32>
    %c0_16 = arith.constant 0 : index
    %c0_17 = arith.constant 0 : index
    %36 = vector.load %arg32[%c0_16, %c0_17] : memref<8x32xf32, #tpu.memory_space<vmem>>, vector<8x8xf32>
    tpu.vector_store %arg32[%c0_16, %c0_17], %35 {strides = array<i32>} : memref<8x32xf32, #tpu.memory_space<vmem>>, vector<8x8xf32>,
    %37 = vector.extract_strided_slice %11 {offsets = [0, 8], sizes = [8, 8], strides = [1, 1]} : vector<8x96xf32> to vector<8x8xf32>
    %cst_18 = arith.constant 0.353553385 : f32
    %38 = vector.broadcast %cst_18 : f32 to vector<8x8xf32>
    %39 = arith.mulf %37, %38 : vector<8x8xf32>
    %40 = arith.truncf %39 : vector<8x8xf32> to vector<8x8xbf16>
    %41 = vector.extract_strided_slice %11 {offsets = [0, 40], sizes = [8, 8], strides = [1, 1]} : vector<8x96xf32> to vector<8x8xf32>
    %42 = arith.truncf %41 : vector<8x8xf32> to vector<8x8xbf16>
    %43 = vector.extract_strided_slice %11 {offsets = [0, 72], sizes = [8, 8], strides = [1, 1]} : vector<8x96xf32> to vector<8x8xf32>
    %44 = arith.truncf %43 : vector<8x8xf32> to vector<8x8xbf16>
    %cst_19 = arith.constant dense<0.000000e+00> : vector<8x8xf32>
    %45 = tpu.matmul %40, %42, %cst_19 {dimension_numbers = #tpu.dot_dimension_numbers<[1], [1], [0], [0], [0, 0, 1, 0], [], []>} : vector<8x8xbf16>, vector<8x8xbf16>, vector<8x8xf32> -> vector<8x8xf32>
    %46 = arith.addf %45, %13 : vector<8x8xf32>
    %cst_20 = arith.constant dense<0xFF800000> : vector<8xf32>
    %47 = vector.multi_reduction <maximumf>, %46, %cst_20 [1] : vector<8x8xf32> to vector<8xf32>
    %48 = vector.shape_cast %47 : vector<8xf32> to vector<8x1xf32>
    %49 = vector.broadcast %48 : vector<8x1xf32> to vector<8x8xf32>
    %50 = arith.subf %46, %49 : vector<8x8xf32>
    %51 = math.exp %50 : vector<8x8xf32>
    %cst_21 = arith.constant dense<0.000000e+00> : vector<8xf32>
    %52 = vector.multi_reduction <add>, %51, %cst_21 [1] : vector<8x8xf32> to vector<8xf32>
    %53 = vector.shape_cast %52 : vector<8xf32> to vector<8x1xf32>
    %54 = tpu.reciprocal %53 {approx = true} : vector<8x1xf32> -> vector<8x1xf32>
    %55 = vector.broadcast %54 : vector<8x1xf32> to vector<8x8xf32>
    %56 = arith.mulf %51, %55 : vector<8x8xf32>
    %57 = arith.truncf %56 : vector<8x8xf32> to vector<8x8xbf16>
    %cst_22 = arith.constant dense<0.000000e+00> : vector<8x8xf32>
    %58 = tpu.matmul %57, %44, %cst_22 {dimension_numbers = #tpu.dot_dimension_numbers<[1], [0], [0], [1], [0, 0, 1, 1], [], []>} : vector<8x8xbf16>, vector<8x8xbf16>, vector<8x8xf32> -> vector<8x8xf32>
    %c0_23 = arith.constant 0 : index
    %c8 = arith.constant 8 : index
    %59 = vector.load %arg32[%c0_23, %c8] : memref<8x32xf32, #tpu.memory_space<vmem>>, vector<8x8xf32>
    tpu.vector_store %arg32[%c0_23, %c8], %58 {strides = array<i32>} : memref<8x32xf32, #tpu.memory_space<vmem>>, vector<8x8xf32>,
    %60 = vector.extract_strided_slice %11 {offsets = [0, 16], sizes = [8, 8], strides = [1, 1]} : vector<8x96xf32> to vector<8x8xf32>
    %cst_24 = arith.constant 0.353553385 : f32
    %61 = vector.broadcast %cst_24 : f32 to vector<8x8xf32>
    %62 = arith.mulf %60, %61 : vector<8x8xf32>
    %63 = arith.truncf %62 : vector<8x8xf32> to vector<8x8xbf16>
    %64 = vector.extract_strided_slice %11 {offsets = [0, 48], sizes = [8, 8], strides = [1, 1]} : vector<8x96xf32> to vector<8x8xf32>
    %65 = arith.truncf %64 : vector<8x8xf32> to vector<8x8xbf16>
    %66 = vector.extract_strided_slice %11 {offsets = [0, 80], sizes = [8, 8], strides = [1, 1]} : vector<8x96xf32> to vector<8x8xf32>
    %67 = arith.truncf %66 : vector<8x8xf32> to vector<8x8xbf16>
    %cst_25 = arith.constant dense<0.000000e+00> : vector<8x8xf32>
    %68 = tpu.matmul %63, %65, %cst_25 {dimension_numbers = #tpu.dot_dimension_numbers<[1], [1], [0], [0], [0, 0, 1, 0], [], []>} : vector<8x8xbf16>, vector<8x8xbf16>, vector<8x8xf32> -> vector<8x8xf32>
    %69 = arith.addf %68, %13 : vector<8x8xf32>
    %cst_26 = arith.constant dense<0xFF800000> : vector<8xf32>
    %70 = vector.multi_reduction <maximumf>, %69, %cst_26 [1] : vector<8x8xf32> to vector<8xf32>
    %71 = vector.shape_cast %70 : vector<8xf32> to vector<8x1xf32>
    %72 = vector.broadcast %71 : vector<8x1xf32> to vector<8x8xf32>
    %73 = arith.subf %69, %72 : vector<8x8xf32>
    %74 = math.exp %73 : vector<8x8xf32>
    %cst_27 = arith.constant dense<0.000000e+00> : vector<8xf32>
    %75 = vector.multi_reduction <add>, %74, %cst_27 [1] : vector<8x8xf32> to vector<8xf32>
    %76 = vector.shape_cast %75 : vector<8xf32> to vector<8x1xf32>
    %77 = tpu.reciprocal %76 {approx = true} : vector<8x1xf32> -> vector<8x1xf32>
    %78 = vector.broadcast %77 : vector<8x1xf32> to vector<8x8xf32>
    %79 = arith.mulf %74, %78 : vector<8x8xf32>
    %80 = arith.truncf %79 : vector<8x8xf32> to vector<8x8xbf16>
    %cst_28 = arith.constant dense<0.000000e+00> : vector<8x8xf32>
    %81 = tpu.matmul %80, %67, %cst_28 {dimension_numbers = #tpu.dot_dimension_numbers<[1], [0], [0], [1], [0, 0, 1, 1], [], []>} : vector<8x8xbf16>, vector<8x8xbf16>, vector<8x8xf32> -> vector<8x8xf32>
    %c0_29 = arith.constant 0 : index
    %c16 = arith.constant 16 : index
    %82 = vector.load %arg32[%c0_29, %c16] : memref<8x32xf32, #tpu.memory_space<vmem>>, vector<8x8xf32>
    tpu.vector_store %arg32[%c0_29, %c16], %81 {strides = array<i32>} : memref<8x32xf32, #tpu.memory_space<vmem>>, vector<8x8xf32>,
    %83 = vector.extract_strided_slice %11 {offsets = [0, 24], sizes = [8, 8], strides = [1, 1]} : vector<8x96xf32> to vector<8x8xf32>
    %cst_30 = arith.constant 0.353553385 : f32
    %84 = vector.broadcast %cst_30 : f32 to vector<8x8xf32>
    %85 = arith.mulf %83, %84 : vector<8x8xf32>
    %86 = arith.truncf %85 : vector<8x8xf32> to vector<8x8xbf16>
    %87 = vector.extract_strided_slice %11 {offsets = [0, 56], sizes = [8, 8], strides = [1, 1]} : vector<8x96xf32> to vector<8x8xf32>
    %88 = arith.truncf %87 : vector<8x8xf32> to vector<8x8xbf16>
    %89 = vector.extract_strided_slice %11 {offsets = [0, 88], sizes = [8, 8], strides = [1, 1]} : vector<8x96xf32> to vector<8x8xf32>
    %90 = arith.truncf %89 : vector<8x8xf32> to vector<8x8xbf16>
    %cst_31 = arith.constant dense<0.000000e+00> : vector<8x8xf32>
    %91 = tpu.matmul %86, %88, %cst_31 {dimension_numbers = #tpu.dot_dimension_numbers<[1], [1], [0], [0], [0, 0, 1, 0], [], []>} : vector<8x8xbf16>, vector<8x8xbf16>, vector<8x8xf32> -> vector<8x8xf32>
    %92 = arith.addf %91, %13 : vector<8x8xf32>
    %cst_32 = arith.constant dense<0xFF800000> : vector<8xf32>
    %93 = vector.multi_reduction <maximumf>, %92, %cst_32 [1] : vector<8x8xf32> to vector<8xf32>
    %94 = vector.shape_cast %93 : vector<8xf32> to vector<8x1xf32>
    %95 = vector.broadcast %94 : vector<8x1xf32> to vector<8x8xf32>
    %96 = arith.subf %92, %95 : vector<8x8xf32>
    %97 = math.exp %96 : vector<8x8xf32>
    %cst_33 = arith.constant dense<0.000000e+00> : vector<8xf32>
    %98 = vector.multi_reduction <add>, %97, %cst_33 [1] : vector<8x8xf32> to vector<8xf32>
    %99 = vector.shape_cast %98 : vector<8xf32> to vector<8x1xf32>
    %100 = tpu.reciprocal %99 {approx = true} : vector<8x1xf32> -> vector<8x1xf32>
    %101 = vector.broadcast %100 : vector<8x1xf32> to vector<8x8xf32>
    %102 = arith.mulf %97, %101 : vector<8x8xf32>
    %103 = arith.truncf %102 : vector<8x8xf32> to vector<8x8xbf16>
    %cst_34 = arith.constant dense<0.000000e+00> : vector<8x8xf32>
    %104 = tpu.matmul %103, %90, %cst_34 {dimension_numbers = #tpu.dot_dimension_numbers<[1], [0], [0], [1], [0, 0, 1, 1], [], []>} : vector<8x8xbf16>, vector<8x8xbf16>, vector<8x8xf32> -> vector<8x8xf32>
    %c0_35 = arith.constant 0 : index
    %c24 = arith.constant 24 : index
    %105 = vector.load %arg32[%c0_35, %c24] : memref<8x32xf32, #tpu.memory_space<vmem>>, vector<8x8xf32>
    tpu.vector_store %arg32[%c0_35, %c24], %104 {strides = array<i32>} : memref<8x32xf32, #tpu.memory_space<vmem>>, vector<8x8xf32>,
    %c0_36 = arith.constant 0 : index
    %c0_37 = arith.constant 0 : index
    %106 = vector.load %arg32[%c0_36, %c0_37] : memref<8x32xf32, #tpu.memory_space<vmem>>, vector<8x32xf32>
    %107 = arith.truncf %106 : vector<8x32xf32> to vector<8x32xbf16>
    %c0_38 = arith.constant 0 : index
    %c0_39 = arith.constant 0 : index
    %c0_40 = arith.constant 0 : index
    %108 = vector.load %arg14[%c0_38, %c0_39, %c0_40] : memref<1x32x32xbf16, #tpu.memory_space<vmem>>, vector<1x32x32xbf16>
    %109 = vector.shape_cast %108 : vector<1x32x32xbf16> to vector<32x32xbf16>
    %cst_41 = arith.constant dense<0.000000e+00> : vector<8x32xf32>
    %110 = tpu.matmul %107, %109, %cst_41 {dimension_numbers = #tpu.dot_dimension_numbers<[1], [0], [0], [1], [0, 0, 1, 1], [], []>} : vector<8x32xbf16>, vector<32x32xbf16>, vector<8x32xf32> -> vector<8x32xf32>
    %c0_42 = arith.constant 0 : index
    %c0_43 = arith.constant 0 : index
    %c0_44 = arith.constant 0 : index
    %111 = vector.load %arg15[%c0_42, %c0_43, %c0_44] : memref<1x1x32xf32, #tpu.memory_space<vmem>>, vector<1x1x32xf32>
    %112 = vector.shape_cast %111 : vector<1x1x32xf32> to vector<1x32xf32>
    %113 = vector.broadcast %112 : vector<1x32xf32> to vector<8x32xf32>
    %114 = arith.addf %110, %113 : vector<8x32xf32>
    %115 = arith.addf %3, %114 : vector<8x32xf32>
    %c0_45 = arith.constant 0 : index
    %c0_46 = arith.constant 0 : index
    %c0_47 = arith.constant 0 : index
    %116 = vector.load %arg16[%c0_45, %c0_46, %c0_47] : memref<1x1x32xf32, #tpu.memory_space<vmem>>, vector<1x1x32xf32>
    %117 = vector.shape_cast %116 : vector<1x1x32xf32> to vector<1x32xf32>
    %c0_48 = arith.constant 0 : index
    %c0_49 = arith.constant 0 : index
    %c0_50 = arith.constant 0 : index
    %118 = vector.load %arg17[%c0_48, %c0_49, %c0_50] : memref<1x1x32xf32, #tpu.memory_space<vmem>>, vector<1x1x32xf32>
    %119 = vector.shape_cast %118 : vector<1x1x32xf32> to vector<1x32xf32>
    %cst_51 = arith.constant dense<0.000000e+00> : vector<8xf32>
    %120 = vector.multi_reduction <add>, %115, %cst_51 [1] : vector<8x32xf32> to vector<8xf32>
    %121 = vector.shape_cast %120 : vector<8xf32> to vector<8x1xf32>
    %cst_52 = arith.constant 3.200000e+01 : f32
    %122 = vector.broadcast %cst_52 : f32 to vector<8x1xf32>
    %123 = arith.divf %121, %122 : vector<8x1xf32>
    %124 = vector.broadcast %123 : vector<8x1xf32> to vector<8x32xf32>
    %125 = arith.subf %115, %124 : vector<8x32xf32>
    %126 = arith.mulf %125, %125 : vector<8x32xf32>
    %cst_53 = arith.constant dense<0.000000e+00> : vector<8xf32>
    %127 = vector.multi_reduction <add>, %126, %cst_53 [1] : vector<8x32xf32> to vector<8xf32>
    %128 = vector.shape_cast %127 : vector<8xf32> to vector<8x1xf32>
    %cst_54 = arith.constant 3.200000e+01 : f32
    %129 = vector.broadcast %cst_54 : f32 to vector<8x1xf32>
    %130 = arith.divf %128, %129 : vector<8x1xf32>
    %131 = vector.broadcast %123 : vector<8x1xf32> to vector<8x32xf32>
    %132 = arith.subf %115, %131 : vector<8x32xf32>
    %cst_55 = arith.constant 9.99999974E-6 : f32
    %133 = vector.broadcast %cst_55 : f32 to vector<8x1xf32>
    %134 = arith.addf %130, %133 : vector<8x1xf32>
    %135 = math.rsqrt %134 : vector<8x1xf32>
    %136 = vector.broadcast %135 : vector<8x1xf32> to vector<8x32xf32>
    %137 = arith.mulf %132, %136 : vector<8x32xf32>
    %138 = vector.broadcast %117 : vector<1x32xf32> to vector<8x32xf32>
    %139 = arith.mulf %137, %138 : vector<8x32xf32>
    %140 = vector.broadcast %119 : vector<1x32xf32> to vector<8x32xf32>
    %141 = arith.addf %139, %140 : vector<8x32xf32>
    %142 = arith.truncf %141 : vector<8x32xf32> to vector<8x32xbf16>
    %c0_56 = arith.constant 0 : index
    %c0_57 = arith.constant 0 : index
    %c0_58 = arith.constant 0 : index
    %143 = vector.load %arg18[%c0_56, %c0_57, %c0_58] : memref<1x32x64xbf16, #tpu.memory_space<vmem>>, vector<1x32x64xbf16>
    %144 = vector.shape_cast %143 : vector<1x32x64xbf16> to vector<32x64xbf16>
    %cst_59 = arith.constant dense<0.000000e+00> : vector<8x64xf32>
    %145 = tpu.matmul %142, %144, %cst_59 {dimension_numbers = #tpu.dot_dimension_numbers<[1], [0], [0], [1], [0, 0, 1, 1], [], []>} : vector<8x32xbf16>, vector<32x64xbf16>, vector<8x64xf32> -> vector<8x64xf32>
    %c0_60 = arith.constant 0 : index
    %c0_61 = arith.constant 0 : index
    %c0_62 = arith.constant 0 : index
    %146 = vector.load %arg19[%c0_60, %c0_61, %c0_62] : memref<1x1x64xf32, #tpu.memory_space<vmem>>, vector<1x1x64xf32>
    %147 = vector.shape_cast %146 : vector<1x1x64xf32> to vector<1x64xf32>
    %148 = vector.broadcast %147 : vector<1x64xf32> to vector<8x64xf32>
    %149 = arith.addf %145, %148 : vector<8x64xf32>
    %cst_63 = arith.constant 0.000000e+00 : f32
    %150 = vector.broadcast %cst_63 : f32 to vector<8x64xf32>
    %151 = arith.maximumf %149, %150 : vector<8x64xf32>
    %152 = arith.truncf %151 : vector<8x64xf32> to vector<8x64xbf16>
    %c0_64 = arith.constant 0 : index
    %c0_65 = arith.constant 0 : index
    %c0_66 = arith.constant 0 : index
    %153 = vector.load %arg20[%c0_64, %c0_65, %c0_66] : memref<1x64x32xbf16, #tpu.memory_space<vmem>>, vector<1x64x32xbf16>
    %154 = vector.shape_cast %153 : vector<1x64x32xbf16> to vector<64x32xbf16>
    %cst_67 = arith.constant dense<0.000000e+00> : vector<8x32xf32>
    %155 = tpu.matmul %152, %154, %cst_67 {dimension_numbers = #tpu.dot_dimension_numbers<[1], [0], [0], [1], [0, 0, 1, 1], [], []>} : vector<8x64xbf16>, vector<64x32xbf16>, vector<8x32xf32> -> vector<8x32xf32>
    %c0_68 = arith.constant 0 : index
    %c0_69 = arith.constant 0 : index
    %c0_70 = arith.constant 0 : index
    %156 = vector.load %arg21[%c0_68, %c0_69, %c0_70] : memref<1x1x32xf32, #tpu.memory_space<vmem>>, vector<1x1x32xf32>
    %157 = vector.shape_cast %156 : vector<1x1x32xf32> to vector<1x32xf32>
    %158 = vector.broadcast %157 : vector<1x32xf32> to vector<8x32xf32>
    %159 = arith.addf %155, %158 : vector<8x32xf32>
    %160 = arith.addf %141, %159 : vector<8x32xf32>
    %c0_71 = arith.constant 0 : index
    %c0_72 = arith.constant 0 : index
    %c0_73 = arith.constant 0 : index
    %161 = vector.load %arg22[%c0_71, %c0_72, %c0_73] : memref<1x1x32xf32, #tpu.memory_space<vmem>>, vector<1x1x32xf32>
    %162 = vector.shape_cast %161 : vector<1x1x32xf32> to vector<1x32xf32>
    %c0_74 = arith.constant 0 : index
    %c0_75 = arith.constant 0 : index
    %c0_76 = arith.constant 0 : index
    %163 = vector.load %arg23[%c0_74, %c0_75, %c0_76] : memref<1x1x32xf32, #tpu.memory_space<vmem>>, vector<1x1x32xf32>
    %164 = vector.shape_cast %163 : vector<1x1x32xf32> to vector<1x32xf32>
    %cst_77 = arith.constant dense<0.000000e+00> : vector<8xf32>
    %165 = vector.multi_reduction <add>, %160, %cst_77 [1] : vector<8x32xf32> to vector<8xf32>
    %166 = vector.shape_cast %165 : vector<8xf32> to vector<8x1xf32>
    %cst_78 = arith.constant 3.200000e+01 : f32
    %167 = vector.broadcast %cst_78 : f32 to vector<8x1xf32>
    %168 = arith.divf %166, %167 : vector<8x1xf32>
    %169 = vector.broadcast %168 : vector<8x1xf32> to vector<8x32xf32>
    %170 = arith.subf %160, %169 : vector<8x32xf32>
    %171 = arith.mulf %170, %170 : vector<8x32xf32>
    %cst_79 = arith.constant dense<0.000000e+00> : vector<8xf32>
    %172 = vector.multi_reduction <add>, %171, %cst_79 [1] : vector<8x32xf32> to vector<8xf32>
    %173 = vector.shape_cast %172 : vector<8xf32> to vector<8x1xf32>
    %cst_80 = arith.constant 3.200000e+01 : f32
    %174 = vector.broadcast %cst_80 : f32 to vector<8x1xf32>
    %175 = arith.divf %173, %174 : vector<8x1xf32>
    %176 = vector.broadcast %168 : vector<8x1xf32> to vector<8x32xf32>
    %177 = arith.subf %160, %176 : vector<8x32xf32>
    %cst_81 = arith.constant 9.99999974E-6 : f32
    %178 = vector.broadcast %cst_81 : f32 to vector<8x1xf32>
    %179 = arith.addf %175, %178 : vector<8x1xf32>
    %180 = math.rsqrt %179 : vector<8x1xf32>
    %181 = vector.broadcast %180 : vector<8x1xf32> to vector<8x32xf32>
    %182 = arith.mulf %177, %181 : vector<8x32xf32>
    %183 = vector.broadcast %162 : vector<1x32xf32> to vector<8x32xf32>
    %184 = arith.mulf %182, %183 : vector<8x32xf32>
    %185 = vector.broadcast %164 : vector<1x32xf32> to vector<8x32xf32>
    %186 = arith.addf %184, %185 : vector<8x32xf32>
    %c0_82 = arith.constant 0 : index
    %c0_83 = arith.constant 0 : index
    %187 = vector.load %arg31[%c0_82, %c0_83] : memref<8x32xf32, #tpu.memory_space<vmem>>, vector<8x32xf32>
    tpu.vector_store %arg31[%c0_82, %c0_83], %186 {strides = array<i32>} : memref<8x32xf32, #tpu.memory_space<vmem>>, vector<8x32xf32>,
    %c1_i32 = arith.constant 1 : i32
    %188 = arith.cmpi eq, %arg1, %c1_i32 : i32
    %189 = arith.extui %188 : i1 to i32
    %c0_i32_84 = arith.constant 0 : i32
    %190 = arith.cmpi ne, %189, %c0_i32_84 : i32
    scf.if %190 {
      %c0_85 = arith.constant 0 : index
      %c0_86 = arith.constant 0 : index
      %191 = vector.load %arg31[%c0_85, %c0_86] : memref<8x32xf32, #tpu.memory_space<vmem>>, vector<8x32xf32>
      %c0_87 = arith.constant 0 : index
      %c0_88 = arith.constant 0 : index
      %192 = vector.load %arg24[%c0_87, %c0_88] : memref<1x32xf32, #tpu.memory_space<vmem>>, vector<1x32xf32>
      %c0_89 = arith.constant 0 : index
      %c0_90 = arith.constant 0 : index
      %193 = vector.load %arg25[%c0_89, %c0_90] : memref<1x32xf32, #tpu.memory_space<vmem>>, vector<1x32xf32>
      %cst_91 = arith.constant dense<0.000000e+00> : vector<8xf32>
      %194 = vector.multi_reduction <add>, %191, %cst_91 [1] : vector<8x32xf32> to vector<8xf32>
      %195 = vector.shape_cast %194 : vector<8xf32> to vector<8x1xf32>
      %cst_92 = arith.constant 3.200000e+01 : f32
      %196 = vector.broadcast %cst_92 : f32 to vector<8x1xf32>
      %197 = arith.divf %195, %196 : vector<8x1xf32>
      %198 = vector.broadcast %197 : vector<8x1xf32> to vector<8x32xf32>
      %199 = arith.subf %191, %198 : vector<8x32xf32>
      %200 = arith.mulf %199, %199 : vector<8x32xf32>
      %cst_93 = arith.constant dense<0.000000e+00> : vector<8xf32>
      %201 = vector.multi_reduction <add>, %200, %cst_93 [1] : vector<8x32xf32> to vector<8xf32>
      %202 = vector.shape_cast %201 : vector<8xf32> to vector<8x1xf32>
      %cst_94 = arith.constant 3.200000e+01 : f32
      %203 = vector.broadcast %cst_94 : f32 to vector<8x1xf32>
      %204 = arith.divf %202, %203 : vector<8x1xf32>
      %205 = vector.broadcast %197 : vector<8x1xf32> to vector<8x32xf32>
      %206 = arith.subf %191, %205 : vector<8x32xf32>
      %cst_95 = arith.constant 9.99999974E-6 : f32
      %207 = vector.broadcast %cst_95 : f32 to vector<8x1xf32>
      %208 = arith.addf %204, %207 : vector<8x1xf32>
      %209 = math.rsqrt %208 : vector<8x1xf32>
      %210 = vector.broadcast %209 : vector<8x1xf32> to vector<8x32xf32>
      %211 = arith.mulf %206, %210 : vector<8x32xf32>
      %212 = vector.broadcast %192 : vector<1x32xf32> to vector<8x32xf32>
      %213 = arith.mulf %211, %212 : vector<8x32xf32>
      %214 = vector.broadcast %193 : vector<1x32xf32> to vector<8x32xf32>
      %215 = arith.addf %213, %214 : vector<8x32xf32>
      %216 = arith.truncf %215 : vector<8x32xf32> to vector<8x32xbf16>
      %c0_96 = arith.constant 0 : index
      %c0_97 = arith.constant 0 : index
      %217 = vector.load %arg26[%c0_96, %c0_97] : memref<32x32xbf16, #tpu.memory_space<vmem>>, vector<32x32xbf16>
      %cst_98 = arith.constant dense<0.000000e+00> : vector<8x32xf32>
      %218 = tpu.matmul %216, %217, %cst_98 {dimension_numbers = #tpu.dot_dimension_numbers<[1], [0], [0], [1], [0, 0, 1, 1], [], []>} : vector<8x32xbf16>, vector<32x32xbf16>, vector<8x32xf32> -> vector<8x32xf32>
      %c0_99 = arith.constant 0 : index
      %c0_100 = arith.constant 0 : index
      %219 = vector.load %arg27[%c0_99, %c0_100] : memref<1x32xf32, #tpu.memory_space<vmem>>, vector<1x32xf32>
      %220 = vector.broadcast %219 : vector<1x32xf32> to vector<8x32xf32>
      %221 = arith.addf %218, %220 : vector<8x32xf32>
      %cst_101 = arith.constant 0.000000e+00 : f32
      %222 = vector.broadcast %cst_101 : f32 to vector<8x32xf32>
      %223 = arith.maximumf %221, %222 : vector<8x32xf32>
      %c0_102 = arith.constant 0 : index
      %c0_103 = arith.constant 0 : index
      %224 = vector.load %arg28[%c0_102, %c0_103] : memref<1x32xf32, #tpu.memory_space<vmem>>, vector<1x32xf32>
      %cst_104 = arith.constant dense<0.000000e+00> : vector<1x8xf32>
      %225 = tpu.matmul %224, %223, %cst_104 {dimension_numbers = #tpu.dot_dimension_numbers<[1], [1], [0], [0], [0, 0, 1, 0], [], []>} : vector<1x32xf32>, vector<8x32xf32>, vector<1x8xf32> -> vector<1x8xf32>
      %c0_105 = arith.constant 0 : index
      %c0_106 = arith.constant 0 : index
      %226 = vector.load %arg29[%c0_105, %c0_106] : memref<1x1xf32, #tpu.memory_space<vmem>>, vector<1x1xf32>
      %227 = vector.broadcast %226 : vector<1x1xf32> to vector<1x8xf32>
      %228 = arith.addf %225, %227 : vector<1x8xf32>
      %c0_107 = arith.constant 0 : index
      %c0_108 = arith.constant 0 : index
      %c0_109 = arith.constant 0 : index
      %229 = vector.load %arg30[%c0_107, %c0_108, %c0_109] : memref<1x1x8xf32, #tpu.memory_space<vmem>>, vector<1x1x8xf32>
      %230 = vector.shape_cast %229 : vector<1x1x8xf32> to vector<1x8xf32>
      %231 = vector.shape_cast %228 : vector<1x8xf32> to vector<1x1x8xf32>
      tpu.vector_store %arg30[%c0_107, %c0_108, %c0_109], %231 {strides = array<i32>} : memref<1x1x8xf32, #tpu.memory_space<vmem>>, vector<1x1x8xf32>,
    } else {
    }
    return
  }
  func.func @transform_0(%arg0: i32, %arg1: i32) -> (i32, i32, i32) {
    %c0_i32 = arith.constant 0 : i32
    %c0_i32_0 = arith.constant 0 : i32
    %c0_i32_1 = arith.constant 0 : i32
    return %arg0, %c0_i32, %c0_i32_0 : i32, i32, i32
  }
  func.func @transform_1(%arg0: i32, %arg1: i32) -> (i32, i32, i32) {
    %c0_i32 = arith.constant 0 : i32
    %c0_i32_0 = arith.constant 0 : i32
    %c0_i32_1 = arith.constant 0 : i32
    return %arg0, %c0_i32, %c0_i32_0 : i32, i32, i32
  }
  func.func @transform_2(%arg0: i32, %arg1: i32) -> (i32, i32, i32) {
    %c0_i32 = arith.constant 0 : i32
    %c0_i32_0 = arith.constant 0 : i32
    %c0_i32_1 = arith.constant 0 : i32
    return %arg0, %c0_i32, %c0_i32_0 : i32, i32, i32
  }
  func.func @transform_3(%arg0: i32, %arg1: i32) -> (i32, i32, i32) {
    %c0_i32 = arith.constant 0 : i32
    %c0_i32_0 = arith.constant 0 : i32
    %c0_i32_1 = arith.constant 0 : i32
    return %arg0, %c0_i32, %c0_i32_0 : i32, i32, i32
  }
  func.func @transform_4(%arg0: i32, %arg1: i32) -> (i32, i32) {
    %c0_i32 = arith.constant 0 : i32
    %c0_i32_0 = arith.constant 0 : i32
    %c0_i32_1 = arith.constant 0 : i32
    return %c0_i32, %c0_i32_0 : i32, i32
  }
  func.func @transform_5(%arg0: i32, %arg1: i32) -> (i32, i32) {
    %c0_i32 = arith.constant 0 : i32
    %c0_i32_0 = arith.constant 0 : i32
    %c0_i32_1 = arith.constant 0 : i32
    return %c0_i32, %c0_i32_0 : i32, i32
  }
  func.func @transform_6(%arg0: i32, %arg1: i32) -> (i32, i32) {
    %c0_i32 = arith.constant 0 : i32
    %c0_i32_0 = arith.constant 0 : i32
    %c0_i32_1 = arith.constant 0 : i32
    return %c0_i32, %c0_i32_0 : i32, i32
  }
  func.func @transform_7(%arg0: i32, %arg1: i32) -> (i32, i32) {
    %c0_i32 = arith.constant 0 : i32
    %c0_i32_0 = arith.constant 0 : i32
    %c0_i32_1 = arith.constant 0 : i32
    return %c0_i32, %c0_i32_0 : i32, i32
  }
  func.func @transform_8(%arg0: i32, %arg1: i32) -> (i32, i32) {
    %c0_i32 = arith.constant 0 : i32
    %c0_i32_0 = arith.constant 0 : i32
    %c0_i32_1 = arith.constant 0 : i32
    return %c0_i32, %c0_i32_0 : i32, i32
  }
  func.func @transform_9(%arg0: i32, %arg1: i32) -> (i32, i32) {
    %c0_i32 = arith.constant 0 : i32
    %c0_i32_0 = arith.constant 0 : i32
    %c0_i32_1 = arith.constant 0 : i32
    return %c0_i32, %c0_i32_0 : i32, i32
  }
  func.func @transform_10(%arg0: i32, %arg1: i32) -> (i32, i32, i32) {
    %c0_i32 = arith.constant 0 : i32
    %c0_i32_0 = arith.constant 0 : i32
    %c0_i32_1 = arith.constant 0 : i32
    return %arg1, %c0_i32, %c0_i32_0 : i32, i32, i32
  }
  func.func @transform_11(%arg0: i32, %arg1: i32) -> (i32, i32, i32) {
    %c0_i32 = arith.constant 0 : i32
    %c0_i32_0 = arith.constant 0 : i32
    %c0_i32_1 = arith.constant 0 : i32
    return %arg1, %c0_i32, %c0_i32_0 : i32, i32, i32
  }
  func.func @transform_12(%arg0: i32, %arg1: i32) -> (i32, i32, i32) {
    %c0_i32 = arith.constant 0 : i32
    %c0_i32_0 = arith.constant 0 : i32
    %c0_i32_1 = arith.constant 0 : i32
    return %arg1, %c0_i32, %c0_i32_0 : i32, i32, i32
  }
  func.func @transform_13(%arg0: i32, %arg1: i32) -> (i32, i32, i32) {
    %c0_i32 = arith.constant 0 : i32
    %c0_i32_0 = arith.constant 0 : i32
    %c0_i32_1 = arith.constant 0 : i32
    return %arg1, %c0_i32, %c0_i32_0 : i32, i32, i32
  }
  func.func @transform_14(%arg0: i32, %arg1: i32) -> (i32, i32, i32) {
    %c0_i32 = arith.constant 0 : i32
    %c0_i32_0 = arith.constant 0 : i32
    %c0_i32_1 = arith.constant 0 : i32
    return %arg1, %c0_i32, %c0_i32_0 : i32, i32, i32
  }
  func.func @transform_15(%arg0: i32, %arg1: i32) -> (i32, i32, i32) {
    %c0_i32 = arith.constant 0 : i32
    %c0_i32_0 = arith.constant 0 : i32
    %c0_i32_1 = arith.constant 0 : i32
    return %arg1, %c0_i32, %c0_i32_0 : i32, i32, i32
  }
  func.func @transform_16(%arg0: i32, %arg1: i32) -> (i32, i32, i32) {
    %c0_i32 = arith.constant 0 : i32
    %c0_i32_0 = arith.constant 0 : i32
    %c0_i32_1 = arith.constant 0 : i32
    return %arg1, %c0_i32, %c0_i32_0 : i32, i32, i32
  }
  func.func @transform_17(%arg0: i32, %arg1: i32) -> (i32, i32, i32) {
    %c0_i32 = arith.constant 0 : i32
    %c0_i32_0 = arith.constant 0 : i32
    %c0_i32_1 = arith.constant 0 : i32
    return %arg1, %c0_i32, %c0_i32_0 : i32, i32, i32
  }
  func.func @transform_18(%arg0: i32, %arg1: i32) -> (i32, i32, i32) {
    %c0_i32 = arith.constant 0 : i32
    %c0_i32_0 = arith.constant 0 : i32
    %c0_i32_1 = arith.constant 0 : i32
    return %arg1, %c0_i32, %c0_i32_0 : i32, i32, i32
  }
  func.func @transform_19(%arg0: i32, %arg1: i32) -> (i32, i32, i32) {
    %c0_i32 = arith.constant 0 : i32
    %c0_i32_0 = arith.constant 0 : i32
    %c0_i32_1 = arith.constant 0 : i32
    return %arg1, %c0_i32, %c0_i32_0 : i32, i32, i32
  }
  func.func @transform_20(%arg0: i32, %arg1: i32) -> (i32, i32, i32) {
    %c0_i32 = arith.constant 0 : i32
    %c0_i32_0 = arith.constant 0 : i32
    %c0_i32_1 = arith.constant 0 : i32
    return %arg1, %c0_i32, %c0_i32_0 : i32, i32, i32
  }
  func.func @transform_21(%arg0: i32, %arg1: i32) -> (i32, i32, i32) {
    %c0_i32 = arith.constant 0 : i32
    %c0_i32_0 = arith.constant 0 : i32
    %c0_i32_1 = arith.constant 0 : i32
    return %arg1, %c0_i32, %c0_i32_0 : i32, i32, i32
  }
  func.func @transform_22(%arg0: i32, %arg1: i32) -> (i32, i32) {
    %c0_i32 = arith.constant 0 : i32
    %c0_i32_0 = arith.constant 0 : i32
    %c0_i32_1 = arith.constant 0 : i32
    return %c0_i32, %c0_i32_0 : i32, i32
  }
  func.func @transform_23(%arg0: i32, %arg1: i32) -> (i32, i32) {
    %c0_i32 = arith.constant 0 : i32
    %c0_i32_0 = arith.constant 0 : i32
    %c0_i32_1 = arith.constant 0 : i32
    return %c0_i32, %c0_i32_0 : i32, i32
  }
  func.func @transform_24(%arg0: i32, %arg1: i32) -> (i32, i32) {
    %c0_i32 = arith.constant 0 : i32
    %c0_i32_0 = arith.constant 0 : i32
    %c0_i32_1 = arith.constant 0 : i32
    return %c0_i32, %c0_i32_0 : i32, i32
  }
  func.func @transform_25(%arg0: i32, %arg1: i32) -> (i32, i32) {
    %c0_i32 = arith.constant 0 : i32
    %c0_i32_0 = arith.constant 0 : i32
    %c0_i32_1 = arith.constant 0 : i32
    return %c0_i32, %c0_i32_0 : i32, i32
  }
  func.func @transform_26(%arg0: i32, %arg1: i32) -> (i32, i32) {
    %c0_i32 = arith.constant 0 : i32
    %c0_i32_0 = arith.constant 0 : i32
    %c0_i32_1 = arith.constant 0 : i32
    return %c0_i32, %c0_i32_0 : i32, i32
  }
  func.func @transform_27(%arg0: i32, %arg1: i32) -> (i32, i32) {
    %c0_i32 = arith.constant 0 : i32
    %c0_i32_0 = arith.constant 0 : i32
    %c0_i32_1 = arith.constant 0 : i32
    return %c0_i32, %c0_i32_0 : i32, i32
  }
  func.func @transform_28(%arg0: i32, %arg1: i32) -> (i32, i32, i32) {
    %c0_i32 = arith.constant 0 : i32
    %c0_i32_0 = arith.constant 0 : i32
    %c0_i32_1 = arith.constant 0 : i32
    return %arg0, %c0_i32, %c0_i32_0 : i32, i32, i32
  }
}

</mosaic_0001>

<llo_original>
// kernel: tpu_custom_call.1
$region0: #{tpu_custom_call.1}
  #allocation0 [shape = 'u32[]', space=smem, size = 0x4, offset = 0x4, fixed_abs, tag = 'smem constant byte address 0x4 - core index']
  #allocation1 [shape = 'u32[144,128]{1,0:T(1,128)}', space=vmem, size = 0x12000, scoped, tag = 'internal scratch']
  #allocation2 [shape = 'f32[8,32]{1,0:T(8,128)}', space=vmem, size = 0x1000, scoped, tag = 'scratch operand']
  #allocation3 [shape = 'f32[8,32]{1,0:T(8,128)}', space=vmem, size = 0x1000, scoped, tag = 'scratch operand']
  #allocation4 [shape = 'f32[1,1]{1,0:T(1,128)S(1)}', space=vmem, size = 0x200, scoped, tag = 'scoped memory for tpu_custom_call.1']
  %s0 = inlined_call_operand.hbm [shape: f32[2,8,32], index: 0, kind: input, shape index: {}]
  %s1 = inlined_call_operand.hbm [shape: f32[2,8,32], index: 1, kind: input, shape index: {}]
  %s2 = inlined_call_operand.hbm [shape: f32[2,8,32], index: 2, kind: input, shape index: {}]
  %s3 = inlined_call_operand.hbm [shape: f32[2,8,8], index: 3, kind: input, shape index: {}]
  %s4 = inlined_call_operand.hbm [shape: f32[1,32], index: 4, kind: input, shape index: {}]
  %s5 = inlined_call_operand.hbm [shape: f32[1,32], index: 5, kind: input, shape index: {}]
  %s6 = inlined_call_operand.hbm [shape: f32[1,32], index: 6, kind: input, shape index: {}]
  %s7 = inlined_call_operand.hbm [shape: f32[1,32], index: 7, kind: input, shape index: {}]
  %s8 = inlined_call_operand.hbm [shape: f32[1,32], index: 8, kind: input, shape index: {}]
  %s9 = inlined_call_operand.hbm [shape: f32[1,32], index: 9, kind: input, shape index: {}]
  %s10 = inlined_call_operand.vmem [shape: bf16[2,32,96], index: 10, kind: input, shape index: {}]
  %s11 = inlined_call_operand.vmem [shape: f32[2,1,96], index: 11, kind: input, shape index: {}]
  %s12 = inlined_call_operand.vmem [shape: bf16[2,32,32], index: 12, kind: input, shape index: {}]
  %s13 = inlined_call_operand.hbm [shape: f32[2,1,32], index: 13, kind: input, shape index: {}]
  %s14 = inlined_call_operand.hbm [shape: f32[2,1,32], index: 14, kind: input, shape index: {}]
  %s15 = inlined_call_operand.hbm [shape: f32[2,1,32], index: 15, kind: input, shape index: {}]
  %s16 = inlined_call_operand.vmem [shape: bf16[2,32,64], index: 16, kind: input, shape index: {}]
  %s17 = inlined_call_operand.hbm [shape: f32[2,1,64], index: 17, kind: input, shape index: {}]
  %s18 = inlined_call_operand.vmem [shape: bf16[2,64,32], index: 18, kind: input, shape index: {}]
  %s19 = inlined_call_operand.vmem [shape: f32[2,1,32], index: 19, kind: input, shape index: {}]
  %s20 = inlined_call_operand.vmem [shape: f32[2,1,32], index: 20, kind: input, shape index: {}]
  %s21 = inlined_call_operand.vmem [shape: f32[2,1,32], index: 21, kind: input, shape index: {}]
  %s22 = inlined_call_operand.vmem [shape: f32[1,32], index: 22, kind: input, shape index: {}]
  %s23 = inlined_call_operand.vmem [shape: f32[1,32], index: 23, kind: input, shape index: {}]
  %s24 = inlined_call_operand.hbm [shape: bf16[32,32], index: 24, kind: input, shape index: {}]
  %s25 = inlined_call_operand.vmem [shape: f32[1,32], index: 25, kind: input, shape index: {}]
  %s26 = inlined_call_operand.vmem [shape: f32[1,32], index: 26, kind: input, shape index: {}]
  %s27 = inlined_call_operand.<no memory space> [shape: f32[1,1], index: 27, kind: input, shape index: {}]
  %s28 = inlined_call_operand.hbm [shape: f32[2,1,8], index: 28, kind: output, shape index: {}]
  %s29 = sld [smem:[#allocation0]]
  $region213: #{tpu_custom_call.1} parent=0
    _
  %s31 = ssub.s32 1, %s29
  %s32 = scalar_select 0, %s31, %s29
  %v33 = vstv %s27
  %34 = vst [vmem:[#allocation4] sm:$0x1] %v33
  $region1: #{tpu_custom_call.1} parent=0
    #allocation5 [shape = 'u8[8192]{0}', space=vmem, size = 0x2000, scoped, tag = 'input window, operand 0']
    #allocation6 [shape = 's32[2]{0}', space=sflag, size = 0x8, scoped, tag = 'scoped memory for tpu_custom_call.1']
    #allocation7 [shape = 's32[2]{0}', space=sflag, size = 0x8, scoped, tag = 'scoped memory for tpu_custom_call.1']
    #allocation8 [shape = 'u8[8192]{0}', space=vmem, size = 0x2000, scoped, tag = 'input window, operand 1']
    #allocation9 [shape = 's32[2]{0}', space=sflag, size = 0x8, scoped, tag = 'scoped memory for tpu_custom_call.1']
    #allocation10 [shape = 'u8[8192]{0}', space=vmem, size = 0x2000, scoped, tag = 'input window, operand 2']
    #allocation11 [shape = 'u8[8192]{0}', space=vmem, size = 0x2000, scoped, tag = 'input window, operand 3']
    #allocation12 [shape = 's32[2]{0}', space=sflag, size = 0x8, scoped, tag = 'scoped memory for tpu_custom_call.1']
    #allocation13 [shape = 'u8[512]{0}', space=vmem, size = 0x400, scoped, tag = 'input window, operand 4, single buffered']
    #allocation14 [shape = 'u8[512]{0}', space=vmem, size = 0x400, scoped, tag = 'input window, operand 5, single buffered']
    #allocation15 [shape = 's32[1]{0}', space=sflag, size = 0x4, scoped, tag = 'scoped memory for tpu_custom_call.1']
    #allocation16 [shape = 'u8[512]{0}', space=vmem, size = 0x400, scoped, tag = 'input window, operand 6, single buffered']
    #allocation17 [shape = 'u8[512]{0}', space=vmem, size = 0x400, scoped, tag = 'input window, operand 7, single buffered']
    #allocation18 [shape = 's32[1]{0}', space=sflag, size = 0x4, scoped, tag = 'scoped memory for tpu_custom_call.1']
    #allocation19 [shape = 'u8[512]{0}', space=vmem, size = 0x400, scoped, tag = 'input window, operand 8, single buffered']
    #allocation20 [shape = 'u8[512]{0}', space=vmem, size = 0x400, scoped, tag = 'input window, operand 9, single buffered']
    #allocation21 [shape = 's32[1]{0}', space=sflag, size = 0x4, scoped, tag = 'scoped memory for tpu_custom_call.1']
    #allocation22 [shape = 'u8[1024]{0}', space=vmem, size = 0x400, scoped, tag = 'input window, operand 13']
    #allocation23 [shape = 'u8[1024]{0}', space=vmem, size = 0x400, scoped, tag = 'input window, operand 14']
    #allocation24 [shape = 'u8[1024]{0}', space=vmem, size = 0x400, scoped, tag = 'input window, operand 15']
    #allocation25 [shape = 'u8[1024]{0}', space=vmem, size = 0x400, scoped, tag = 'input window, operand 17']
    #allocation26 [shape = 'u8[8192]{0}', space=vmem, size = 0x2000, scoped, tag = 'input window, operand 24, single buffered']
    #allocation27 [shape = 'u8[1024]{0}', space=vmem, size = 0x400, scoped, tag = 'output window, operand 0']
    %35 = vsyncpa [#allocation6], 0
    %s36 = scalar_lea.sflag [#allocation6], 1
    %37 = vsyncpa %s36, 0
    %38 = vsyncpa [#allocation9], 0
    %s39 = scalar_lea.sflag [#allocation9], 1
    %40 = vsyncpa %s39, 0
    %41 = vsyncpa [#allocation12], 0
    %s42 = scalar_lea.sflag [#allocation12], 1
    %43 = vsyncpa %s42, 0
    %44 = vsyncpa [#allocation15], 0
    %45 = vsyncpa [#allocation18], 0
    %46 = vsyncpa [#allocation21], 0
    %47 = vsyncpa [#allocation7], 0
    %s48 = scalar_lea.sflag [#allocation7], 1
    %49 = vsyncpa %s48, 0
    loop: start=0, step=1, limit=6
    $region2: #{tpu_custom_call.1} parent=1 // loop_pre_header
      _
    $region3: #{tpu_custom_call.1} parent=1 // loop_header
      %s51 = sphi 0, %s55
      %p52 = scmp.ge.s32.totalorder %s51, 6
      %s58 = sphi 0, %s70
      %s59 = sphi 0, %s66
      %s60 = sphi 0, %s58
      %s61 = sphi 0, %s59
      %s62 = sphi 0, %s60
      %s63 = sphi 0, %s61
      %s73 = sphi 0, %s75
      %s76 = sphi 0, %s73
      %s77 = sphi 0, %s76
      %s93 = sphi 0, %s77
      %s99 = sphi 0, %s101
      %s102 = sphi 0, %s99
      %s103 = sphi 0, %s102
      %s119 = sphi 0, %s103
      %s125 = sphi 0, %s127
      %s128 = sphi 0, %s125
      %s129 = sphi 0, %s128
      %s145 = sphi 0, %s129
      %s151 = sphi 0, %s153
      %s154 = sphi 0, %s151
      %s155 = sphi 0, %s154
      %s171 = sphi 0, %s155
      %s175 = sphi 0, %s175
      %s177 = sphi 0, %s175
      %s178 = sphi 0, %s177
      %s192 = sphi 0, %s178
      %s196 = sphi 0, %s196
      %s198 = sphi 0, %s196
      %s199 = sphi 0, %s198
      %s213 = sphi 0, %s199
      %s217 = sphi 0, %s217
      %s219 = sphi 0, %s217
      %s220 = sphi 0, %s219
      %s234 = sphi 0, %s220
      %s238 = sphi 0, %s238
      %s240 = sphi 0, %s238
      %s241 = sphi 0, %s240
      %s255 = sphi 0, %s241
      %s259 = sphi 0, %s259
      %s261 = sphi 0, %s259
      %s262 = sphi 0, %s261
      %s276 = sphi 0, %s262
      %s280 = sphi 0, %s280
      %s282 = sphi 0, %s280
      %s283 = sphi 0, %s282
      %s297 = sphi 0, %s283
      %s303 = sphi 0, %s305
      %s306 = sphi 0, %s303
      %s307 = sphi 0, %s306
      %s323 = sphi 0, %s307
      %s329 = sphi 0, %s331
      %s332 = sphi 0, %s329
      %s333 = sphi 0, %s332
      %s349 = sphi 0, %s333
      %s355 = sphi 0, %s357
      %s358 = sphi 0, %s355
      %s359 = sphi 0, %s358
      %s375 = sphi 0, %s359
      %s381 = sphi 0, %s383
      %s384 = sphi 0, %s381
      %s385 = sphi 0, %s384
      %s401 = sphi 0, %s385
      %s407 = sphi 0, %s409
      %s410 = sphi 0, %s407
      %s411 = sphi 0, %s410
      %s427 = sphi 0, %s411
      %s433 = sphi 0, %s435
      %s436 = sphi 0, %s433
      %s437 = sphi 0, %s436
      %s453 = sphi 0, %s437
      %s459 = sphi 0, %s461
      %s462 = sphi 0, %s459
      %s463 = sphi 0, %s462
      %s479 = sphi 0, %s463
      %s485 = sphi 0, %s487
      %s488 = sphi 0, %s485
      %s489 = sphi 0, %s488
      %s505 = sphi 0, %s489
      %s511 = sphi 0, %s513
      %s514 = sphi 0, %s511
      %s515 = sphi 0, %s514
      %s531 = sphi 0, %s515
      %s537 = sphi 0, %s539
      %s540 = sphi 0, %s537
      %s541 = sphi 0, %s540
      %s557 = sphi 0, %s541
      %s563 = sphi 0, %s565
      %s566 = sphi 0, %s563
      %s567 = sphi 0, %s566
      %s583 = sphi 0, %s567
      %s589 = sphi 0, %s591
      %s592 = sphi 0, %s589
      %s593 = sphi 0, %s592
      %s609 = sphi 0, %s593
      %s613 = sphi 0, %s613
      %s615 = sphi 0, %s613
      %s616 = sphi 0, %s615
      %s630 = sphi 0, %s616
      %s634 = sphi 0, %s634
      %s636 = sphi 0, %s634
      %s637 = sphi 0, %s636
      %s651 = sphi 0, %s637
      %s655 = sphi 0, %s655
      %s657 = sphi 0, %s655
      %s658 = sphi 0, %s657
      %s672 = sphi 0, %s658
      %s676 = sphi 0, %s676
      %s678 = sphi 0, %s676
      %s679 = sphi 0, %s678
      %s693 = sphi 0, %s679
      %s697 = sphi 0, %s697
      %s699 = sphi 0, %s697
      %s700 = sphi 0, %s699
      %s714 = sphi 0, %s700
      %s718 = sphi 0, %s718
      %s720 = sphi 0, %s718
      %s721 = sphi 0, %s720
      %s735 = sphi 0, %s721
      %s741 = sphi 0, %s743
      %s744 = sphi 0, %s741
      %s745 = sphi 0, %s744
      %s761 = sphi 0, %s745
    $region4: #{tpu_custom_call.1} parent=1 // loop_header_branch
      %54 = sbr.rel (%p52) target = $region8
    $region5: #{tpu_custom_call.1} parent=1 // loop_body
      %s56 = ssub.s32 %s51, 1
      %s57 = ssub.s32 %s51, 2
      %s64 = sadd.s32 1, %s59
      %p65 = scmp.ge.s32.totalorder %s64, 2
      %s66 = scalar_select %p65, 0, %s64
      %s67 = sadd.s32 1, %s58
      %s68 = scalar_select %p65, %s67, %s58
      %p69 = scmp.ge.s32.totalorder %s68, 2
      %s70 = scalar_select %p69, 0, %s68
      %s71 = ssub.s32 %s58, %s70
      %p72 = scmp.eq.s32.totalorder %s71, 0
      %s74 = sadd.s32 %s73, 1
      %s75 = scalar_select %p72, %s73, %s74
      %p78 = pneg %p72
      %p79 = scmp.eq.s32.totalorder %s51, 3
      %p80 = por %p78, %p79
      %p81 = scmp.ne.s32.totalorder %s73, %s76
      %p82 = scmp.eq.s32.totalorder %s51, 0
      %p83 = por %p81, %p82
      %p84 = scmp.ne.s32.totalorder %s73, %s76
      %p85 = scmp.eq.s32.totalorder %s56, 3
      %p86 = por %p84, %p85
      %p87 = scmp.ne.s32.totalorder %s76, %s77
      %p88 = scmp.eq.s32.totalorder %s56, 0
      %p89 = por %p87, %p88
      %p90 = scmp.ne.s32.totalorder %s76, %s77
      %p91 = scmp.eq.s32.totalorder %s57, 3
      %p92 = por %p90, %p91
      %p94 = scmp.ne.s32.totalorder %s77, %s93
      %p95 = scmp.eq.s32.totalorder %s57, 0
      %p96 = por %p94, %p95
      %s97 = ssub.s32 %s58, %s70
      %p98 = scmp.eq.s32.totalorder %s97, 0
      %s100 = sadd.s32 %s99, 1
      %s101 = scalar_select %p98, %s99, %s100
      %p104 = pneg %p98
      %p105 = scmp.eq.s32.totalorder %s51, 3
      %p106 = por %p104, %p105
      %p107 = scmp.ne.s32.totalorder %s99, %s102
      %p108 = scmp.eq.s32.totalorder %s51, 0
      %p109 = por %p107, %p108
      %p110 = scmp.ne.s32.totalorder %s99, %s102
      %p111 = scmp.eq.s32.totalorder %s56, 3
      %p112 = por %p110, %p111
      %p113 = scmp.ne.s32.totalorder %s102, %s103
      %p114 = scmp.eq.s32.totalorder %s56, 0
      %p115 = por %p113, %p114
      %p116 = scmp.ne.s32.totalorder %s102, %s103
      %p117 = scmp.eq.s32.totalorder %s57, 3
      %p118 = por %p116, %p117
      %p120 = scmp.ne.s32.totalorder %s103, %s119
      %p121 = scmp.eq.s32.totalorder %s57, 0
      %p122 = por %p120, %p121
      %s123 = ssub.s32 %s58, %s70
      %p124 = scmp.eq.s32.totalorder %s123, 0
      %s126 = sadd.s32 %s125, 1
      %s127 = scalar_select %p124, %s125, %s126
      %p130 = pneg %p124
      %p131 = scmp.eq.s32.totalorder %s51, 3
      %p132 = por %p130, %p131
      %p133 = scmp.ne.s32.totalorder %s125, %s128
      %p134 = scmp.eq.s32.totalorder %s51, 0
      %p135 = por %p133, %p134
      %p136 = scmp.ne.s32.totalorder %s125, %s128
      %p137 = scmp.eq.s32.totalorder %s56, 3
      %p138 = por %p136, %p137
      %p139 = scmp.ne.s32.totalorder %s128, %s129
      %p140 = scmp.eq.s32.totalorder %s56, 0
      %p141 = por %p139, %p140
      %p142 = scmp.ne.s32.totalorder %s128, %s129
      %p143 = scmp.eq.s32.totalorder %s57, 3
      %p144 = por %p142, %p143
      %p146 = scmp.ne.s32.totalorder %s129, %s145
      %p147 = scmp.eq.s32.totalorder %s57, 0
      %p148 = por %p146, %p147
      %s149 = ssub.s32 %s58, %s70
      %p150 = scmp.eq.s32.totalorder %s149, 0
      %s152 = sadd.s32 %s151, 1
      %s153 = scalar_select %p150, %s151, %s152
      %p156 = pneg %p150
      %p157 = scmp.eq.s32.totalorder %s51, 3
      %p158 = por %p156, %p157
      %p159 = scmp.ne.s32.totalorder %s151, %s154
      %p160 = scmp.eq.s32.totalorder %s51, 0
      %p161 = por %p159, %p160
      %p162 = scmp.ne.s32.totalorder %s151, %s154
      %p163 = scmp.eq.s32.totalorder %s56, 3
      %p164 = por %p162, %p163
      %p165 = scmp.ne.s32.totalorder %s154, %s155
      %p166 = scmp.eq.s32.totalorder %s56, 0
      %p167 = por %p165, %p166
      %p168 = scmp.ne.s32.totalorder %s154, %s155
      %p169 = scmp.eq.s32.totalorder %s57, 3
      %p170 = por %p168, %p169
      %p172 = scmp.ne.s32.totalorder %s155, %s171
      %p173 = scmp.eq.s32.totalorder %s57, 0
      %p174 = por %p172, %p173
      %s176 = sadd.s32 %s175, 1
      %p179 = scmp.eq.s32.totalorder %s51, 3
      %p180 = scmp.ne.s32.totalorder %s175, %s177
      %p181 = scmp.eq.s32.totalorder %s51, 0
      %p182 = por %p180, %p181
      %p183 = scmp.ne.s32.totalorder %s175, %s177
      %p184 = scmp.eq.s32.totalorder %s56, 3
      %p185 = por %p183, %p184
      %p186 = scmp.ne.s32.totalorder %s177, %s178
      %p187 = scmp.eq.s32.totalorder %s56, 0
      %p188 = por %p186, %p187
      %p189 = scmp.ne.s32.totalorder %s177, %s178
      %p190 = scmp.eq.s32.totalorder %s57, 3
      %p191 = por %p189, %p190
      %p193 = scmp.ne.s32.totalorder %s178, %s192
      %p194 = scmp.eq.s32.totalorder %s57, 0
      %p195 = por %p193, %p194
      %s197 = sadd.s32 %s196, 1
      %p200 = scmp.eq.s32.totalorder %s51, 3
      %p201 = scmp.ne.s32.totalorder %s196, %s198
      %p202 = scmp.eq.s32.totalorder %s51, 0
      %p203 = por %p201, %p202
      %p204 = scmp.ne.s32.totalorder %s196, %s198
      %p205 = scmp.eq.s32.totalorder %s56, 3
      %p206 = por %p204, %p205
      %p207 = scmp.ne.s32.totalorder %s198, %s199
      %p208 = scmp.eq.s32.totalorder %s56, 0
      %p209 = por %p207, %p208
      %p210 = scmp.ne.s32.totalorder %s198, %s199
      %p211 = scmp.eq.s32.totalorder %s57, 3
      %p212 = por %p210, %p211
      %p214 = scmp.ne.s32.totalorder %s199, %s213
      %p215 = scmp.eq.s32.totalorder %s57, 0
      %p216 = por %p214, %p215
      %s218 = sadd.s32 %s217, 1
      %p221 = scmp.eq.s32.totalorder %s51, 3
      %p222 = scmp.ne.s32.totalorder %s217, %s219
      %p223 = scmp.eq.s32.totalorder %s51, 0
      %p224 = por %p222, %p223
      %p225 = scmp.ne.s32.totalorder %s217, %s219
      %p226 = scmp.eq.s32.totalorder %s56, 3
      %p227 = por %p225, %p226
      %p228 = scmp.ne.s32.totalorder %s219, %s220
      %p229 = scmp.eq.s32.totalorder %s56, 0
      %p230 = por %p228, %p229
      %p231 = scmp.ne.s32.totalorder %s219, %s220
      %p232 = scmp.eq.s32.totalorder %s57, 3
      %p233 = por %p231, %p232
      %p235 = scmp.ne.s32.totalorder %s220, %s234
      %p236 = scmp.eq.s32.totalorder %s57, 0
      %p237 = por %p235, %p236
      %s239 = sadd.s32 %s238, 1
      %p242 = scmp.eq.s32.totalorder %s51, 3
      %p243 = scmp.ne.s32.totalorder %s238, %s240
      %p244 = scmp.eq.s32.totalorder %s51, 0
      %p245 = por %p243, %p244
      %p246 = scmp.ne.s32.totalorder %s238, %s240
      %p247 = scmp.eq.s32.totalorder %s56, 3
      %p248 = por %p246, %p247
      %p249 = scmp.ne.s32.totalorder %s240, %s241
      %p250 = scmp.eq.s32.totalorder %s56, 0
      %p251 = por %p249, %p250
      %p252 = scmp.ne.s32.totalorder %s240, %s241
      %p253 = scmp.eq.s32.totalorder %s57, 3
      %p254 = por %p252, %p253
      %p256 = scmp.ne.s32.totalorder %s241, %s255
      %p257 = scmp.eq.s32.totalorder %s57, 0
      %p258 = por %p256, %p257
      %s260 = sadd.s32 %s259, 1
      %p263 = scmp.eq.s32.totalorder %s51, 3
      %p264 = scmp.ne.s32.totalorder %s259, %s261
      %p265 = scmp.eq.s32.totalorder %s51, 0
      %p266 = por %p264, %p265
      %p267 = scmp.ne.s32.totalorder %s259, %s261
      %p268 = scmp.eq.s32.totalorder %s56, 3
      %p269 = por %p267, %p268
      %p270 = scmp.ne.s32.totalorder %s261, %s262
      %p271 = scmp.eq.s32.totalorder %s56, 0
      %p272 = por %p270, %p271
      %p273 = scmp.ne.s32.totalorder %s261, %s262
      %p274 = scmp.eq.s32.totalorder %s57, 3
      %p275 = por %p273, %p274
      %p277 = scmp.ne.s32.totalorder %s262, %s276
      %p278 = scmp.eq.s32.totalorder %s57, 0
      %p279 = por %p277, %p278
      %s281 = sadd.s32 %s280, 1
      %p284 = scmp.eq.s32.totalorder %s51, 3
      %p285 = scmp.ne.s32.totalorder %s280, %s282
      %p286 = scmp.eq.s32.totalorder %s51, 0
      %p287 = por %p285, %p286
      %p288 = scmp.ne.s32.totalorder %s280, %s282
      %p289 = scmp.eq.s32.totalorder %s56, 3
      %p290 = por %p288, %p289
      %p291 = scmp.ne.s32.totalorder %s282, %s283
      %p292 = scmp.eq.s32.totalorder %s56, 0
      %p293 = por %p291, %p292
      %p294 = scmp.ne.s32.totalorder %s282, %s283
      %p295 = scmp.eq.s32.totalorder %s57, 3
      %p296 = por %p294, %p295
      %p298 = scmp.ne.s32.totalorder %s283, %s297
      %p299 = scmp.eq.s32.totalorder %s57, 0
      %p300 = por %p298, %p299
      %s301 = ssub.s32 %s59, %s66
      %p302 = scmp.eq.s32.totalorder %s301, 0
      %s304 = sadd.s32 %s303, 1
      %s305 = scalar_select %p302, %s303, %s304
      %p308 = pneg %p302
      %p309 = scmp.eq.s32.totalorder %s51, 3
      %p310 = por %p308, %p309
      %p311 = scmp.ne.s32.totalorder %s303, %s306
      %p312 = scmp.eq.s32.totalorder %s51, 0
      %p313 = por %p311, %p312
      %p314 = scmp.ne.s32.totalorder %s303, %s306
      %p315 = scmp.eq.s32.totalorder %s56, 3
      %p316 = por %p314, %p315
      %p317 = scmp.ne.s32.totalorder %s306, %s307
      %p318 = scmp.eq.s32.totalorder %s56, 0
      %p319 = por %p317, %p318
      %p320 = scmp.ne.s32.totalorder %s306, %s307
      %p321 = scmp.eq.s32.totalorder %s57, 3
      %p322 = por %p320, %p321
      %p324 = scmp.ne.s32.totalorder %s307, %s323
      %p325 = scmp.eq.s32.totalorder %s57, 0
      %p326 = por %p324, %p325
      %s327 = ssub.s32 %s59, %s66
      %p328 = scmp.eq.s32.totalorder %s327, 0
      %s330 = sadd.s32 %s329, 1
      %s331 = scalar_select %p328, %s329, %s330
      %p334 = pneg %p328
      %p335 = scmp.eq.s32.totalorder %s51, 3
      %p336 = por %p334, %p335
      %p337 = scmp.ne.s32.totalorder %s329, %s332
      %p338 = scmp.eq.s32.totalorder %s51, 0
      %p339 = por %p337, %p338
      %p340 = scmp.ne.s32.totalorder %s329, %s332
      %p341 = scmp.eq.s32.totalorder %s56, 3
      %p342 = por %p340, %p341
      %p343 = scmp.ne.s32.totalorder %s332, %s333
      %p344 = scmp.eq.s32.totalorder %s56, 0
      %p345 = por %p343, %p344
      %p346 = scmp.ne.s32.totalorder %s332, %s333
      %p347 = scmp.eq.s32.totalorder %s57, 3
      %p348 = por %p346, %p347
      %p350 = scmp.ne.s32.totalorder %s333, %s349
      %p351 = scmp.eq.s32.totalorder %s57, 0
      %p352 = por %p350, %p351
      %s353 = ssub.s32 %s59, %s66
      %p354 = scmp.eq.s32.totalorder %s353, 0
      %s356 = sadd.s32 %s355, 1
      %s357 = scalar_select %p354, %s355, %s356
      %p360 = pneg %p354
      %p361 = scmp.eq.s32.totalorder %s51, 3
      %p362 = por %p360, %p361
      %p363 = scmp.ne.s32.totalorder %s355, %s358
      %p364 = scmp.eq.s32.totalorder %s51, 0
      %p365 = por %p363, %p364
      %p366 = scmp.ne.s32.totalorder %s355, %s358
      %p367 = scmp.eq.s32.totalorder %s56, 3
      %p368 = por %p366, %p367
      %p369 = scmp.ne.s32.totalorder %s358, %s359
      %p370 = scmp.eq.s32.totalorder %s56, 0
      %p371 = por %p369, %p370
      %p372 = scmp.ne.s32.totalorder %s358, %s359
      %p373 = scmp.eq.s32.totalorder %s57, 3
      %p374 = por %p372, %p373
      %p376 = scmp.ne.s32.totalorder %s359, %s375
      %p377 = scmp.eq.s32.totalorder %s57, 0
      %p378 = por %p376, %p377
      %s379 = ssub.s32 %s59, %s66
      %p380 = scmp.eq.s32.totalorder %s379, 0
      %s382 = sadd.s32 %s381, 1
      %s383 = scalar_select %p380, %s381, %s382
      %p386 = pneg %p380
      %p387 = scmp.eq.s32.totalorder %s51, 3
      %p388 = por %p386, %p387
      %p389 = scmp.ne.s32.totalorder %s381, %s384
      %p390 = scmp.eq.s32.totalorder %s51, 0
      %p391 = por %p389, %p390
      %p392 = scmp.ne.s32.totalorder %s381, %s384
      %p393 = scmp.eq.s32.totalorder %s56, 3
      %p394 = por %p392, %p393
      %p395 = scmp.ne.s32.totalorder %s384, %s385
      %p396 = scmp.eq.s32.totalorder %s56, 0
      %p397 = por %p395, %p396
      %p398 = scmp.ne.s32.totalorder %s384, %s385
      %p399 = scmp.eq.s32.totalorder %s57, 3
      %p400 = por %p398, %p399
      %p402 = scmp.ne.s32.totalorder %s385, %s401
      %p403 = scmp.eq.s32.totalorder %s57, 0
      %p404 = por %p402, %p403
      %s405 = ssub.s32 %s59, %s66
      %p406 = scmp.eq.s32.totalorder %s405, 0
      %s408 = sadd.s32 %s407, 1
      %s409 = scalar_select %p406, %s407, %s408
      %p412 = pneg %p406
      %p413 = scmp.eq.s32.totalorder %s51, 3
      %p414 = por %p412, %p413
      %p415 = scmp.ne.s32.totalorder %s407, %s410
      %p416 = scmp.eq.s32.totalorder %s51, 0
      %p417 = por %p415, %p416
      %p418 = scmp.ne.s32.totalorder %s407, %s410
      %p419 = scmp.eq.s32.totalorder %s56, 3
      %p420 = por %p418, %p419
      %p421 = scmp.ne.s32.totalorder %s410, %s411
      %p422 = scmp.eq.s32.totalorder %s56, 0
      %p423 = por %p421, %p422
      %p424 = scmp.ne.s32.totalorder %s410, %s411
      %p425 = scmp.eq.s32.totalorder %s57, 3
      %p426 = por %p424, %p425
      %p428 = scmp.ne.s32.totalorder %s411, %s427
      %p429 = scmp.eq.s32.totalorder %s57, 0
      %p430 = por %p428, %p429
      %s431 = ssub.s32 %s59, %s66
      %p432 = scmp.eq.s32.totalorder %s431, 0
      %s434 = sadd.s32 %s433, 1
      %s435 = scalar_select %p432, %s433, %s434
      %p438 = pneg %p432
      %p439 = scmp.eq.s32.totalorder %s51, 3
      %p440 = por %p438, %p439
      %p441 = scmp.ne.s32.totalorder %s433, %s436
      %p442 = scmp.eq.s32.totalorder %s51, 0
      %p443 = por %p441, %p442
      %p444 = scmp.ne.s32.totalorder %s433, %s436
      %p445 = scmp.eq.s32.totalorder %s56, 3
      %p446 = por %p444, %p445
      %p447 = scmp.ne.s32.totalorder %s436, %s437
      %p448 = scmp.eq.s32.totalorder %s56, 0
      %p449 = por %p447, %p448
      %p450 = scmp.ne.s32.totalorder %s436, %s437
      %p451 = scmp.eq.s32.totalorder %s57, 3
      %p452 = por %p450, %p451
      %p454 = scmp.ne.s32.totalorder %s437, %s453
      %p455 = scmp.eq.s32.totalorder %s57, 0
      %p456 = por %p454, %p455
      %s457 = ssub.s32 %s59, %s66
      %p458 = scmp.eq.s32.totalorder %s457, 0
      %s460 = sadd.s32 %s459, 1
      %s461 = scalar_select %p458, %s459, %s460
      %p464 = pneg %p458
      %p465 = scmp.eq.s32.totalorder %s51, 3
      %p466 = por %p464, %p465
      %p467 = scmp.ne.s32.totalorder %s459, %s462
      %p468 = scmp.eq.s32.totalorder %s51, 0
      %p469 = por %p467, %p468
      %p470 = scmp.ne.s32.totalorder %s459, %s462
      %p471 = scmp.eq.s32.totalorder %s56, 3
      %p472 = por %p470, %p471
      %p473 = scmp.ne.s32.totalorder %s462, %s463
      %p474 = scmp.eq.s32.totalorder %s56, 0
      %p475 = por %p473, %p474
      %p476 = scmp.ne.s32.totalorder %s462, %s463
      %p477 = scmp.eq.s32.totalorder %s57, 3
      %p478 = por %p476, %p477
      %p480 = scmp.ne.s32.totalorder %s463, %s479
      %p481 = scmp.eq.s32.totalorder %s57, 0
      %p482 = por %p480, %p481
      %s483 = ssub.s32 %s59, %s66
      %p484 = scmp.eq.s32.totalorder %s483, 0
      %s486 = sadd.s32 %s485, 1
      %s487 = scalar_select %p484, %s485, %s486
      %p490 = pneg %p484
      %p491 = scmp.eq.s32.totalorder %s51, 3
      %p492 = por %p490, %p491
      %p493 = scmp.ne.s32.totalorder %s485, %s488
      %p494 = scmp.eq.s32.totalorder %s51, 0
      %p495 = por %p493, %p494
      %p496 = scmp.ne.s32.totalorder %s485, %s488
      %p497 = scmp.eq.s32.totalorder %s56, 3
      %p498 = por %p496, %p497
      %p499 = scmp.ne.s32.totalorder %s488, %s489
      %p500 = scmp.eq.s32.totalorder %s56, 0
      %p501 = por %p499, %p500
      %p502 = scmp.ne.s32.totalorder %s488, %s489
      %p503 = scmp.eq.s32.totalorder %s57, 3
      %p504 = por %p502, %p503
      %p506 = scmp.ne.s32.totalorder %s489, %s505
      %p507 = scmp.eq.s32.totalorder %s57, 0
      %p508 = por %p506, %p507
      %s509 = ssub.s32 %s59, %s66
      %p510 = scmp.eq.s32.totalorder %s509, 0
      %s512 = sadd.s32 %s511, 1
      %s513 = scalar_select %p510, %s511, %s512
      %p516 = pneg %p510
      %p517 = scmp.eq.s32.totalorder %s51, 3
      %p518 = por %p516, %p517
      %p519 = scmp.ne.s32.totalorder %s511, %s514
      %p520 = scmp.eq.s32.totalorder %s51, 0
      %p521 = por %p519, %p520
      %p522 = scmp.ne.s32.totalorder %s511, %s514
      %p523 = scmp.eq.s32.totalorder %s56, 3
      %p524 = por %p522, %p523
      %p525 = scmp.ne.s32.totalorder %s514, %s515
      %p526 = scmp.eq.s32.totalorder %s56, 0
      %p527 = por %p525, %p526
      %p528 = scmp.ne.s32.totalorder %s514, %s515
      %p529 = scmp.eq.s32.totalorder %s57, 3
      %p530 = por %p528, %p529
      %p532 = scmp.ne.s32.totalorder %s515, %s531
      %p533 = scmp.eq.s32.totalorder %s57, 0
      %p534 = por %p532, %p533
      %s535 = ssub.s32 %s59, %s66
      %p536 = scmp.eq.s32.totalorder %s535, 0
      %s538 = sadd.s32 %s537, 1
      %s539 = scalar_select %p536, %s537, %s538
      %p542 = pneg %p536
      %p543 = scmp.eq.s32.totalorder %s51, 3
      %p544 = por %p542, %p543
      %p545 = scmp.ne.s32.totalorder %s537, %s540
      %p546 = scmp.eq.s32.totalorder %s51, 0
      %p547 = por %p545, %p546
      %p548 = scmp.ne.s32.totalorder %s537, %s540
      %p549 = scmp.eq.s32.totalorder %s56, 3
      %p550 = por %p548, %p549
      %p551 = scmp.ne.s32.totalorder %s540, %s541
      %p552 = scmp.eq.s32.totalorder %s56, 0
      %p553 = por %p551, %p552
      %p554 = scmp.ne.s32.totalorder %s540, %s541
      %p555 = scmp.eq.s32.totalorder %s57, 3
      %p556 = por %p554, %p555
      %p558 = scmp.ne.s32.totalorder %s541, %s557
      %p559 = scmp.eq.s32.totalorder %s57, 0
      %p560 = por %p558, %p559
      %s561 = ssub.s32 %s59, %s66
      %p562 = scmp.eq.s32.totalorder %s561, 0
      %s564 = sadd.s32 %s563, 1
      %s565 = scalar_select %p562, %s563, %s564
      %p568 = pneg %p562
      %p569 = scmp.eq.s32.totalorder %s51, 3
      %p570 = por %p568, %p569
      %p571 = scmp.ne.s32.totalorder %s563, %s566
      %p572 = scmp.eq.s32.totalorder %s51, 0
      %p573 = por %p571, %p572
      %p574 = scmp.ne.s32.totalorder %s563, %s566
      %p575 = scmp.eq.s32.totalorder %s56, 3
      %p576 = por %p574, %p575
      %p577 = scmp.ne.s32.totalorder %s566, %s567
      %p578 = scmp.eq.s32.totalorder %s56, 0
      %p579 = por %p577, %p578
      %p580 = scmp.ne.s32.totalorder %s566, %s567
      %p581 = scmp.eq.s32.totalorder %s57, 3
      %p582 = por %p580, %p581
      %p584 = scmp.ne.s32.totalorder %s567, %s583
      %p585 = scmp.eq.s32.totalorder %s57, 0
      %p586 = por %p584, %p585
      %s587 = ssub.s32 %s59, %s66
      %p588 = scmp.eq.s32.totalorder %s587, 0
      %s590 = sadd.s32 %s589, 1
      %s591 = scalar_select %p588, %s589, %s590
      %p594 = pneg %p588
      %p595 = scmp.eq.s32.totalorder %s51, 3
      %p596 = por %p594, %p595
      %p597 = scmp.ne.s32.totalorder %s589, %s592
      %p598 = scmp.eq.s32.totalorder %s51, 0
      %p599 = por %p597, %p598
      %p600 = scmp.ne.s32.totalorder %s589, %s592
      %p601 = scmp.eq.s32.totalorder %s56, 3
      %p602 = por %p600, %p601
      %p603 = scmp.ne.s32.totalorder %s592, %s593
      %p604 = scmp.eq.s32.totalorder %s56, 0
      %p605 = por %p603, %p604
      %p606 = scmp.ne.s32.totalorder %s592, %s593
      %p607 = scmp.eq.s32.totalorder %s57, 3
      %p608 = por %p606, %p607
      %p610 = scmp.ne.s32.totalorder %s593, %s609
      %p611 = scmp.eq.s32.totalorder %s57, 0
      %p612 = por %p610, %p611
      %s614 = sadd.s32 %s613, 1
      %p617 = scmp.eq.s32.totalorder %s51, 3
      %p618 = scmp.ne.s32.totalorder %s613, %s615
      %p619 = scmp.eq.s32.totalorder %s51, 0
      %p620 = por %p618, %p619
      %p621 = scmp.ne.s32.totalorder %s613, %s615
      %p622 = scmp.eq.s32.totalorder %s56, 3
      %p623 = por %p621, %p622
      %p624 = scmp.ne.s32.totalorder %s615, %s616
      %p625 = scmp.eq.s32.totalorder %s56, 0
      %p626 = por %p624, %p625
      %p627 = scmp.ne.s32.totalorder %s615, %s616
      %p628 = scmp.eq.s32.totalorder %s57, 3
      %p629 = por %p627, %p628
      %p631 = scmp.ne.s32.totalorder %s616, %s630
      %p632 = scmp.eq.s32.totalorder %s57, 0
      %p633 = por %p631, %p632
      %s635 = sadd.s32 %s634, 1
      %p638 = scmp.eq.s32.totalorder %s51, 3
      %p639 = scmp.ne.s32.totalorder %s634, %s636
      %p640 = scmp.eq.s32.totalorder %s51, 0
      %p641 = por %p639, %p640
      %p642 = scmp.ne.s32.totalorder %s634, %s636
      %p643 = scmp.eq.s32.totalorder %s56, 3
      %p644 = por %p642, %p643
      %p645 = scmp.ne.s32.totalorder %s636, %s637
      %p646 = scmp.eq.s32.totalorder %s56, 0
      %p647 = por %p645, %p646
      %p648 = scmp.ne.s32.totalorder %s636, %s637
      %p649 = scmp.eq.s32.totalorder %s57, 3
      %p650 = por %p648, %p649
      %p652 = scmp.ne.s32.totalorder %s637, %s651
      %p653 = scmp.eq.s32.totalorder %s57, 0
      %p654 = por %p652, %p653
      %s656 = sadd.s32 %s655, 1
      %p659 = scmp.eq.s32.totalorder %s51, 3
      %p660 = scmp.ne.s32.totalorder %s655, %s657
      %p661 = scmp.eq.s32.totalorder %s51, 0
      %p662 = por %p660, %p661
      %p663 = scmp.ne.s32.totalorder %s655, %s657
      %p664 = scmp.eq.s32.totalorder %s56, 3
      %p665 = por %p663, %p664
      %p666 = scmp.ne.s32.totalorder %s657, %s658
      %p667 = scmp.eq.s32.totalorder %s56, 0
      %p668 = por %p666, %p667
      %p669 = scmp.ne.s32.totalorder %s657, %s658
      %p670 = scmp.eq.s32.totalorder %s57, 3
      %p671 = por %p669, %p670
      %p673 = scmp.ne.s32.totalorder %s658, %s672
      %p674 = scmp.eq.s32.totalorder %s57, 0
      %p675 = por %p673, %p674
      %s677 = sadd.s32 %s676, 1
      %p680 = scmp.eq.s32.totalorder %s51, 3
      %p681 = scmp.ne.s32.totalorder %s676, %s678
      %p682 = scmp.eq.s32.totalorder %s51, 0
      %p683 = por %p681, %p682
      %p684 = scmp.ne.s32.totalorder %s676, %s678
      %p685 = scmp.eq.s32.totalorder %s56, 3
      %p686 = por %p684, %p685
      %p687 = scmp.ne.s32.totalorder %s678, %s679
      %p688 = scmp.eq.s32.totalorder %s56, 0
      %p689 = por %p687, %p688
      %p690 = scmp.ne.s32.totalorder %s678, %s679
      %p691 = scmp.eq.s32.totalorder %s57, 3
      %p692 = por %p690, %p691
      %p694 = scmp.ne.s32.totalorder %s679, %s693
      %p695 = scmp.eq.s32.totalorder %s57, 0
      %p696 = por %p694, %p695
      %s698 = sadd.s32 %s697, 1
      %p701 = scmp.eq.s32.totalorder %s51, 3
      %p702 = scmp.ne.s32.totalorder %s697, %s699
      %p703 = scmp.eq.s32.totalorder %s51, 0
      %p704 = por %p702, %p703
      %p705 = scmp.ne.s32.totalorder %s697, %s699
      %p706 = scmp.eq.s32.totalorder %s56, 3
      %p707 = por %p705, %p706
      %p708 = scmp.ne.s32.totalorder %s699, %s700
      %p709 = scmp.eq.s32.totalorder %s56, 0
      %p710 = por %p708, %p709
      %p711 = scmp.ne.s32.totalorder %s699, %s700
      %p712 = scmp.eq.s32.totalorder %s57, 3
      %p713 = por %p711, %p712
      %p715 = scmp.ne.s32.totalorder %s700, %s714
      %p716 = scmp.eq.s32.totalorder %s57, 0
      %p717 = por %p715, %p716
      %s719 = sadd.s32 %s718, 1
      %p722 = scmp.eq.s32.totalorder %s51, 3
      %p723 = scmp.ne.s32.totalorder %s718, %s720
      %p724 = scmp.eq.s32.totalorder %s51, 0
      %p725 = por %p723, %p724
      %p726 = scmp.ne.s32.totalorder %s718, %s720
      %p727 = scmp.eq.s32.totalorder %s56, 3
      %p728 = por %p726, %p727
      %p729 = scmp.ne.s32.totalorder %s720, %s721
      %p730 = scmp.eq.s32.totalorder %s56, 0
      %p731 = por %p729, %p730
      %p732 = scmp.ne.s32.totalorder %s720, %s721
      %p733 = scmp.eq.s32.totalorder %s57, 3
      %p734 = por %p732, %p733
      %p736 = scmp.ne.s32.totalorder %s721, %s735
      %p737 = scmp.eq.s32.totalorder %s57, 0
      %p738 = por %p736, %p737
      %s739 = ssub.s32 %s58, %s70
      %p740 = scmp.eq.s32.totalorder %s739, 0
      %s742 = sadd.s32 %s741, 1
      %s743 = scalar_select %p740, %s741, %s742
      %p746 = pneg %p740
      %p747 = scmp.eq.s32.totalorder %s51, 3
      %p748 = por %p746, %p747
      %p749 = scmp.ne.s32.totalorder %s741, %s744
      %p750 = scmp.eq.s32.totalorder %s51, 0
      %p751 = por %p749, %p750
      %p752 = scmp.ne.s32.totalorder %s741, %s744
      %p753 = scmp.eq.s32.totalorder %s56, 3
      %p754 = por %p752, %p753
      %p755 = scmp.ne.s32.totalorder %s744, %s745
      %p756 = scmp.eq.s32.totalorder %s56, 0
      %p757 = por %p755, %p756
      %p758 = scmp.ne.s32.totalorder %s744, %s745
      %p759 = scmp.eq.s32.totalorder %s57, 3
      %p760 = por %p758, %p759
      %p762 = scmp.ne.s32.totalorder %s745, %s761
      %p763 = scmp.eq.s32.totalorder %s57, 0
      %p764 = por %p762, %p763
      %p765 = scmp.le.s32.totalorder 1, %s51
      %p766 = scmp.lt.s32.totalorder %s51, 5
      %p767 = pnand %p765, %p766
      %p768 = pneg %p767
      // Predicated region
      $region9: #{tpu_custom_call.1} parent=5 // pred_check
        _
      $region10: #{tpu_custom_call.1} parent=5 // pred_check_branch
        %770 = sbr.rel (%p767) target = $region12
      $region11: #{tpu_custom_call.1} parent=5 // pred_region
        %s771 = ssub.s32 %s51, 1
        // Predicated region
        $region13: #{tpu_custom_call.1} parent=11 // pred_check
          %p772 = pneg %p188
        $region14: #{tpu_custom_call.1} parent=11 // pred_check_branch
          %774 = sbr.rel (%p772) target = $region16
        $region15: #{tpu_custom_call.1} parent=11 // pred_region
          %s776 = ssub.s32 16, 16
          %777 = vsyncadd [#allocation12], %s776
          %s779 = sshll.u32 [#allocation13], 4
          %s780 = int_to_ptr.vmem [resolvable:$true] %s779
          %782 = dma.hbm_to_vmem [thread:$0]  %s4, 16, %s780, [#allocation12]
        $region16: #{tpu_custom_call.1} parent=11 // pred_fallthru
          _
        // Predicated region
        $region17: #{tpu_custom_call.1} parent=11 // pred_check
          %p783 = pneg %p209
        $region18: #{tpu_custom_call.1} parent=11 // pred_check_branch
          %785 = sbr.rel (%p783) target = $region20
        $region19: #{tpu_custom_call.1} parent=11 // pred_region
          %s787 = ssub.s32 16, 16
          %788 = vsyncadd [#allocation15], %s787
          %s790 = sshll.u32 [#allocation14], 4
          %s791 = int_to_ptr.vmem [resolvable:$true] %s790
          %793 = dma.hbm_to_vmem [thread:$0]  %s5, 16, %s791, [#allocation15]
        $region20: #{tpu_custom_call.1} parent=11 // pred_fallthru
          _
        // Predicated region
        $region21: #{tpu_custom_call.1} parent=11 // pred_check
          %p794 = pneg %p230
        $region22: #{tpu_custom_call.1} parent=11 // pred_check_branch
          %796 = sbr.rel (%p794) target = $region24
        $region23: #{tpu_custom_call.1} parent=11 // pred_region
          %s798 = ssub.s32 16, 16
          %799 = vsyncadd [#allocation15], %s798
          %s801 = sshll.u32 [#allocation16], 4
          %s802 = int_to_ptr.vmem [resolvable:$true] %s801
          %804 = dma.hbm_to_vmem [thread:$0]  %s6, 16, %s802, [#allocation15]
        $region24: #{tpu_custom_call.1} parent=11 // pred_fallthru
          _
        // Predicated region
        $region25: #{tpu_custom_call.1} parent=11 // pred_check
          %p805 = pneg %p251
        $region26: #{tpu_custom_call.1} parent=11 // pred_check_branch
          %807 = sbr.rel (%p805) target = $region28
        $region27: #{tpu_custom_call.1} parent=11 // pred_region
          %s809 = ssub.s32 16, 16
          %810 = vsyncadd [#allocation18], %s809
          %s812 = sshll.u32 [#allocation17], 4
          %s813 = int_to_ptr.vmem [resolvable:$true] %s812
          %815 = dma.hbm_to_vmem [thread:$0]  %s7, 16, %s813, [#allocation18]
        $region28: #{tpu_custom_call.1} parent=11 // pred_fallthru
          _
        // Predicated region
        $region29: #{tpu_custom_call.1} parent=11 // pred_check
          %p816 = pneg %p272
        $region30: #{tpu_custom_call.1} parent=11 // pred_check_branch
          %818 = sbr.rel (%p816) target = $region32
        $region31: #{tpu_custom_call.1} parent=11 // pred_region
          %s820 = ssub.s32 16, 16
          %821 = vsyncadd [#allocation18], %s820
          %s823 = sshll.u32 [#allocation19], 4
          %s824 = int_to_ptr.vmem [resolvable:$true] %s823
          %826 = dma.hbm_to_vmem [thread:$0]  %s8, 16, %s824, [#allocation18]
        $region32: #{tpu_custom_call.1} parent=11 // pred_fallthru
          _
        // Predicated region
        $region33: #{tpu_custom_call.1} parent=11 // pred_check
          %p827 = pneg %p293
        $region34: #{tpu_custom_call.1} parent=11 // pred_check_branch
          %829 = sbr.rel (%p827) target = $region36
        $region35: #{tpu_custom_call.1} parent=11 // pred_region
          %s831 = ssub.s32 16, 16
          %832 = vsyncadd [#allocation21], %s831
          %s834 = sshll.u32 [#allocation20], 4
          %s835 = int_to_ptr.vmem [resolvable:$true] %s834
          %837 = dma.hbm_to_vmem [thread:$0]  %s9, 16, %s835, [#allocation21]
        $region36: #{tpu_custom_call.1} parent=11 // pred_fallthru
          _
        // Predicated region
        $region37: #{tpu_custom_call.1} parent=11 // pred_check
          %p838 = pneg %p626
        $region38: #{tpu_custom_call.1} parent=11 // pred_check_branch
          %840 = sbr.rel (%p838) target = $region40
        $region39: #{tpu_custom_call.1} parent=11 // pred_region
          _
        $region40: #{tpu_custom_call.1} parent=11 // pred_fallthru
          _
        // Predicated region
        $region41: #{tpu_custom_call.1} parent=11 // pred_check
          %p841 = pneg %p647
        $region42: #{tpu_custom_call.1} parent=11 // pred_check_branch
          %843 = sbr.rel (%p841) target = $region44
        $region43: #{tpu_custom_call.1} parent=11 // pred_region
          _
        $region44: #{tpu_custom_call.1} parent=11 // pred_fallthru
          _
        // Predicated region
        $region45: #{tpu_custom_call.1} parent=11 // pred_check
          %p844 = pneg %p668
        $region46: #{tpu_custom_call.1} parent=11 // pred_check_branch
          %846 = sbr.rel (%p844) target = $region48
        $region47: #{tpu_custom_call.1} parent=11 // pred_region
          %s848 = ssub.s32 256, 256
          %849 = vsyncadd [#allocation9], %s848
          %s850 = sshll.u32 [#allocation26], 4
          %s851 = int_to_ptr.vmem [resolvable:$true] %s850
          %856 = dma.hbm_to_vmem [thread:$0]  %s24, 256, %s851, [#allocation9], 64, 64, 4
        $region48: #{tpu_custom_call.1} parent=11 // pred_fallthru
          _
        // Predicated region
        $region49: #{tpu_custom_call.1} parent=11 // pred_check
          %p857 = pneg %p689
        $region50: #{tpu_custom_call.1} parent=11 // pred_check_branch
          %859 = sbr.rel (%p857) target = $region52
        $region51: #{tpu_custom_call.1} parent=11 // pred_region
          _
        $region52: #{tpu_custom_call.1} parent=11 // pred_fallthru
          _
        // Predicated region
        $region53: #{tpu_custom_call.1} parent=11 // pred_check
          %p860 = pneg %p710
        $region54: #{tpu_custom_call.1} parent=11 // pred_check_branch
          %862 = sbr.rel (%p860) target = $region56
        $region55: #{tpu_custom_call.1} parent=11 // pred_region
          _
        $region56: #{tpu_custom_call.1} parent=11 // pred_fallthru
          _
        // Predicated region
        $region57: #{tpu_custom_call.1} parent=11 // pred_check
          %p863 = pneg %p731
        $region58: #{tpu_custom_call.1} parent=11 // pred_check_branch
          %865 = sbr.rel (%p863) target = $region60
        $region59: #{tpu_custom_call.1} parent=11 // pred_region
          _
        $region60: #{tpu_custom_call.1} parent=11 // pred_fallthru
          _
      $region12: #{tpu_custom_call.1} parent=5 // pred_fallthru
        _
      %p866 = scmp.lt.s32.totalorder %s51, 4
      // Predicated region
      $region61: #{tpu_custom_call.1} parent=5 // pred_check
        %p867 = pneg %p866
      $region62: #{tpu_custom_call.1} parent=5 // pred_check_branch
        %869 = sbr.rel (%p867) target = $region64
      $region63: #{tpu_custom_call.1} parent=5 // pred_region
        // Predicated region
        $region65: #{tpu_custom_call.1} parent=63 // pred_check
          %p870 = pneg %p83
        $region66: #{tpu_custom_call.1} parent=63 // pred_check_branch
          %872 = sbr.rel (%p870) target = $region68
        $region67: #{tpu_custom_call.1} parent=63 // pred_region
          %s873 = sand.u32 %s51, 1
          %s874 = scalar_lea.sflag [#allocation6], %s873
          %s875 = sand.u32 %s73, 1
          %s876 = smul.addr %s875, 8
          %s877 = scalar_lea.vmem [#allocation5], %s876
          %s879 = ssub.s32 128, 128
          %880 = vsyncadd %s874, %s879
          %s881 = smul.addr %s58, 128
          %s882 = scalar_lea.hbm %s0, %s881
          %s884 = sshll.u32 %s877, 4
          %s885 = int_to_ptr.vmem [resolvable:$true] %s884
          %887 = dma.hbm_to_vmem [thread:$0]  %s882, 128, %s885, %s874
        $region68: #{tpu_custom_call.1} parent=63 // pred_fallthru
          _
        // Predicated region
        $region69: #{tpu_custom_call.1} parent=63 // pred_check
          %p888 = pneg %p109
        $region70: #{tpu_custom_call.1} parent=63 // pred_check_branch
          %890 = sbr.rel (%p888) target = $region72
        $region71: #{tpu_custom_call.1} parent=63 // pred_region
          %s891 = sand.u32 %s51, 1
          %s892 = scalar_lea.sflag [#allocation9], %s891
          %s893 = sand.u32 %s99, 1
          %s894 = smul.addr %s893, 8
          %s895 = scalar_lea.vmem [#allocation8], %s894
          %s897 = ssub.s32 128, 128
          %898 = vsyncadd %s892, %s897
          %s899 = smul.addr %s58, 128
          %s900 = scalar_lea.hbm %s1, %s899
          %s902 = sshll.u32 %s895, 4
          %s903 = int_to_ptr.vmem [resolvable:$true] %s902
          %905 = dma.hbm_to_vmem [thread:$0]  %s900, 128, %s903, %s892
        $region72: #{tpu_custom_call.1} parent=63 // pred_fallthru
          _
        // Predicated region
        $region73: #{tpu_custom_call.1} parent=63 // pred_check
          %p906 = pneg %p135
        $region74: #{tpu_custom_call.1} parent=63 // pred_check_branch
          %908 = sbr.rel (%p906) target = $region76
        $region75: #{tpu_custom_call.1} parent=63 // pred_region
          %s909 = sand.u32 %s51, 1
          %s910 = scalar_lea.sflag [#allocation9], %s909
          %s911 = sand.u32 %s125, 1
          %s912 = smul.addr %s911, 8
          %s913 = scalar_lea.vmem [#allocation10], %s912
          %s915 = ssub.s32 128, 128
          %916 = vsyncadd %s910, %s915
          %s917 = smul.addr %s58, 128
          %s918 = scalar_lea.hbm %s2, %s917
          %s920 = sshll.u32 %s913, 4
          %s921 = int_to_ptr.vmem [resolvable:$true] %s920
          %923 = dma.hbm_to_vmem [thread:$0]  %s918, 128, %s921, %s910
        $region76: #{tpu_custom_call.1} parent=63 // pred_fallthru
          _
        // Predicated region
        $region77: #{tpu_custom_call.1} parent=63 // pred_check
          %p924 = pneg %p161
        $region78: #{tpu_custom_call.1} parent=63 // pred_check_branch
          %926 = sbr.rel (%p924) target = $region80
        $region79: #{tpu_custom_call.1} parent=63 // pred_region
          %s927 = sand.u32 %s51, 1
          %s928 = scalar_lea.sflag [#allocation12], %s927
          %s929 = sand.u32 %s151, 1
          %s930 = smul.addr %s929, 8
          %s931 = scalar_lea.vmem [#allocation11], %s930
          %s933 = ssub.s32 128, 128
          %934 = vsyncadd %s928, %s933
          %s935 = smul.addr %s58, 128
          %s936 = scalar_lea.hbm %s3, %s935
          %s938 = sshll.u32 %s931, 4
          %s939 = int_to_ptr.vmem [resolvable:$true] %s938
          %941 = dma.hbm_to_vmem [thread:$0]  %s936, 128, %s939, %s928
        $region80: #{tpu_custom_call.1} parent=63 // pred_fallthru
          _
        // Predicated region
        $region81: #{tpu_custom_call.1} parent=63 // pred_check
          %p942 = pneg %p313
        $region82: #{tpu_custom_call.1} parent=63 // pred_check_branch
          %944 = sbr.rel (%p942) target = $region84
        $region83: #{tpu_custom_call.1} parent=63 // pred_region
          %p945 = scmp.lt.s32.totalorder %s59, 1
          %s946 = scalar_select %p945, %s59, 1
          %s947 = smul.addr %s946, 4
          %s948 = smul.addr %s947, 4
          %s949 = scalar_lea.vmem %s10, %s948
        $region84: #{tpu_custom_call.1} parent=63 // pred_fallthru
          _
        // Predicated region
        $region85: #{tpu_custom_call.1} parent=63 // pred_check
          %p950 = pneg %p339
        $region86: #{tpu_custom_call.1} parent=63 // pred_check_branch
          %952 = sbr.rel (%p950) target = $region88
        $region87: #{tpu_custom_call.1} parent=63 // pred_region
          %p953 = scmp.lt.s32.totalorder %s59, 1
          %s954 = scalar_select %p953, %s59, 1
          %s955 = scalar_lea.vmem %s11, %s954
        $region88: #{tpu_custom_call.1} parent=63 // pred_fallthru
          _
        // Predicated region
        $region89: #{tpu_custom_call.1} parent=63 // pred_check
          %p956 = pneg %p365
        $region90: #{tpu_custom_call.1} parent=63 // pred_check_branch
          %958 = sbr.rel (%p956) target = $region92
        $region91: #{tpu_custom_call.1} parent=63 // pred_region
          %p959 = scmp.lt.s32.totalorder %s59, 1
          %s960 = scalar_select %p959, %s59, 1
          %s961 = smul.addr %s960, 4
          %s962 = smul.addr %s961, 4
          %s963 = scalar_lea.vmem %s12, %s962
        $region92: #{tpu_custom_call.1} parent=63 // pred_fallthru
          _
        // Predicated region
        $region93: #{tpu_custom_call.1} parent=63 // pred_check
          %p964 = pneg %p391
        $region94: #{tpu_custom_call.1} parent=63 // pred_check_branch
          %966 = sbr.rel (%p964) target = $region96
        $region95: #{tpu_custom_call.1} parent=63 // pred_region
          %s967 = sand.u32 %s51, 1
          %s968 = scalar_lea.sflag [#allocation6], %s967
          %s969 = sand.u32 %s381, 1
          %s970 = scalar_lea.vmem [#allocation22], %s969
          %s972 = ssub.s32 16, 16
          %973 = vsyncadd %s968, %s972
          %s974 = smul.addr %s59, 16
          %s975 = scalar_lea.hbm %s13, %s974
          %s977 = sshll.u32 %s970, 4
          %s978 = int_to_ptr.vmem [resolvable:$true] %s977
          %980 = dma.hbm_to_vmem [thread:$0]  %s975, 16, %s978, %s968
        $region96: #{tpu_custom_call.1} parent=63 // pred_fallthru
          _
        // Predicated region
        $region97: #{tpu_custom_call.1} parent=63 // pred_check
          %p981 = pneg %p417
        $region98: #{tpu_custom_call.1} parent=63 // pred_check_branch
          %983 = sbr.rel (%p981) target = $region100
        $region99: #{tpu_custom_call.1} parent=63 // pred_region
          %s984 = sand.u32 %s51, 1
          %s985 = scalar_lea.sflag [#allocation9], %s984
          %s986 = sand.u32 %s407, 1
          %s987 = scalar_lea.vmem [#allocation23], %s986
          %s989 = ssub.s32 16, 16
          %990 = vsyncadd %s985, %s989
          %s991 = smul.addr %s59, 16
          %s992 = scalar_lea.hbm %s14, %s991
          %s994 = sshll.u32 %s987, 4
          %s995 = int_to_ptr.vmem [resolvable:$true] %s994
          %997 = dma.hbm_to_vmem [thread:$0]  %s992, 16, %s995, %s985
        $region100: #{tpu_custom_call.1} parent=63 // pred_fallthru
          _
        // Predicated region
        $region101: #{tpu_custom_call.1} parent=63 // pred_check
          %p998 = pneg %p443
        $region102: #{tpu_custom_call.1} parent=63 // pred_check_branch
          %1000 = sbr.rel (%p998) target = $region104
        $region103: #{tpu_custom_call.1} parent=63 // pred_region
          %s1001 = sand.u32 %s51, 1
          %s1002 = scalar_lea.sflag [#allocation12], %s1001
          %s1003 = sand.u32 %s433, 1
          %s1004 = scalar_lea.vmem [#allocation24], %s1003
          %s1006 = ssub.s32 16, 16
          %1007 = vsyncadd %s1002, %s1006
          %s1008 = smul.addr %s59, 16
          %s1009 = scalar_lea.hbm %s15, %s1008
          %s1011 = sshll.u32 %s1004, 4
          %s1012 = int_to_ptr.vmem [resolvable:$true] %s1011
          %1014 = dma.hbm_to_vmem [thread:$0]  %s1009, 16, %s1012, %s1002
        $region104: #{tpu_custom_call.1} parent=63 // pred_fallthru
          _
        // Predicated region
        $region105: #{tpu_custom_call.1} parent=63 // pred_check
          %p1015 = pneg %p469
        $region106: #{tpu_custom_call.1} parent=63 // pred_check_branch
          %1017 = sbr.rel (%p1015) target = $region108
        $region107: #{tpu_custom_call.1} parent=63 // pred_region
          %p1018 = scmp.lt.s32.totalorder %s59, 1
          %s1019 = scalar_select %p1018, %s59, 1
          %s1020 = smul.addr %s1019, 4
          %s1021 = smul.addr %s1020, 4
          %s1022 = scalar_lea.vmem %s16, %s1021
        $region108: #{tpu_custom_call.1} parent=63 // pred_fallthru
          _
        // Predicated region
        $region109: #{tpu_custom_call.1} parent=63 // pred_check
          %p1023 = pneg %p495
        $region110: #{tpu_custom_call.1} parent=63 // pred_check_branch
          %1025 = sbr.rel (%p1023) target = $region112
        $region111: #{tpu_custom_call.1} parent=63 // pred_region
          %s1026 = sand.u32 %s51, 1
          %s1027 = scalar_lea.sflag [#allocation6], %s1026
          %s1028 = sand.u32 %s485, 1
          %s1029 = scalar_lea.vmem [#allocation25], %s1028
          %s1031 = ssub.s32 16, 16
          %1032 = vsyncadd %s1027, %s1031
          %s1033 = smul.addr %s59, 16
          %s1034 = scalar_lea.hbm %s17, %s1033
          %s1036 = sshll.u32 %s1029, 4
          %s1037 = int_to_ptr.vmem [resolvable:$true] %s1036
          %1039 = dma.hbm_to_vmem [thread:$0]  %s1034, 16, %s1037, %s1027
        $region112: #{tpu_custom_call.1} parent=63 // pred_fallthru
          _
        // Predicated region
        $region113: #{tpu_custom_call.1} parent=63 // pred_check
          %p1040 = pneg %p521
        $region114: #{tpu_custom_call.1} parent=63 // pred_check_branch
          %1042 = sbr.rel (%p1040) target = $region116
        $region115: #{tpu_custom_call.1} parent=63 // pred_region
          %p1043 = scmp.lt.s32.totalorder %s59, 1
          %s1044 = scalar_select %p1043, %s59, 1
          %s1045 = smul.addr %s1044, 8
          %s1046 = smul.addr %s1045, 4
          %s1047 = scalar_lea.vmem %s18, %s1046
        $region116: #{tpu_custom_call.1} parent=63 // pred_fallthru
          _
        // Predicated region
        $region117: #{tpu_custom_call.1} parent=63 // pred_check
          %p1048 = pneg %p547
        $region118: #{tpu_custom_call.1} parent=63 // pred_check_branch
          %1050 = sbr.rel (%p1048) target = $region120
        $region119: #{tpu_custom_call.1} parent=63 // pred_region
          %p1051 = scmp.lt.s32.totalorder %s59, 1
          %s1052 = scalar_select %p1051, %s59, 1
          %s1053 = scalar_lea.vmem %s19, %s1052
        $region120: #{tpu_custom_call.1} parent=63 // pred_fallthru
          _
        // Predicated region
        $region121: #{tpu_custom_call.1} parent=63 // pred_check
          %p1054 = pneg %p573
        $region122: #{tpu_custom_call.1} parent=63 // pred_check_branch
          %1056 = sbr.rel (%p1054) target = $region124
        $region123: #{tpu_custom_call.1} parent=63 // pred_region
          %p1057 = scmp.lt.s32.totalorder %s59, 1
          %s1058 = scalar_select %p1057, %s59, 1
          %s1059 = scalar_lea.vmem %s20, %s1058
        $region124: #{tpu_custom_call.1} parent=63 // pred_fallthru
          _
        // Predicated region
        $region125: #{tpu_custom_call.1} parent=63 // pred_check
          %p1060 = pneg %p599
        $region126: #{tpu_custom_call.1} parent=63 // pred_check_branch
          %1062 = sbr.rel (%p1060) target = $region128
        $region127: #{tpu_custom_call.1} parent=63 // pred_region
          %p1063 = scmp.lt.s32.totalorder %s59, 1
          %s1064 = scalar_select %p1063, %s59, 1
          %s1065 = scalar_lea.vmem %s21, %s1064
        $region128: #{tpu_custom_call.1} parent=63 // pred_fallthru
          _
      $region64: #{tpu_custom_call.1} parent=5 // pred_fallthru
        _
      %p1066 = scmp.le.s32.totalorder 1, %s51
      %p1067 = scmp.lt.s32.totalorder %s51, 5
      %p1068 = pnand %p1066, %p1067
      %p1069 = pneg %p1068
      // Predicated region
      $region129: #{tpu_custom_call.1} parent=5 // pred_check
        _
      $region130: #{tpu_custom_call.1} parent=5 // pred_check_branch
        %1071 = sbr.rel (%p1068) target = $region132
      $region131: #{tpu_custom_call.1} parent=5 // pred_region
        %s1072 = ssub.s32 %s51, 1
        %s1073 = sand.u32 %s56, 1
        %s1074 = scalar_lea.sflag [#allocation6], %s1073
        %s1075 = sand.u32 %s76, 1
        %s1076 = smul.addr %s1075, 8
        %s1077 = scalar_lea.vmem [#allocation5], %s1076
        // Predicated region
        $region133: #{tpu_custom_call.1} parent=131 // pred_check
          %p1078 = pneg %p89
        $region134: #{tpu_custom_call.1} parent=131 // pred_check_branch
          %1080 = sbr.rel (%p1078) target = $region136
        $region135: #{tpu_custom_call.1} parent=131 // pred_region
          %1081 = dma.done %s1074, 128
        $region136: #{tpu_custom_call.1} parent=131 // pred_fallthru
          _
        %s1082 = sand.u32 %s56, 1
        %s1083 = scalar_lea.sflag [#allocation9], %s1082
        %s1084 = sand.u32 %s102, 1
        %s1085 = smul.addr %s1084, 8
        %s1086 = scalar_lea.vmem [#allocation8], %s1085
        // Predicated region
        $region137: #{tpu_custom_call.1} parent=131 // pred_check
          %p1087 = pneg %p115
        $region138: #{tpu_custom_call.1} parent=131 // pred_check_branch
          %1089 = sbr.rel (%p1087) target = $region140
        $region139: #{tpu_custom_call.1} parent=131 // pred_region
          %1090 = dma.done %s1083, 128
        $region140: #{tpu_custom_call.1} parent=131 // pred_fallthru
          _
        %s1091 = sand.u32 %s56, 1
        %s1092 = scalar_lea.sflag [#allocation9], %s1091
        %s1093 = sand.u32 %s128, 1
        %s1094 = smul.addr %s1093, 8
        %s1095 = scalar_lea.vmem [#allocation10], %s1094
        // Predicated region
        $region141: #{tpu_custom_call.1} parent=131 // pred_check
          %p1096 = pneg %p141
        $region142: #{tpu_custom_call.1} parent=131 // pred_check_branch
          %1098 = sbr.rel (%p1096) target = $region144
        $region143: #{tpu_custom_call.1} parent=131 // pred_region
          %1099 = dma.done %s1092, 128
        $region144: #{tpu_custom_call.1} parent=131 // pred_fallthru
          _
        %s1100 = sand.u32 %s56, 1
        %s1101 = scalar_lea.sflag [#allocation12], %s1100
        %s1102 = sand.u32 %s154, 1
        %s1103 = smul.addr %s1102, 8
        %s1104 = scalar_lea.vmem [#allocation11], %s1103
        // Predicated region
        $region145: #{tpu_custom_call.1} parent=131 // pred_check
          %p1105 = pneg %p167
        $region146: #{tpu_custom_call.1} parent=131 // pred_check_branch
          %1107 = sbr.rel (%p1105) target = $region148
        $region147: #{tpu_custom_call.1} parent=131 // pred_region
          %1108 = dma.done %s1101, 128
        $region148: #{tpu_custom_call.1} parent=131 // pred_fallthru
          _
        // Predicated region
        $region149: #{tpu_custom_call.1} parent=131 // pred_check
          %p1109 = pneg %p188
        $region150: #{tpu_custom_call.1} parent=131 // pred_check_branch
          %1111 = sbr.rel (%p1109) target = $region152
        $region151: #{tpu_custom_call.1} parent=131 // pred_region
          %1112 = dma.done [#allocation12], 16
        $region152: #{tpu_custom_call.1} parent=131 // pred_fallthru
          _
        // Predicated region
        $region153: #{tpu_custom_call.1} parent=131 // pred_check
          %p1113 = pneg %p209
        $region154: #{tpu_custom_call.1} parent=131 // pred_check_branch
          %1115 = sbr.rel (%p1113) target = $region156
        $region155: #{tpu_custom_call.1} parent=131 // pred_region
          %1116 = dma.done [#allocation15], 16
        $region156: #{tpu_custom_call.1} parent=131 // pred_fallthru
          _
        // Predicated region
        $region157: #{tpu_custom_call.1} parent=131 // pred_check
          %p1117 = pneg %p230
        $region158: #{tpu_custom_call.1} parent=131 // pred_check_branch
          %1119 = sbr.rel (%p1117) target = $region160
        $region159: #{tpu_custom_call.1} parent=131 // pred_region
          %1120 = dma.done [#allocation15], 16
        $region160: #{tpu_custom_call.1} parent=131 // pred_fallthru
          _
        // Predicated region
        $region161: #{tpu_custom_call.1} parent=131 // pred_check
          %p1121 = pneg %p251
        $region162: #{tpu_custom_call.1} parent=131 // pred_check_branch
          %1123 = sbr.rel (%p1121) target = $region164
        $region163: #{tpu_custom_call.1} parent=131 // pred_region
          %1124 = dma.done [#allocation18], 16
        $region164: #{tpu_custom_call.1} parent=131 // pred_fallthru
          _
        // Predicated region
        $region165: #{tpu_custom_call.1} parent=131 // pred_check
          %p1125 = pneg %p272
        $region166: #{tpu_custom_call.1} parent=131 // pred_check_branch
          %1127 = sbr.rel (%p1125) target = $region168
        $region167: #{tpu_custom_call.1} parent=131 // pred_region
          %1128 = dma.done [#allocation18], 16
        $region168: #{tpu_custom_call.1} parent=131 // pred_fallthru
          _
        // Predicated region
        $region169: #{tpu_custom_call.1} parent=131 // pred_check
          %p1129 = pneg %p293
        $region170: #{tpu_custom_call.1} parent=131 // pred_check_branch
          %1131 = sbr.rel (%p1129) target = $region172
        $region171: #{tpu_custom_call.1} parent=131 // pred_region
          %1132 = dma.done [#allocation21], 16
        $region172: #{tpu_custom_call.1} parent=131 // pred_fallthru
          _
        %s1133 = sand.u32 %s56, 1
        %s1134 = scalar_lea.sflag [#allocation6], %s1133
        %s1135 = sand.u32 %s384, 1
        %s1136 = scalar_lea.vmem [#allocation22], %s1135
        // Predicated region
        $region173: #{tpu_custom_call.1} parent=131 // pred_check
          %p1137 = pneg %p397
        $region174: #{tpu_custom_call.1} parent=131 // pred_check_branch
          %1139 = sbr.rel (%p1137) target = $region176
        $region175: #{tpu_custom_call.1} parent=131 // pred_region
          %1140 = dma.done %s1134, 16
        $region176: #{tpu_custom_call.1} parent=131 // pred_fallthru
          _
        %s1141 = sand.u32 %s56, 1
        %s1142 = scalar_lea.sflag [#allocation9], %s1141
        %s1143 = sand.u32 %s410, 1
        %s1144 = scalar_lea.vmem [#allocation23], %s1143
        // Predicated region
        $region177: #{tpu_custom_call.1} parent=131 // pred_check
          %p1145 = pneg %p423
        $region178: #{tpu_custom_call.1} parent=131 // pred_check_branch
          %1147 = sbr.rel (%p1145) target = $region180
        $region179: #{tpu_custom_call.1} parent=131 // pred_region
          %1148 = dma.done %s1142, 16
        $region180: #{tpu_custom_call.1} parent=131 // pred_fallthru
          _
        %s1149 = sand.u32 %s56, 1
        %s1150 = scalar_lea.sflag [#allocation12], %s1149
        %s1151 = sand.u32 %s436, 1
        %s1152 = scalar_lea.vmem [#allocation24], %s1151
        // Predicated region
        $region181: #{tpu_custom_call.1} parent=131 // pred_check
          %p1153 = pneg %p449
        $region182: #{tpu_custom_call.1} parent=131 // pred_check_branch
          %1155 = sbr.rel (%p1153) target = $region184
        $region183: #{tpu_custom_call.1} parent=131 // pred_region
          %1156 = dma.done %s1150, 16
        $region184: #{tpu_custom_call.1} parent=131 // pred_fallthru
          _
        %s1157 = sand.u32 %s56, 1
        %s1158 = scalar_lea.sflag [#allocation6], %s1157
        %s1159 = sand.u32 %s488, 1
        %s1160 = scalar_lea.vmem [#allocation25], %s1159
        // Predicated region
        $region185: #{tpu_custom_call.1} parent=131 // pred_check
          %p1161 = pneg %p501
        $region186: #{tpu_custom_call.1} parent=131 // pred_check_branch
          %1163 = sbr.rel (%p1161) target = $region188
        $region187: #{tpu_custom_call.1} parent=131 // pred_region
          %1164 = dma.done %s1158, 16
        $region188: #{tpu_custom_call.1} parent=131 // pred_fallthru
          _
        // Predicated region
        $region189: #{tpu_custom_call.1} parent=131 // pred_check
          %p1165 = pneg %p668
        $region190: #{tpu_custom_call.1} parent=131 // pred_check_branch
          %1167 = sbr.rel (%p1165) target = $region192
        $region191: #{tpu_custom_call.1} parent=131 // pred_region
          %1168 = dma.done [#allocation9], 256
        $region192: #{tpu_custom_call.1} parent=131 // pred_fallthru
          _
        %s1169 = sand.u32 %s56, 1
        %s1170 = scalar_lea.sflag [#allocation6], %s1169
        %s1171 = sand.u32 %s76, 1
        %s1172 = smul.addr %s1171, 8
        %s1173 = scalar_lea.vmem [#allocation5], %s1172
        %p1174 = pneg %p89
        %p1175 = pneg %p86
        %s1176 = sand.u32 %s56, 1
        %s1177 = scalar_lea.sflag [#allocation9], %s1176
        %s1178 = sand.u32 %s102, 1
        %s1179 = smul.addr %s1178, 8
        %s1180 = scalar_lea.vmem [#allocation8], %s1179
        %p1181 = pneg %p115
        %p1182 = pneg %p112
        %s1183 = sand.u32 %s56, 1
        %s1184 = scalar_lea.sflag [#allocation9], %s1183
        %s1185 = sand.u32 %s128, 1
        %s1186 = smul.addr %s1185, 8
        %s1187 = scalar_lea.vmem [#allocation10], %s1186
        %p1188 = pneg %p141
        %p1189 = pneg %p138
        %s1190 = sand.u32 %s56, 1
        %s1191 = scalar_lea.sflag [#allocation12], %s1190
        %s1192 = sand.u32 %s154, 1
        %s1193 = smul.addr %s1192, 8
        %s1194 = scalar_lea.vmem [#allocation11], %s1193
        %p1195 = pneg %p167
        %p1196 = pneg %p164
        %p1197 = pneg %p188
        %p1198 = pneg %p185
        %p1199 = pneg %p209
        %p1200 = pneg %p206
        %p1201 = pneg %p230
        %p1202 = pneg %p227
        %p1203 = pneg %p251
        %p1204 = pneg %p248
        %p1205 = pneg %p272
        %p1206 = pneg %p269
        %p1207 = pneg %p293
        %p1208 = pneg %p290
        %p1209 = scmp.lt.s32.totalorder %s61, 1
        %s1210 = scalar_select %p1209, %s61, 1
        %s1211 = smul.addr %s1210, 4
        %s1212 = smul.addr %s1211, 4
        %s1213 = scalar_lea.vmem %s10, %s1212
        %p1214 = pneg %p319
        %p1215 = pneg %p316
        %p1216 = scmp.lt.s32.totalorder %s61, 1
        %s1217 = scalar_select %p1216, %s61, 1
        %s1218 = scalar_lea.vmem %s11, %s1217
        %p1219 = pneg %p345
        %p1220 = pneg %p342
        %p1221 = scmp.lt.s32.totalorder %s61, 1
        %s1222 = scalar_select %p1221, %s61, 1
        %s1223 = smul.addr %s1222, 4
        %s1224 = smul.addr %s1223, 4
        %s1225 = scalar_lea.vmem %s12, %s1224
        %p1226 = pneg %p371
        %p1227 = pneg %p368
        %s1228 = sand.u32 %s56, 1
        %s1229 = scalar_lea.sflag [#allocation6], %s1228
        %s1230 = sand.u32 %s384, 1
        %s1231 = scalar_lea.vmem [#allocation22], %s1230
        %p1232 = pneg %p397
        %p1233 = pneg %p394
        %s1234 = sand.u32 %s56, 1
        %s1235 = scalar_lea.sflag [#allocation9], %s1234
        %s1236 = sand.u32 %s410, 1
        %s1237 = scalar_lea.vmem [#allocation23], %s1236
        %p1238 = pneg %p423
        %p1239 = pneg %p420
        %s1240 = sand.u32 %s56, 1
        %s1241 = scalar_lea.sflag [#allocation12], %s1240
        %s1242 = sand.u32 %s436, 1
        %s1243 = scalar_lea.vmem [#allocation24], %s1242
        %p1244 = pneg %p449
        %p1245 = pneg %p446
        %p1246 = scmp.lt.s32.totalorder %s61, 1
        %s1247 = scalar_select %p1246, %s61, 1
        %s1248 = smul.addr %s1247, 4
        %s1249 = smul.addr %s1248, 4
        %s1250 = scalar_lea.vmem %s16, %s1249
        %p1251 = pneg %p475
        %p1252 = pneg %p472
        %s1253 = sand.u32 %s56, 1
        %s1254 = scalar_lea.sflag [#allocation6], %s1253
        %s1255 = sand.u32 %s488, 1
        %s1256 = scalar_lea.vmem [#allocation25], %s1255
        %p1257 = pneg %p501
        %p1258 = pneg %p498
        %p1259 = scmp.lt.s32.totalorder %s61, 1
        %s1260 = scalar_select %p1259, %s61, 1
        %s1261 = smul.addr %s1260, 8
        %s1262 = smul.addr %s1261, 4
        %s1263 = scalar_lea.vmem %s18, %s1262
        %p1264 = pneg %p527
        %p1265 = pneg %p524
        %p1266 = scmp.lt.s32.totalorder %s61, 1
        %s1267 = scalar_select %p1266, %s61, 1
        %s1268 = scalar_lea.vmem %s19, %s1267
        %p1269 = pneg %p553
        %p1270 = pneg %p550
        %p1271 = scmp.lt.s32.totalorder %s61, 1
        %s1272 = scalar_select %p1271, %s61, 1
        %s1273 = scalar_lea.vmem %s20, %s1272
        %p1274 = pneg %p579
        %p1275 = pneg %p576
        %p1276 = scmp.lt.s32.totalorder %s61, 1
        %s1277 = scalar_select %p1276, %s61, 1
        %s1278 = scalar_lea.vmem %s21, %s1277
        %p1279 = pneg %p605
        %p1280 = pneg %p602
        %p1281 = pneg %p626
        %p1282 = pneg %p623
        %p1283 = pneg %p647
        %p1284 = pneg %p644
        %p1285 = pneg %p668
        %p1286 = pneg %p665
        %p1287 = pneg %p689
        %p1288 = pneg %p686
        %p1289 = pneg %p710
        %p1290 = pneg %p707
        %p1291 = pneg %p731
        %p1292 = pneg %p728
        %p1293 = pneg %p757
        %p1294 = pneg %p754
        %s1295 = sand.u32 %s744, 1
        %s1296 = scalar_lea.sflag [#allocation7], %s1295
        %s1297 = sand.u32 %s744, 1
        %s1298 = scalar_lea.vmem [#allocation27], %s1297
        %p1299 = scmp.lt.s32.totalorder %s61, 1
        %s1300 = scalar_select %p1299, %s61, 1
        %s1301 = smul.addr %s1300, 4
        %s1302 = smul.addr %s1301, 4
        %s1303 = scalar_lea.vmem %s10, %s1302
        %p1304 = scmp.lt.s32.totalorder %s61, 1
        %s1305 = scalar_select %p1304, %s61, 1
        %s1306 = scalar_lea.vmem %s11, %s1305
        %p1307 = scmp.lt.s32.totalorder %s61, 1
        %s1308 = scalar_select %p1307, %s61, 1
        %s1309 = smul.addr %s1308, 4
        %s1310 = smul.addr %s1309, 4
        %s1311 = scalar_lea.vmem %s12, %s1310
        %p1312 = scmp.lt.s32.totalorder %s61, 1
        %s1313 = scalar_select %p1312, %s61, 1
        %s1314 = smul.addr %s1313, 4
        %s1315 = smul.addr %s1314, 4
        %s1316 = scalar_lea.vmem %s16, %s1315
        %p1317 = scmp.lt.s32.totalorder %s61, 1
        %s1318 = scalar_select %p1317, %s61, 1
        %s1319 = smul.addr %s1318, 8
        %s1320 = smul.addr %s1319, 4
        %s1321 = scalar_lea.vmem %s18, %s1320
        %p1322 = scmp.lt.s32.totalorder %s61, 1
        %s1323 = scalar_select %p1322, %s61, 1
        %s1324 = scalar_lea.vmem %s19, %s1323
        %p1325 = scmp.lt.s32.totalorder %s61, 1
        %s1326 = scalar_select %p1325, %s61, 1
        %s1327 = scalar_lea.vmem %s20, %s1326
        %p1328 = scmp.lt.s32.totalorder %s61, 1
        %s1329 = scalar_select %p1328, %s61, 1
        %s1330 = scalar_lea.vmem %s21, %s1329
        %p1332 = scmp.eq.s32.totalorder %s61, 0
        // Predicated region
        $region193: #{tpu_custom_call.1} parent=131 // pred_check
          %p1333 = pneg %p1332
        $region194: #{tpu_custom_call.1} parent=131 // pred_check_branch
          %1335 = sbr.rel (%p1333) target = $region196
        $region195: #{tpu_custom_call.1} parent=131 // pred_region
          %v1336 = vld [vmem:[%s1077] sm:$0xff]
          %v1337 = vld [vmem:[#allocation13] sm:$0x1]
          %v1338 = vld [vmem:[#allocation14] sm:$0x1]
          %vm1339 = vcmask 261120
          %v1340 = vsel %vm1339, %v1336, 0.0
          %1341 = vadd.xlane.f32.xlu0 %v1340
          %v1342 = vpop.xlane.xlu0 %1341
          %v1343 = vrcp.pop 32.0
          %v1344 = vmul.f32 %v1342, %v1343
          %v1345 = vsub.f32 %v1336, %v1344
          %v1346 = vmul.f32 %v1345, %v1345
          %v1347 = vsel %vm1339, %v1346, 0.0
          %1348 = vadd.xlane.f32.xlu0 %v1347
          %v1349 = vpop.xlane.xlu0 %1348
          %v1350 = vmul.f32 %v1349, %v1343
          %v1351 = vadd.f32 %v1350, 1e-05
          %v1352 = vrsqrt.pop %v1351
          %v1353 = vmul.f32 %v1345, %v1352
          %v1355 = vlaneseq
          %v1356 = vshrl.u32 %v1355, 7
          %v1357 = vsub.s32 0, %v1356
          %v1358 = vrot.slane %v1337, %v1357
          %v1360 = vmul.f32 %v1353, %v1358
          %v1362 = vlaneseq
          %v1363 = vshrl.u32 %v1362, 7
          %v1364 = vsub.s32 0, %v1363
          %v1365 = vrot.slane %v1338, %v1364
          %v1367 = vadd.f32 %v1360, %v1365
          %v1368 = vld [vmem:[%s1086] sm:$0xff]
          %v1369 = vld [vmem:[#allocation16] sm:$0x1]
          %v1370 = vld [vmem:[#allocation17] sm:$0x1]
          %v1371 = vsel %vm1339, %v1368, 0.0
          %1372 = vadd.xlane.f32.xlu0 %v1371
          %v1373 = vpop.xlane.xlu0 %1372
          %v1374 = vmul.f32 %v1373, %v1343
          %v1375 = vsub.f32 %v1368, %v1374
          %v1376 = vmul.f32 %v1375, %v1375
          %v1377 = vsel %vm1339, %v1376, 0.0
          %1378 = vadd.xlane.f32.xlu0 %v1377
          %v1379 = vpop.xlane.xlu0 %1378
          %v1380 = vmul.f32 %v1379, %v1343
          %v1381 = vadd.f32 %v1380, 1e-05
          %v1382 = vrsqrt.pop %v1381
          %v1383 = vmul.f32 %v1375, %v1382
          %v1385 = vlaneseq
          %v1386 = vshrl.u32 %v1385, 7
          %v1387 = vsub.s32 0, %v1386
          %v1388 = vrot.slane %v1369, %v1387
          %v1390 = vmul.f32 %v1383, %v1388
          %v1392 = vlaneseq
          %v1393 = vshrl.u32 %v1392, 7
          %v1394 = vsub.s32 0, %v1393
          %v1395 = vrot.slane %v1370, %v1394
          %v1397 = vadd.f32 %v1390, %v1395
          %v1398 = vadd.f32 %v1367, %v1397
          %v1399 = vld [vmem:[%s1095] sm:$0xff]
          %v1400 = vld [vmem:[#allocation19] sm:$0x1]
          %v1401 = vld [vmem:[#allocation20] sm:$0x1]
          %v1402 = vsel %vm1339, %v1399, 0.0
          %1403 = vadd.xlane.f32.xlu0 %v1402
          %v1404 = vpop.xlane.xlu0 %1403
          %v1405 = vmul.f32 %v1404, %v1343
          %v1406 = vsub.f32 %v1399, %v1405
          %v1407 = vmul.f32 %v1406, %v1406
          %v1408 = vsel %vm1339, %v1407, 0.0
          %1409 = vadd.xlane.f32.xlu0 %v1408
          %v1410 = vpop.xlane.xlu0 %1409
          %v1411 = vmul.f32 %v1410, %v1343
          %v1412 = vadd.f32 %v1411, 1e-05
          %v1413 = vrsqrt.pop %v1412
          %v1414 = vmul.f32 %v1406, %v1413
          %v1416 = vlaneseq
          %v1417 = vshrl.u32 %v1416, 7
          %v1418 = vsub.s32 0, %v1417
          %v1419 = vrot.slane %v1400, %v1418
          %v1421 = vmul.f32 %v1414, %v1419
          %v1423 = vlaneseq
          %v1424 = vshrl.u32 %v1423, 7
          %v1425 = vsub.s32 0, %v1424
          %v1426 = vrot.slane %v1401, %v1425
          %v1428 = vadd.f32 %v1421, %v1426
          %v1429 = vadd.f32 %v1398, %v1428
          %1430 = vst.msk [vmem:[#allocation2] sm:$0xff] %vm1339, %v1429
        $region196: #{tpu_custom_call.1} parent=131 // pred_fallthru
          _
        %v1431 = vld [vmem:[#allocation2] sm:$0xff]
        %v1432 = vpack.c.bf16 %v1431, %v1431
        %v1433 = vld [vmem:[%s1303] sm:$0xf]
        %v1434 = vld [vmem:[%s1303 + $0x4] sm:$0xf]
        %v1435 = vld [vmem:[%s1303 + $0x8] sm:$0xf]
        %v1436 = vld [vmem:[%s1303 + $0xc] sm:$0xf]
        %v1437 = vld [vmem:[%s1306] sm:$0x1]
        %v1439 = vlaneseq
        %v1440 = vshrl.u32 %v1439, 7
        %v1441 = vsub.s32 0, %v1440
        %v1442 = vrot.slane %v1437, %v1441
        %v1448 = vunpack.c.l.b16 %v1433
        %v1449 = vunpack.c.l.b16 %v1434
        %v1450 = vunpack.c.l.b16 %v1435
        %v1451 = vunpack.c.l.b16 %v1436
        %v1452 = vpack.c.b16 %v1449, %v1448
        %v1453 = vpack.c.b16 %v1451, %v1450
        %vm1456 = vcmask 261120
        %v1458 = vsel %vm1456, %v1432, 0
        %1460 = vmatprep.subr.bf16.mxu0 0
        %1461 = vmatpush1.bf16.msra.mxu0 0
        %1462 = vmatprep.subr.bf16.mxu0 0
        %1463 = vmatpush1.bf16.msra.mxu0 0
        %1464 = vmatprep.subr.bf16.mxu0 0
        %1465 = vmatpush1.bf16.msra.mxu0 0
        %1466 = vmatprep.subr.bf16.mxu0 0
        %1467 = vmatpush1.bf16.msra.mxu0 0
        %1468 = vmatprep.subr.bf16.mxu0 0
        %1469 = vmatpush1.bf16.msra.mxu0 0
        %1470 = vmatprep.subr.bf16.mxu0 0
        %1471 = vmatpush1.bf16.msra.mxu0 0
        %1472 = vmatprep.subr.bf16.mxu0 0
        %1473 = vmatpush1.bf16.msra.mxu0 %v1453
        %1474 = vmatprep.subr.bf16.mxu0 0
        %1475 = vmatpush1.bf16.msra.mxu0 %v1452
        %1476 = vmatprep.subr.bf16.mxu0 0
        %1477 = vmatpush2.bf16.msra.mxu0 0
        %1478 = vmatprep.subr.bf16.mxu0 0
        %1479 = vmatpush2.bf16.msra.mxu0 0
        %1480 = vmatprep.subr.bf16.mxu0 0
        %1481 = vmatpush2.bf16.msra.mxu0 0
        %1482 = vmatprep.subr.bf16.mxu0 0
        %1483 = vmatpush2.bf16.msra.mxu0 0
        %1484 = vmatprep.subr.bf16.mxu0 0
        %1485 = vmatpush2.bf16.msra.mxu0 0
        %1486 = vmatprep.subr.bf16.mxu0 0
        %1487 = vmatpush2.bf16.msra.mxu0 0
        %1488 = vmatprep.subr.bf16.mxu0 0
        %1489 = vmatpush2.bf16.msra.mxu0 0
        %1490 = vmatprep.subr.bf16.mxu0 0
        %1491 = vmatpush2.bf16.msra.mxu0 0
        %1492 = vmatprep.mubr.bf16.mxu0 0
        %1493 = vmatmul.mubr.bf16.gmra.mxu0 %v1458
        %v1494 = vpop.f32.mrf.mxu0
        %v1495 = vadd.f32 %v1442, %v1494
        %v1496 = vpop.f32.mrf.mxu0
        %v1497 = vpop.f32.mrf.mxu0
        %v1498 = vpop.f32.mrf.mxu0
        %1499 = vdwg.mxu0
        %v1500 = vld [vmem:[%s1104] sm:$0xff]
        %v1501 = vmul.f32 %v1495, 0.35355338
        %v1502 = vpack.c.bf16 %v1501, %v1501
        %v1503 = vpack.c.bf16 %v1495, %v1495
        %1505 = vrot.lane.b32.xlu0 %v1503, 96
        %v1506 = vpop.permute.xlu0 %1505
        %vm1507 = vcmask 64512
        %v1509 = vsel %vm1507, %v1502, 0
        %v1512 = vsel %vm1507, %v1506, 0
        %1514 = vmatprep.subr.bf16.mxu0 0
        %1515 = vmatpush1.bf16.xpose.msra.mxu0 0
        %1516 = vmatprep.subr.bf16.mxu0 0
        %1517 = vmatpush1.bf16.xpose.msra.mxu0 0
        %1518 = vmatprep.subr.bf16.mxu0 0
        %1519 = vmatpush1.bf16.xpose.msra.mxu0 0
        %1520 = vmatprep.subr.bf16.mxu0 0
        %1521 = vmatpush1.bf16.xpose.msra.mxu0 0
        %1522 = vmatprep.subr.bf16.mxu0 0
        %1523 = vmatpush1.bf16.xpose.msra.mxu0 0
        %1524 = vmatprep.subr.bf16.mxu0 0
        %1525 = vmatpush1.bf16.xpose.msra.mxu0 0
        %1526 = vmatprep.subr.bf16.mxu0 0
        %1527 = vmatpush1.bf16.xpose.msra.mxu0 0
        %1528 = vmatprep.subr.bf16.mxu0 0
        %1529 = vmatpush1.bf16.xpose.msra.mxu0 %v1512
        %1530 = vmatprep.subr.bf16.mxu0 0
        %1531 = vmatpush2.bf16.xpose.msra.mxu0 0
        %1532 = vmatprep.subr.bf16.mxu0 0
        %1533 = vmatpush2.bf16.xpose.msra.mxu0 0
        %1534 = vmatprep.subr.bf16.mxu0 0
        %1535 = vmatpush2.bf16.xpose.msra.mxu0 0
        %1536 = vmatprep.subr.bf16.mxu0 0
        %1537 = vmatpush2.bf16.xpose.msra.mxu0 0
        %1538 = vmatprep.subr.bf16.mxu0 0
        %1539 = vmatpush2.bf16.xpose.msra.mxu0 0
        %1540 = vmatprep.subr.bf16.mxu0 0
        %1541 = vmatpush2.bf16.xpose.msra.mxu0 0
        %1542 = vmatprep.subr.bf16.mxu0 0
        %1543 = vmatpush2.bf16.xpose.msra.mxu0 0
        %1544 = vmatprep.subr.bf16.mxu0 0
        %1545 = vmatpush2.bf16.xpose.msra.mxu0 0
        %1546 = vmatprep.mubr.bf16.mxu0 0
        %1547 = vmatmul.mubr.bf16.gmra.mxu0 %v1509
        %v1548 = vpop.f32.mrf.mxu0
        %v1549 = vadd.f32 %v1500, %v1548
        %v1550 = vpop.f32.mrf.mxu0
        %v1551 = vpop.f32.mrf.mxu0
        %v1552 = vpop.f32.mrf.mxu0
        %1553 = vdwg.mxu0
        %v1554 = vsel %vm1507, %v1549, -inf
        %1555 = vmax.xlane.f32.xlu0 %v1554
        %v1556 = vpop.xlane.xlu0 %1555
        %v1557 = vsub.f32 %v1549, %v1556
        %v1558 = vmul.f32 %v1557, 1.442695
        %v1559 = vpow.pop %v1558
        %v1560 = vsel %vm1507, %v1559, 0.0
        %1561 = vadd.xlane.f32.xlu0 %v1560
        %v1562 = vpop.xlane.xlu0 %1561
        %v1563 = vrcp.pop %v1562
        %v1564 = vmul.f32 %v1559, %v1563
        %v1565 = vpack.c.bf16 %v1564, %v1564
        %1566 = vrot.lane.b32.xlu0 %v1503, 64
        %v1567 = vpop.permute.xlu0 %1566
        %v1569 = vsel %vm1507, %v1565, 0
        %vm1571 = vcmask 1043456
        %v1573 = vsel %vm1571, %v1567, 0
        %1575 = vmatprep.subr.bf16.mxu0 0
        %1576 = vmatpush1.bf16.msra.mxu0 0
        %1577 = vmatprep.subr.bf16.mxu0 0
        %1578 = vmatpush1.bf16.msra.mxu0 0
        %1579 = vmatprep.subr.bf16.mxu0 0
        %1580 = vmatpush1.bf16.msra.mxu0 0
        %1581 = vmatprep.subr.bf16.mxu0 0
        %1582 = vmatpush1.bf16.msra.mxu0 0
        %1583 = vmatprep.subr.bf16.mxu0 0
        %1584 = vmatpush1.bf16.msra.mxu0 0
        %1585 = vmatprep.subr.bf16.mxu0 0
        %1586 = vmatpush1.bf16.msra.mxu0 0
        %1587 = vmatprep.subr.bf16.mxu0 0
        %1588 = vmatpush1.bf16.msra.mxu0 0
        %1589 = vmatprep.subr.bf16.mxu0 0
        %1590 = vmatpush1.bf16.msra.mxu0 %v1573
        %1591 = vmatprep.subr.bf16.mxu0 0
        %1592 = vmatpush2.bf16.msra.mxu0 0
        %1593 = vmatprep.subr.bf16.mxu0 0
        %1594 = vmatpush2.bf16.msra.mxu0 0
        %1595 = vmatprep.subr.bf16.mxu0 0
        %1596 = vmatpush2.bf16.msra.mxu0 0
        %1597 = vmatprep.subr.bf16.mxu0 0
        %1598 = vmatpush2.bf16.msra.mxu0 0
        %1599 = vmatprep.subr.bf16.mxu0 0
        %1600 = vmatpush2.bf16.msra.mxu0 0
        %1601 = vmatprep.subr.bf16.mxu0 0
        %1602 = vmatpush2.bf16.msra.mxu0 0
        %1603 = vmatprep.subr.bf16.mxu0 0
        %1604 = vmatpush2.bf16.msra.mxu0 0
        %1605 = vmatprep.subr.bf16.mxu0 0
        %1606 = vmatpush2.bf16.msra.mxu0 0
        %1607 = vmatprep.mubr.bf16.mxu0 0
        %1608 = vmatmul.mubr.bf16.gmra.mxu0 %v1569
        %v1609 = vpop.f32.mrf.mxu0
        %v1610 = vadd.f32 0.0, %v1609
        %v1611 = vpop.f32.mrf.mxu0
        %v1612 = vpop.f32.mrf.mxu0
        %v1613 = vpop.f32.mrf.mxu0
        %1614 = vdwg.mxu0
        %1615 = vst.msk [vmem:[#allocation3] sm:$0xff] %vm1507, %v1610
        %1617 = vrot.lane.b32.xlu0 %v1502, 120
        %v1618 = vpop.permute.xlu0 %1617
        %1619 = vrot.lane.b32.xlu0 %v1503, 88
        %v1620 = vpop.permute.xlu0 %1619
        %v1622 = vsel %vm1507, %v1618, 0
        %v1625 = vsel %vm1507, %v1620, 0
        %1627 = vmatprep.subr.bf16.mxu0 0
        %1628 = vmatpush1.bf16.xpose.msra.mxu0 0
        %1629 = vmatprep.subr.bf16.mxu0 0
        %1630 = vmatpush1.bf16.xpose.msra.mxu0 0
        %1631 = vmatprep.subr.bf16.mxu0 0
        %1632 = vmatpush1.bf16.xpose.msra.mxu0 0
        %1633 = vmatprep.subr.bf16.mxu0 0
        %1634 = vmatpush1.bf16.xpose.msra.mxu0 0
        %1635 = vmatprep.subr.bf16.mxu0 0
        %1636 = vmatpush1.bf16.xpose.msra.mxu0 0
        %1637 = vmatprep.subr.bf16.mxu0 0
        %1638 = vmatpush1.bf16.xpose.msra.mxu0 0
        %1639 = vmatprep.subr.bf16.mxu0 0
        %1640 = vmatpush1.bf16.xpose.msra.mxu0 0
        %1641 = vmatprep.subr.bf16.mxu0 0
        %1642 = vmatpush1.bf16.xpose.msra.mxu0 %v1625
        %1643 = vmatprep.subr.bf16.mxu0 0
        %1644 = vmatpush2.bf16.xpose.msra.mxu0 0
        %1645 = vmatprep.subr.bf16.mxu0 0
        %1646 = vmatpush2.bf16.xpose.msra.mxu0 0
        %1647 = vmatprep.subr.bf16.mxu0 0
        %1648 = vmatpush2.bf16.xpose.msra.mxu0 0
        %1649 = vmatprep.subr.bf16.mxu0 0
        %1650 = vmatpush2.bf16.xpose.msra.mxu0 0
        %1651 = vmatprep.subr.bf16.mxu0 0
        %1652 = vmatpush2.bf16.xpose.msra.mxu0 0
        %1653 = vmatprep.subr.bf16.mxu0 0
        %1654 = vmatpush2.bf16.xpose.msra.mxu0 0
        %1655 = vmatprep.subr.bf16.mxu0 0
        %1656 = vmatpush2.bf16.xpose.msra.mxu0 0
        %1657 = vmatprep.subr.bf16.mxu0 0
        %1658 = vmatpush2.bf16.xpose.msra.mxu0 0
        %1659 = vmatprep.mubr.bf16.mxu0 0
        %1660 = vmatmul.mubr.bf16.gmra.mxu0 %v1622
        %v1661 = vpop.f32.mrf.mxu0
        %v1662 = vadd.f32 %v1500, %v1661
        %v1663 = vpop.f32.mrf.mxu0
        %v1664 = vpop.f32.mrf.mxu0
        %v1665 = vpop.f32.mrf.mxu0
        %1666 = vdwg.mxu0
        %v1667 = vsel %vm1507, %v1662, -inf
        %1668 = vmax.xlane.f32.xlu0 %v1667
        %v1669 = vpop.xlane.xlu0 %1668
        %v1670 = vsub.f32 %v1662, %v1669
        %v1671 = vmul.f32 %v1670, 1.442695
        %v1672 = vpow.pop %v1671
        %v1673 = vsel %vm1507, %v1672, 0.0
        %1674 = vadd.xlane.f32.xlu0 %v1673
        %v1675 = vpop.xlane.xlu0 %1674
        %v1676 = vrcp.pop %v1675
        %v1677 = vmul.f32 %v1672, %v1676
        %v1678 = vpack.c.bf16 %v1677, %v1677
        %1679 = vrot.lane.b32.xlu0 %v1503, 56
        %v1680 = vpop.permute.xlu0 %1679
        %v1682 = vsel %vm1507, %v1678, 0
        %v1685 = vsel %vm1571, %v1680, 0
        %1687 = vmatprep.subr.bf16.mxu0 0
        %1688 = vmatpush1.bf16.msra.mxu0 0
        %1689 = vmatprep.subr.bf16.mxu0 0
        %1690 = vmatpush1.bf16.msra.mxu0 0
        %1691 = vmatprep.subr.bf16.mxu0 0
        %1692 = vmatpush1.bf16.msra.mxu0 0
        %1693 = vmatprep.subr.bf16.mxu0 0
        %1694 = vmatpush1.bf16.msra.mxu0 0
        %1695 = vmatprep.subr.bf16.mxu0 0
        %1696 = vmatpush1.bf16.msra.mxu0 0
        %1697 = vmatprep.subr.bf16.mxu0 0
        %1698 = vmatpush1.bf16.msra.mxu0 0
        %1699 = vmatprep.subr.bf16.mxu0 0
        %1700 = vmatpush1.bf16.msra.mxu0 0
        %1701 = vmatprep.subr.bf16.mxu0 0
        %1702 = vmatpush1.bf16.msra.mxu0 %v1685
        %1703 = vmatprep.subr.bf16.mxu0 0
        %1704 = vmatpush2.bf16.msra.mxu0 0
        %1705 = vmatprep.subr.bf16.mxu0 0
        %1706 = vmatpush2.bf16.msra.mxu0 0
        %1707 = vmatprep.subr.bf16.mxu0 0
        %1708 = vmatpush2.bf16.msra.mxu0 0
        %1709 = vmatprep.subr.bf16.mxu0 0
        %1710 = vmatpush2.bf16.msra.mxu0 0
        %1711 = vmatprep.subr.bf16.mxu0 0
        %1712 = vmatpush2.bf16.msra.mxu0 0
        %1713 = vmatprep.subr.bf16.mxu0 0
        %1714 = vmatpush2.bf16.msra.mxu0 0
        %1715 = vmatprep.subr.bf16.mxu0 0
        %1716 = vmatpush2.bf16.msra.mxu0 0
        %1717 = vmatprep.subr.bf16.mxu0 0
        %1718 = vmatpush2.bf16.msra.mxu0 0
        %1719 = vmatprep.mubr.bf16.mxu0 0
        %1720 = vmatmul.mubr.bf16.gmra.mxu0 %v1682
        %v1721 = vpop.f32.mrf.mxu0
        %v1722 = vadd.f32 0.0, %v1721
        %v1723 = vpop.f32.mrf.mxu0
        %v1724 = vpop.f32.mrf.mxu0
        %v1725 = vpop.f32.mrf.mxu0
        %1726 = vdwg.mxu0
        %1728 = vrot.lane.b32.xlu0 %v1722, 8
        %v1729 = vpop.permute.xlu0 %1728
        %vm1731 = vcmask 130112
        %1732 = vst.msk [vmem:[#allocation3] sm:$0xff] %vm1731, %v1729
        %1733 = vrot.lane.b32.xlu0 %v1502, 112
        %v1734 = vpop.permute.xlu0 %1733
        %1735 = vrot.lane.b32.xlu0 %v1503, 80
        %v1736 = vpop.permute.xlu0 %1735
        %v1738 = vsel %vm1507, %v1734, 0
        %v1741 = vsel %vm1507, %v1736, 0
        %1743 = vmatprep.subr.bf16.mxu0 0
        %1744 = vmatpush1.bf16.xpose.msra.mxu0 0
        %1745 = vmatprep.subr.bf16.mxu0 0
        %1746 = vmatpush1.bf16.xpose.msra.mxu0 0
        %1747 = vmatprep.subr.bf16.mxu0 0
        %1748 = vmatpush1.bf16.xpose.msra.mxu0 0
        %1749 = vmatprep.subr.bf16.mxu0 0
        %1750 = vmatpush1.bf16.xpose.msra.mxu0 0
        %1751 = vmatprep.subr.bf16.mxu0 0
        %1752 = vmatpush1.bf16.xpose.msra.mxu0 0
        %1753 = vmatprep.subr.bf16.mxu0 0
        %1754 = vmatpush1.bf16.xpose.msra.mxu0 0
        %1755 = vmatprep.subr.bf16.mxu0 0
        %1756 = vmatpush1.bf16.xpose.msra.mxu0 0
        %1757 = vmatprep.subr.bf16.mxu0 0
        %1758 = vmatpush1.bf16.xpose.msra.mxu0 %v1741
        %1759 = vmatprep.subr.bf16.mxu0 0
        %1760 = vmatpush2.bf16.xpose.msra.mxu0 0
        %1761 = vmatprep.subr.bf16.mxu0 0
        %1762 = vmatpush2.bf16.xpose.msra.mxu0 0
        %1763 = vmatprep.subr.bf16.mxu0 0
        %1764 = vmatpush2.bf16.xpose.msra.mxu0 0
        %1765 = vmatprep.subr.bf16.mxu0 0
        %1766 = vmatpush2.bf16.xpose.msra.mxu0 0
        %1767 = vmatprep.subr.bf16.mxu0 0
        %1768 = vmatpush2.bf16.xpose.msra.mxu0 0
        %1769 = vmatprep.subr.bf16.mxu0 0
        %1770 = vmatpush2.bf16.xpose.msra.mxu0 0
        %1771 = vmatprep.subr.bf16.mxu0 0
        %1772 = vmatpush2.bf16.xpose.msra.mxu0 0
        %1773 = vmatprep.subr.bf16.mxu0 0
        %1774 = vmatpush2.bf16.xpose.msra.mxu0 0
        %1775 = vmatprep.mubr.bf16.mxu0 0
        %1776 = vmatmul.mubr.bf16.gmra.mxu0 %v1738
        %v1777 = vpop.f32.mrf.mxu0
        %v1778 = vadd.f32 %v1500, %v1777
        %v1779 = vpop.f32.mrf.mxu0
        %v1780 = vpop.f32.mrf.mxu0
        %v1781 = vpop.f32.mrf.mxu0
        %1782 = vdwg.mxu0
        %v1783 = vsel %vm1507, %v1778, -inf
        %1784 = vmax.xlane.f32.xlu0 %v1783
        %v1785 = vpop.xlane.xlu0 %1784
        %v1786 = vsub.f32 %v1778, %v1785
        %v1787 = vmul.f32 %v1786, 1.442695
        %v1788 = vpow.pop %v1787
        %v1789 = vsel %vm1507, %v1788, 0.0
        %1790 = vadd.xlane.f32.xlu0 %v1789
        %v1791 = vpop.xlane.xlu0 %1790
        %v1792 = vrcp.pop %v1791
        %v1793 = vmul.f32 %v1788, %v1792
        %v1794 = vpack.c.bf16 %v1793, %v1793
        %1795 = vrot.lane.b32.xlu0 %v1503, 48
        %v1796 = vpop.permute.xlu0 %1795
        %v1798 = vsel %vm1507, %v1794, 0
        %v1801 = vsel %vm1571, %v1796, 0
        %1803 = vmatprep.subr.bf16.mxu0 0
        %1804 = vmatpush1.bf16.msra.mxu0 0
        %1805 = vmatprep.subr.bf16.mxu0 0
        %1806 = vmatpush1.bf16.msra.mxu0 0
        %1807 = vmatprep.subr.bf16.mxu0 0
        %1808 = vmatpush1.bf16.msra.mxu0 0
        %1809 = vmatprep.subr.bf16.mxu0 0
        %1810 = vmatpush1.bf16.msra.mxu0 0
        %1811 = vmatprep.subr.bf16.mxu0 0
        %1812 = vmatpush1.bf16.msra.mxu0 0
        %1813 = vmatprep.subr.bf16.mxu0 0
        %1814 = vmatpush1.bf16.msra.mxu0 0
        %1815 = vmatprep.subr.bf16.mxu0 0
        %1816 = vmatpush1.bf16.msra.mxu0 0
        %1817 = vmatprep.subr.bf16.mxu0 0
        %1818 = vmatpush1.bf16.msra.mxu0 %v1801
        %1819 = vmatprep.subr.bf16.mxu0 0
        %1820 = vmatpush2.bf16.msra.mxu0 0
        %1821 = vmatprep.subr.bf16.mxu0 0
        %1822 = vmatpush2.bf16.msra.mxu0 0
        %1823 = vmatprep.subr.bf16.mxu0 0
        %1824 = vmatpush2.bf16.msra.mxu0 0
        %1825 = vmatprep.subr.bf16.mxu0 0
        %1826 = vmatpush2.bf16.msra.mxu0 0
        %1827 = vmatprep.subr.bf16.mxu0 0
        %1828 = vmatpush2.bf16.msra.mxu0 0
        %1829 = vmatprep.subr.bf16.mxu0 0
        %1830 = vmatpush2.bf16.msra.mxu0 0
        %1831 = vmatprep.subr.bf16.mxu0 0
        %1832 = vmatpush2.bf16.msra.mxu0 0
        %1833 = vmatprep.subr.bf16.mxu0 0
        %1834 = vmatpush2.bf16.msra.mxu0 0
        %1835 = vmatprep.mubr.bf16.mxu0 0
        %1836 = vmatmul.mubr.bf16.gmra.mxu0 %v1798
        %v1837 = vpop.f32.mrf.mxu0
        %v1838 = vadd.f32 0.0, %v1837
        %v1839 = vpop.f32.mrf.mxu0
        %v1840 = vpop.f32.mrf.mxu0
        %v1841 = vpop.f32.mrf.mxu0
        %1842 = vdwg.mxu0
        %1844 = vrot.lane.b32.xlu0 %v1838, 16
        %v1845 = vpop.permute.xlu0 %1844
        %vm1847 = vcmask 195712
        %1848 = vst.msk [vmem:[#allocation3] sm:$0xff] %vm1847, %v1845
        %1849 = vrot.lane.b32.xlu0 %v1502, 104
        %v1850 = vpop.permute.xlu0 %1849
        %1851 = vrot.lane.b32.xlu0 %v1503, 72
        %v1852 = vpop.permute.xlu0 %1851
        %v1854 = vsel %vm1507, %v1850, 0
        %v1857 = vsel %vm1507, %v1852, 0
        %1859 = vmatprep.subr.bf16.mxu0 0
        %1860 = vmatpush1.bf16.xpose.msra.mxu0 0
        %1861 = vmatprep.subr.bf16.mxu0 0
        %1862 = vmatpush1.bf16.xpose.msra.mxu0 0
        %1863 = vmatprep.subr.bf16.mxu0 0
        %1864 = vmatpush1.bf16.xpose.msra.mxu0 0
        %1865 = vmatprep.subr.bf16.mxu0 0
        %1866 = vmatpush1.bf16.xpose.msra.mxu0 0
        %1867 = vmatprep.subr.bf16.mxu0 0
        %1868 = vmatpush1.bf16.xpose.msra.mxu0 0
        %1869 = vmatprep.subr.bf16.mxu0 0
        %1870 = vmatpush1.bf16.xpose.msra.mxu0 0
        %1871 = vmatprep.subr.bf16.mxu0 0
        %1872 = vmatpush1.bf16.xpose.msra.mxu0 0
        %1873 = vmatprep.subr.bf16.mxu0 0
        %1874 = vmatpush1.bf16.xpose.msra.mxu0 %v1857
        %1875 = vmatprep.subr.bf16.mxu0 0
        %1876 = vmatpush2.bf16.xpose.msra.mxu0 0
        %1877 = vmatprep.subr.bf16.mxu0 0
        %1878 = vmatpush2.bf16.xpose.msra.mxu0 0
        %1879 = vmatprep.subr.bf16.mxu0 0
        %1880 = vmatpush2.bf16.xpose.msra.mxu0 0
        %1881 = vmatprep.subr.bf16.mxu0 0
        %1882 = vmatpush2.bf16.xpose.msra.mxu0 0
        %1883 = vmatprep.subr.bf16.mxu0 0
        %1884 = vmatpush2.bf16.xpose.msra.mxu0 0
        %1885 = vmatprep.subr.bf16.mxu0 0
        %1886 = vmatpush2.bf16.xpose.msra.mxu0 0
        %1887 = vmatprep.subr.bf16.mxu0 0
        %1888 = vmatpush2.bf16.xpose.msra.mxu0 0
        %1889 = vmatprep.subr.bf16.mxu0 0
        %1890 = vmatpush2.bf16.xpose.msra.mxu0 0
        %1891 = vmatprep.mubr.bf16.mxu0 0
        %1892 = vmatmul.mubr.bf16.gmra.mxu0 %v1854
        %v1893 = vpop.f32.mrf.mxu0
        %v1894 = vadd.f32 %v1500, %v1893
        %v1895 = vpop.f32.mrf.mxu0
        %v1896 = vpop.f32.mrf.mxu0
        %v1897 = vpop.f32.mrf.mxu0
        %1898 = vdwg.mxu0
        %v1899 = vsel %vm1507, %v1894, -inf
        %1900 = vmax.xlane.f32.xlu0 %v1899
        %v1901 = vpop.xlane.xlu0 %1900
        %v1902 = vsub.f32 %v1894, %v1901
        %v1903 = vmul.f32 %v1902, 1.442695
        %v1904 = vpow.pop %v1903
        %v1905 = vsel %vm1507, %v1904, 0.0
        %1906 = vadd.xlane.f32.xlu0 %v1905
        %v1907 = vpop.xlane.xlu0 %1906
        %v1908 = vrcp.pop %v1907
        %v1909 = vmul.f32 %v1904, %v1908
        %v1910 = vpack.c.bf16 %v1909, %v1909
        %1911 = vrot.lane.b32.xlu0 %v1503, 40
        %v1912 = vpop.permute.xlu0 %1911
        %v1914 = vsel %vm1507, %v1910, 0
        %v1917 = vsel %vm1571, %v1912, 0
        %1919 = vmatprep.subr.bf16.mxu0 0
        %1920 = vmatpush1.bf16.msra.mxu0 0
        %1921 = vmatprep.subr.bf16.mxu0 0
        %1922 = vmatpush1.bf16.msra.mxu0 0
        %1923 = vmatprep.subr.bf16.mxu0 0
        %1924 = vmatpush1.bf16.msra.mxu0 0
        %1925 = vmatprep.subr.bf16.mxu0 0
        %1926 = vmatpush1.bf16.msra.mxu0 0
        %1927 = vmatprep.subr.bf16.mxu0 0
        %1928 = vmatpush1.bf16.msra.mxu0 0
        %1929 = vmatprep.subr.bf16.mxu0 0
        %1930 = vmatpush1.bf16.msra.mxu0 0
        %1931 = vmatprep.subr.bf16.mxu0 0
        %1932 = vmatpush1.bf16.msra.mxu0 0
        %1933 = vmatprep.subr.bf16.mxu0 0
        %1934 = vmatpush1.bf16.msra.mxu0 %v1917
        %1935 = vmatprep.subr.bf16.mxu0 0
        %1936 = vmatpush2.bf16.msra.mxu0 0
        %1937 = vmatprep.subr.bf16.mxu0 0
        %1938 = vmatpush2.bf16.msra.mxu0 0
        %1939 = vmatprep.subr.bf16.mxu0 0
        %1940 = vmatpush2.bf16.msra.mxu0 0
        %1941 = vmatprep.subr.bf16.mxu0 0
        %1942 = vmatpush2.bf16.msra.mxu0 0
        %1943 = vmatprep.subr.bf16.mxu0 0
        %1944 = vmatpush2.bf16.msra.mxu0 0
        %1945 = vmatprep.subr.bf16.mxu0 0
        %1946 = vmatpush2.bf16.msra.mxu0 0
        %1947 = vmatprep.subr.bf16.mxu0 0
        %1948 = vmatpush2.bf16.msra.mxu0 0
        %1949 = vmatprep.subr.bf16.mxu0 0
        %1950 = vmatpush2.bf16.msra.mxu0 0
        %1951 = vmatprep.mubr.bf16.mxu0 0
        %1952 = vmatmul.mubr.bf16.gmra.mxu0 %v1914
        %v1953 = vpop.f32.mrf.mxu0
        %v1954 = vadd.f32 0.0, %v1953
        %v1955 = vpop.f32.mrf.mxu0
        %v1956 = vpop.f32.mrf.mxu0
        %v1957 = vpop.f32.mrf.mxu0
        %1958 = vdwg.mxu0
        %1960 = vrot.lane.b32.xlu0 %v1954, 24
        %v1961 = vpop.permute.xlu0 %1960
        %vm1963 = vcmask 261312
        %1964 = vst.msk [vmem:[#allocation3] sm:$0xff] %vm1963, %v1961
        %v1965 = vld [vmem:[#allocation3] sm:$0xff]
        %v1966 = vpack.c.bf16 %v1965, %v1965
        %v1967 = vld [vmem:[%s1311] sm:$0xf]
        %v1968 = vld [vmem:[%s1311 + $0x4] sm:$0xf]
        %v1969 = vld [vmem:[%s1311 + $0x8] sm:$0xf]
        %v1970 = vld [vmem:[%s1311 + $0xc] sm:$0xf]
        %v1971 = vld [vmem:[%s1136] sm:$0x1]
        %v1973 = vlaneseq
        %v1974 = vshrl.u32 %v1973, 7
        %v1975 = vsub.s32 0, %v1974
        %v1976 = vrot.slane %v1971, %v1975
        %v1982 = vunpack.c.l.b16 %v1967
        %v1983 = vunpack.c.l.b16 %v1968
        %v1984 = vunpack.c.l.b16 %v1969
        %v1985 = vunpack.c.l.b16 %v1970
        %v1986 = vpack.c.b16 %v1983, %v1982
        %v1987 = vpack.c.b16 %v1985, %v1984
        %v1991 = vsel %vm1456, %v1966, 0
        %1993 = vmatprep.subr.bf16.mxu0 0
        %1994 = vmatpush1.bf16.msra.mxu0 0
        %1995 = vmatprep.subr.bf16.mxu0 0
        %1996 = vmatpush1.bf16.msra.mxu0 0
        %1997 = vmatprep.subr.bf16.mxu0 0
        %1998 = vmatpush1.bf16.msra.mxu0 0
        %1999 = vmatprep.subr.bf16.mxu0 0
        %2000 = vmatpush1.bf16.msra.mxu0 0
        %2001 = vmatprep.subr.bf16.mxu0 0
        %2002 = vmatpush1.bf16.msra.mxu0 0
        %2003 = vmatprep.subr.bf16.mxu0 0
        %2004 = vmatpush1.bf16.msra.mxu0 0
        %2005 = vmatprep.subr.bf16.mxu0 0
        %2006 = vmatpush1.bf16.msra.mxu0 %v1987
        %2007 = vmatprep.subr.bf16.mxu0 0
        %2008 = vmatpush1.bf16.msra.mxu0 %v1986
        %2009 = vmatprep.subr.bf16.mxu0 0
        %2010 = vmatpush2.bf16.msra.mxu0 0
        %2011 = vmatprep.subr.bf16.mxu0 0
        %2012 = vmatpush2.bf16.msra.mxu0 0
        %2013 = vmatprep.subr.bf16.mxu0 0
        %2014 = vmatpush2.bf16.msra.mxu0 0
        %2015 = vmatprep.subr.bf16.mxu0 0
        %2016 = vmatpush2.bf16.msra.mxu0 0
        %2017 = vmatprep.subr.bf16.mxu0 0
        %2018 = vmatpush2.bf16.msra.mxu0 0
        %2019 = vmatprep.subr.bf16.mxu0 0
        %2020 = vmatpush2.bf16.msra.mxu0 0
        %2021 = vmatprep.subr.bf16.mxu0 0
        %2022 = vmatpush2.bf16.msra.mxu0 0
        %2023 = vmatprep.subr.bf16.mxu0 0
        %2024 = vmatpush2.bf16.msra.mxu0 0
        %2025 = vmatprep.mubr.bf16.mxu0 0
        %2026 = vmatmul.mubr.bf16.gmra.mxu0 %v1991
        %v2027 = vpop.f32.mrf.mxu0
        %v2028 = vadd.f32 %v1976, %v2027
        %v2029 = vpop.f32.mrf.mxu0
        %v2030 = vpop.f32.mrf.mxu0
        %v2031 = vpop.f32.mrf.mxu0
        %2032 = vdwg.mxu0
        %v2033 = vadd.f32 %v1431, %v2028
        %v2034 = vld [vmem:[%s1144] sm:$0x1]
        %v2035 = vld [vmem:[%s1152] sm:$0x1]
        %v2036 = vsel %vm1456, %v2033, 0.0
        %2037 = vadd.xlane.f32.xlu0 %v2036
        %v2038 = vpop.xlane.xlu0 %2037
        %v2039 = vrcp.pop 32.0
        %v2040 = vmul.f32 %v2038, %v2039
        %v2041 = vsub.f32 %v2033, %v2040
        %v2042 = vmul.f32 %v2041, %v2041
        %v2043 = vsel %vm1456, %v2042, 0.0
        %2044 = vadd.xlane.f32.xlu0 %v2043
        %v2045 = vpop.xlane.xlu0 %2044
        %v2046 = vmul.f32 %v2045, %v2039
        %v2047 = vadd.f32 %v2046, 1e-05
        %v2048 = vrsqrt.pop %v2047
        %v2049 = vmul.f32 %v2041, %v2048
        %v2051 = vlaneseq
        %v2052 = vshrl.u32 %v2051, 7
        %v2053 = vsub.s32 0, %v2052
        %v2054 = vrot.slane %v2034, %v2053
        %v2056 = vmul.f32 %v2049, %v2054
        %v2058 = vlaneseq
        %v2059 = vshrl.u32 %v2058, 7
        %v2060 = vsub.s32 0, %v2059
        %v2061 = vrot.slane %v2035, %v2060
        %v2063 = vadd.f32 %v2056, %v2061
        %v2064 = vpack.c.bf16 %v2063, %v2063
        %v2065 = vld [vmem:[%s1316] sm:$0xf]
        %v2066 = vld [vmem:[%s1316 + $0x4] sm:$0xf]
        %v2067 = vld [vmem:[%s1316 + $0x8] sm:$0xf]
        %v2068 = vld [vmem:[%s1316 + $0xc] sm:$0xf]
        %v2069 = vld [vmem:[%s1160] sm:$0x1]
        %v2071 = vlaneseq
        %v2072 = vshrl.u32 %v2071, 7
        %v2073 = vsub.s32 0, %v2072
        %v2074 = vrot.slane %v2069, %v2073
        %v2080 = vunpack.c.l.b16 %v2065
        %v2081 = vunpack.c.l.b16 %v2066
        %v2082 = vunpack.c.l.b16 %v2067
        %v2083 = vunpack.c.l.b16 %v2068
        %v2084 = vpack.c.b16 %v2081, %v2080
        %v2085 = vpack.c.b16 %v2083, %v2082
        %v2089 = vsel %vm1456, %v2064, 0
        %2091 = vmatprep.subr.bf16.mxu0 0
        %2092 = vmatpush1.bf16.msra.mxu0 0
        %2093 = vmatprep.subr.bf16.mxu0 0
        %2094 = vmatpush1.bf16.msra.mxu0 0
        %2095 = vmatprep.subr.bf16.mxu0 0
        %2096 = vmatpush1.bf16.msra.mxu0 0
        %2097 = vmatprep.subr.bf16.mxu0 0
        %2098 = vmatpush1.bf16.msra.mxu0 0
        %2099 = vmatprep.subr.bf16.mxu0 0
        %2100 = vmatpush1.bf16.msra.mxu0 0
        %2101 = vmatprep.subr.bf16.mxu0 0
        %2102 = vmatpush1.bf16.msra.mxu0 0
        %2103 = vmatprep.subr.bf16.mxu0 0
        %2104 = vmatpush1.bf16.msra.mxu0 %v2085
        %2105 = vmatprep.subr.bf16.mxu0 0
        %2106 = vmatpush1.bf16.msra.mxu0 %v2084
        %2107 = vmatprep.subr.bf16.mxu0 0
        %2108 = vmatpush2.bf16.msra.mxu0 0
        %2109 = vmatprep.subr.bf16.mxu0 0
        %2110 = vmatpush2.bf16.msra.mxu0 0
        %2111 = vmatprep.subr.bf16.mxu0 0
        %2112 = vmatpush2.bf16.msra.mxu0 0
        %2113 = vmatprep.subr.bf16.mxu0 0
        %2114 = vmatpush2.bf16.msra.mxu0 0
        %2115 = vmatprep.subr.bf16.mxu0 0
        %2116 = vmatpush2.bf16.msra.mxu0 0
        %2117 = vmatprep.subr.bf16.mxu0 0
        %2118 = vmatpush2.bf16.msra.mxu0 0
        %2119 = vmatprep.subr.bf16.mxu0 0
        %2120 = vmatpush2.bf16.msra.mxu0 0
        %2121 = vmatprep.subr.bf16.mxu0 0
        %2122 = vmatpush2.bf16.msra.mxu0 0
        %2123 = vmatprep.mubr.bf16.mxu0 0
        %2124 = vmatmul.mubr.bf16.gmra.mxu0 %v2089
        %v2125 = vpop.f32.mrf.mxu0
        %v2126 = vadd.f32 %v2074, %v2125
        %v2127 = vpop.f32.mrf.mxu0
        %v2128 = vpop.f32.mrf.mxu0
        %v2129 = vpop.f32.mrf.mxu0
        %2130 = vdwg.mxu0
        %v2131 = vmax.f32 %v2126, 0.0
        %v2132 = vpack.c.bf16 %v2131, %v2131
        %v2133 = vld [vmem:[%s1321] sm:$0xf]
        %v2134 = vld [vmem:[%s1321 + $0x4] sm:$0xf]
        %v2135 = vld [vmem:[%s1321 + $0x8] sm:$0xf]
        %v2136 = vld [vmem:[%s1321 + $0xc] sm:$0xf]
        %v2137 = vld [vmem:[%s1321 + $0x10] sm:$0xf]
        %v2138 = vld [vmem:[%s1321 + $0x14] sm:$0xf]
        %v2139 = vld [vmem:[%s1321 + $0x18] sm:$0xf]
        %v2140 = vld [vmem:[%s1321 + $0x1c] sm:$0xf]
        %v2141 = vld [vmem:[%s1324] sm:$0x1]
        %v2143 = vlaneseq
        %v2144 = vshrl.u32 %v2143, 7
        %v2145 = vsub.s32 0, %v2144
        %v2146 = vrot.slane %v2141, %v2145
        %v2156 = vunpack.c.l.b16 %v2133
        %v2157 = vunpack.c.l.b16 %v2134
        %v2158 = vunpack.c.l.b16 %v2135
        %v2159 = vunpack.c.l.b16 %v2136
        %v2160 = vunpack.c.l.b16 %v2137
        %v2161 = vunpack.c.l.b16 %v2138
        %v2162 = vunpack.c.l.b16 %v2139
        %v2163 = vunpack.c.l.b16 %v2140
        %v2164 = vpack.c.b16 %v2157, %v2156
        %v2165 = vpack.c.b16 %v2159, %v2158
        %v2166 = vpack.c.b16 %v2161, %v2160
        %v2167 = vpack.c.b16 %v2163, %v2162
        %vm2172 = vcmask 523264
        %v2174 = vsel %vm2172, %v2132, 0
        %2176 = vmatprep.subr.bf16.mxu0 0
        %2177 = vmatpush1.bf16.msra.mxu0 0
        %2178 = vmatprep.subr.bf16.mxu0 0
        %2179 = vmatpush1.bf16.msra.mxu0 0
        %2180 = vmatprep.subr.bf16.mxu0 0
        %2181 = vmatpush1.bf16.msra.mxu0 0
        %2182 = vmatprep.subr.bf16.mxu0 0
        %2183 = vmatpush1.bf16.msra.mxu0 0
        %2184 = vmatprep.subr.bf16.mxu0 0
        %2185 = vmatpush1.bf16.msra.mxu0 %v2167
        %2186 = vmatprep.subr.bf16.mxu0 0
        %2187 = vmatpush1.bf16.msra.mxu0 %v2166
        %2188 = vmatprep.subr.bf16.mxu0 0
        %2189 = vmatpush1.bf16.msra.mxu0 %v2165
        %2190 = vmatprep.subr.bf16.mxu0 0
        %2191 = vmatpush1.bf16.msra.mxu0 %v2164
        %2192 = vmatprep.subr.bf16.mxu0 0
        %2193 = vmatpush2.bf16.msra.mxu0 0
        %2194 = vmatprep.subr.bf16.mxu0 0
        %2195 = vmatpush2.bf16.msra.mxu0 0
        %2196 = vmatprep.subr.bf16.mxu0 0
        %2197 = vmatpush2.bf16.msra.mxu0 0
        %2198 = vmatprep.subr.bf16.mxu0 0
        %2199 = vmatpush2.bf16.msra.mxu0 0
        %2200 = vmatprep.subr.bf16.mxu0 0
        %2201 = vmatpush2.bf16.msra.mxu0 0
        %2202 = vmatprep.subr.bf16.mxu0 0
        %2203 = vmatpush2.bf16.msra.mxu0 0
        %2204 = vmatprep.subr.bf16.mxu0 0
        %2205 = vmatpush2.bf16.msra.mxu0 0
        %2206 = vmatprep.subr.bf16.mxu0 0
        %2207 = vmatpush2.bf16.msra.mxu0 0
        %2208 = vmatprep.mubr.bf16.mxu0 0
        %2209 = vmatmul.mubr.bf16.gmra.mxu0 %v2174
        %v2210 = vpop.f32.mrf.mxu0
        %v2211 = vadd.f32 %v2146, %v2210
        %v2212 = vpop.f32.mrf.mxu0
        %v2213 = vpop.f32.mrf.mxu0
        %v2214 = vpop.f32.mrf.mxu0
        %2215 = vdwg.mxu0
        %v2216 = vadd.f32 %v2063, %v2211
        %v2217 = vld [vmem:[%s1327] sm:$0x1]
        %v2218 = vld [vmem:[%s1330] sm:$0x1]
        %v2219 = vsel %vm1456, %v2216, 0.0
        %2220 = vadd.xlane.f32.xlu0 %v2219
        %v2221 = vpop.xlane.xlu0 %2220
        %v2222 = vmul.f32 %v2221, %v2039
        %v2223 = vsub.f32 %v2216, %v2222
        %v2224 = vmul.f32 %v2223, %v2223
        %v2225 = vsel %vm1456, %v2224, 0.0
        %2226 = vadd.xlane.f32.xlu0 %v2225
        %v2227 = vpop.xlane.xlu0 %2226
        %v2228 = vmul.f32 %v2227, %v2039
        %v2229 = vadd.f32 %v2228, 1e-05
        %v2230 = vrsqrt.pop %v2229
        %v2231 = vmul.f32 %v2223, %v2230
        %v2233 = vlaneseq
        %v2234 = vshrl.u32 %v2233, 7
        %v2235 = vsub.s32 0, %v2234
        %v2236 = vrot.slane %v2217, %v2235
        %v2238 = vmul.f32 %v2231, %v2236
        %v2240 = vlaneseq
        %v2241 = vshrl.u32 %v2240, 7
        %v2242 = vsub.s32 0, %v2241
        %v2243 = vrot.slane %v2218, %v2242
        %v2245 = vadd.f32 %v2238, %v2243
        %2246 = vst.msk [vmem:[#allocation2] sm:$0xff] %vm1456, %v2245
        %p2247 = scmp.eq.s32.totalorder %s61, 1
        // Predicated region
        $region197: #{tpu_custom_call.1} parent=131 // pred_check
          %p2248 = pneg %p2247
        $region198: #{tpu_custom_call.1} parent=131 // pred_check_branch
          %2250 = sbr.rel (%p2248) target = $region200
        $region199: #{tpu_custom_call.1} parent=131 // pred_region
          %v2251 = vld [vmem:[#allocation2] sm:$0xff]
          %v2252 = vld [vmem:[%s22] sm:$0x1]
          %v2253 = vld [vmem:[%s23] sm:$0x1]
          %v2254 = vsel %vm1456, %v2251, 0.0
          %2255 = vadd.xlane.f32.xlu0 %v2254
          %v2256 = vpop.xlane.xlu0 %2255
          %v2257 = vmul.f32 %v2256, %v2039
          %v2258 = vsub.f32 %v2251, %v2257
          %v2259 = vmul.f32 %v2258, %v2258
          %v2260 = vsel %vm1456, %v2259, 0.0
          %2261 = vadd.xlane.f32.xlu0 %v2260
          %v2262 = vpop.xlane.xlu0 %2261
          %v2263 = vmul.f32 %v2262, %v2039
          %v2264 = vadd.f32 %v2263, 1e-05
          %v2265 = vrsqrt.pop %v2264
          %v2266 = vmul.f32 %v2258, %v2265
          %v2268 = vlaneseq
          %v2269 = vshrl.u32 %v2268, 7
          %v2270 = vsub.s32 0, %v2269
          %v2271 = vrot.slane %v2252, %v2270
          %v2273 = vmul.f32 %v2266, %v2271
          %v2275 = vlaneseq
          %v2276 = vshrl.u32 %v2275, 7
          %v2277 = vsub.s32 0, %v2276
          %v2278 = vrot.slane %v2253, %v2277
          %v2280 = vadd.f32 %v2273, %v2278
          %v2281 = vpack.c.bf16 %v2280, %v2280
          %v2282 = vld [vmem:[#allocation26] sm:$0xf]
          %v2283 = vld [vmem:[#allocation26 + $0x4] sm:$0xf]
          %v2284 = vld [vmem:[#allocation26 + $0x8] sm:$0xf]
          %v2285 = vld [vmem:[#allocation26 + $0xc] sm:$0xf]
          %v2286 = vld [vmem:[%s25] sm:$0x1]
          %v2288 = vlaneseq
          %v2289 = vshrl.u32 %v2288, 7
          %v2290 = vsub.s32 0, %v2289
          %v2291 = vrot.slane %v2286, %v2290
          %v2297 = vunpack.c.l.b16 %v2282
          %v2298 = vunpack.c.l.b16 %v2283
          %v2299 = vunpack.c.l.b16 %v2284
          %v2300 = vunpack.c.l.b16 %v2285
          %v2301 = vpack.c.b16 %v2298, %v2297
          %v2302 = vpack.c.b16 %v2300, %v2299
          %v2306 = vsel %vm1456, %v2281, 0
          %2308 = vmatprep.subr.bf16.mxu0 0
          %2309 = vmatpush1.bf16.msra.mxu0 0
          %2310 = vmatprep.subr.bf16.mxu0 0
          %2311 = vmatpush1.bf16.msra.mxu0 0
          %2312 = vmatprep.subr.bf16.mxu0 0
          %2313 = vmatpush1.bf16.msra.mxu0 0
          %2314 = vmatprep.subr.bf16.mxu0 0
          %2315 = vmatpush1.bf16.msra.mxu0 0
          %2316 = vmatprep.subr.bf16.mxu0 0
          %2317 = vmatpush1.bf16.msra.mxu0 0
          %2318 = vmatprep.subr.bf16.mxu0 0
          %2319 = vmatpush1.bf16.msra.mxu0 0
          %2320 = vmatprep.subr.bf16.mxu0 0
          %2321 = vmatpush1.bf16.msra.mxu0 %v2302
          %2322 = vmatprep.subr.bf16.mxu0 0
          %2323 = vmatpush1.bf16.msra.mxu0 %v2301
          %2324 = vmatprep.subr.bf16.mxu0 0
          %2325 = vmatpush2.bf16.msra.mxu0 0
          %2326 = vmatprep.subr.bf16.mxu0 0
          %2327 = vmatpush2.bf16.msra.mxu0 0
          %2328 = vmatprep.subr.bf16.mxu0 0
          %2329 = vmatpush2.bf16.msra.mxu0 0
          %2330 = vmatprep.subr.bf16.mxu0 0
          %2331 = vmatpush2.bf16.msra.mxu0 0
          %2332 = vmatprep.subr.bf16.mxu0 0
          %2333 = vmatpush2.bf16.msra.mxu0 0
          %2334 = vmatprep.subr.bf16.mxu0 0
          %2335 = vmatpush2.bf16.msra.mxu0 0
          %2336 = vmatprep.subr.bf16.mxu0 0
          %2337 = vmatpush2.bf16.msra.mxu0 0
          %2338 = vmatprep.subr.bf16.mxu0 0
          %2339 = vmatpush2.bf16.msra.mxu0 0
          %2340 = vmatprep.mubr.bf16.mxu0 0
          %2341 = vmatmul.mubr.bf16.gmra.mxu0 %v2306
          %v2342 = vpop.f32.mrf.mxu0
          %v2343 = vadd.f32 %v2291, %v2342
          %v2344 = vpop.f32.mrf.mxu0
          %v2345 = vpop.f32.mrf.mxu0
          %v2346 = vpop.f32.mrf.mxu0
          %2347 = vdwg.mxu0
          %v2348 = vmax.f32 %v2343, 0.0
          %v2349 = vld [vmem:[%s26] sm:$0x1]
          %v2350 = vld [vmem:[#allocation4] sm:$0x1]
          %2352 = vset.pattern.permute.xlu0 0
          %2353 = vperm.xlu0 %2352, %v2350
          %v2354 = vpop.permute.xlu0 %2353
          %v2356 = vlaneseq
          %v2357 = vshrl.u32 %v2356, 7
          %v2358 = vsub.s32 0, %v2357
          %v2359 = vrot.slane %v2354, %v2358
          %v2361 = vsel %vm1456, %v2349, 0
          %v2364 = vsel %vm1456, %v2348, 0
          %2366 = vmatprep.subr.mxu0 0.0
          %2367 = vmatpush1.xpose.msra.mxu0 0.0
          %2368 = vmatprep.subr.mxu0 0.0
          %2369 = vmatpush1.xpose.msra.mxu0 0.0
          %2370 = vmatprep.subr.mxu0 0.0
          %2371 = vmatpush1.xpose.msra.mxu0 0.0
          %2372 = vmatprep.subr.mxu0 0.0
          %2373 = vmatpush1.xpose.msra.mxu0 0.0
          %2374 = vmatprep.subr.mxu0 0.0
          %2375 = vmatpush1.xpose.msra.mxu0 0.0
          %2376 = vmatprep.subr.mxu0 0.0
          %2377 = vmatpush1.xpose.msra.mxu0 0.0
          %2378 = vmatprep.subr.mxu0 0.0
          %2379 = vmatpush1.xpose.msra.mxu0 0.0
          %2380 = vmatprep.subr.mxu0 0.0
          %2381 = vmatpush1.xpose.msra.mxu0 0.0
          %2382 = vmatprep.subr.mxu0 0.0
          %2383 = vmatpush1.xpose.msra.mxu0 0.0
          %2384 = vmatprep.subr.mxu0 0.0
          %2385 = vmatpush1.xpose.msra.mxu0 0.0
          %2386 = vmatprep.subr.mxu0 0.0
          %2387 = vmatpush1.xpose.msra.mxu0 0.0
          %2388 = vmatprep.subr.mxu0 0.0
          %2389 = vmatpush1.xpose.msra.mxu0 0.0
          %2390 = vmatprep.subr.mxu0 0.0
          %2391 = vmatpush1.xpose.msra.mxu0 0.0
          %2392 = vmatprep.subr.mxu0 0.0
          %2393 = vmatpush1.xpose.msra.mxu0 0.0
          %2394 = vmatprep.subr.mxu0 0.0
          %2395 = vmatpush1.xpose.msra.mxu0 0.0
          %2396 = vmatprep.subr.mxu0 0.0
          %2397 = vmatpush1.xpose.msra.mxu0 %v2364
          %2398 = vmatprep.subr.mxu0 0.0
          %2399 = vmatpush2.xpose.msra.mxu0 0.0
          %2400 = vmatprep.subr.mxu0 0.0
          %2401 = vmatpush2.xpose.msra.mxu0 0.0
          %2402 = vmatprep.subr.mxu0 0.0
          %2403 = vmatpush2.xpose.msra.mxu0 0.0
          %2404 = vmatprep.subr.mxu0 0.0
          %2405 = vmatpush2.xpose.msra.mxu0 0.0
          %2406 = vmatprep.subr.mxu0 0.0
          %2407 = vmatpush2.xpose.msra.mxu0 0.0
          %2408 = vmatprep.subr.mxu0 0.0
          %2409 = vmatpush2.xpose.msra.mxu0 0.0
          %2410 = vmatprep.subr.mxu0 0.0
          %2411 = vmatpush2.xpose.msra.mxu0 0.0
          %2412 = vmatprep.subr.mxu0 0.0
          %2413 = vmatpush2.xpose.msra.mxu0 0.0
          %2414 = vmatprep.subr.mxu0 0.0
          %2415 = vmatpush2.xpose.msra.mxu0 0.0
          %2416 = vmatprep.subr.mxu0 0.0
          %2417 = vmatpush2.xpose.msra.mxu0 0.0
          %2418 = vmatprep.subr.mxu0 0.0
          %2419 = vmatpush2.xpose.msra.mxu0 0.0
          %2420 = vmatprep.subr.mxu0 0.0
          %2421 = vmatpush2.xpose.msra.mxu0 0.0
          %2422 = vmatprep.subr.mxu0 0.0
          %2423 = vmatpush2.xpose.msra.mxu0 0.0
          %2424 = vmatprep.subr.mxu0 0.0
          %2425 = vmatpush2.xpose.msra.mxu0 0.0
          %2426 = vmatprep.subr.mxu0 0.0
          %2427 = vmatpush2.xpose.msra.mxu0 0.0
          %2428 = vmatprep.subr.mxu0 0.0
          %2429 = vmatpush2.xpose.msra.mxu0 0.0
          %2430 = vmatprep.mubr.f32.mxu0 0.0
          %2431 = vmatmul.mubr.f32.gmra.mxu0 %v2361
          %v2432 = vpop.f32.mrf.mxu0
          %v2433 = vadd.f32 %v2359, %v2432
          %v2434 = vpop.f32.mrf.mxu0
          %2435 = vdwg.mxu0
          %vm2436 = vcmask 57344
          %2437 = vst.msk [vmem:[%s1298] sm:$0x1] %vm2436, %v2433
        $region200: #{tpu_custom_call.1} parent=131 // pred_fallthru
          _
        %s2438 = sand.u32 %s744, 1
        %s2439 = scalar_lea.sflag [#allocation7], %s2438
        %s2440 = sand.u32 %s744, 1
        %s2441 = scalar_lea.vmem [#allocation27], %s2440
        // Predicated region
        $region201: #{tpu_custom_call.1} parent=131 // pred_check
          %p2442 = pneg %p754
        $region202: #{tpu_custom_call.1} parent=131 // pred_check_branch
          %2444 = sbr.rel (%p2442) target = $region204
        $region203: #{tpu_custom_call.1} parent=131 // pred_region
          %s2446 = ssub.s32 16, 16
          %2447 = vsyncadd %s2439, %s2446
          %s2448 = smul.addr %s60, 16
          %s2449 = scalar_lea.hbm %s28, %s2448
          %s2451 = sshll.u32 %s2441, 4
          %s2452 = int_to_ptr.vmem [resolvable:$true] %s2451
          %2454 = dma.vmem_to_hbm [thread:$0]  %s2452, 16, %s2449, %s2439
        $region204: #{tpu_custom_call.1} parent=131 // pred_fallthru
          _
      $region132: #{tpu_custom_call.1} parent=5 // pred_fallthru
        _
      %p2455 = scmp.le.s32.totalorder 2, %s51
      // Predicated region
      $region205: #{tpu_custom_call.1} parent=5 // pred_check
        %p2456 = pneg %p2455
      $region206: #{tpu_custom_call.1} parent=5 // pred_check_branch
        %2458 = sbr.rel (%p2456) target = $region208
      $region207: #{tpu_custom_call.1} parent=5 // pred_region
        %s2459 = ssub.s32 %s51, 2
        // Predicated region
        $region209: #{tpu_custom_call.1} parent=207 // pred_check
          %p2460 = pneg %p760
        $region210: #{tpu_custom_call.1} parent=207 // pred_check_branch
          %2462 = sbr.rel (%p2460) target = $region212
        $region211: #{tpu_custom_call.1} parent=207 // pred_region
          %s2463 = sand.u32 %s745, 1
          %s2464 = scalar_lea.sflag [#allocation7], %s2463
          %s2465 = sand.u32 %s745, 1
          %s2466 = scalar_lea.vmem [#allocation27], %s2465
          %2467 = dma.done %s2464, 16
        $region212: #{tpu_custom_call.1} parent=207 // pred_fallthru
          _
      $region208: #{tpu_custom_call.1} parent=5 // pred_fallthru
        _
    $region6: #{tpu_custom_call.1} parent=1 // loop_footer
      %s55 = sadd.s32 1, %s51
    $region7: #{tpu_custom_call.1} parent=1 // loop_footer_branch
      %50 = sbr.rel target = $region3
    $region8: #{tpu_custom_call.1} parent=1 // loop_exit
      _
    %2468 = vsyncpa [#allocation6], 1
    %s2469 = scalar_lea.sflag [#allocation6], 1
    %2470 = vsyncpa %s2469, 1
    %2471 = vsyncpa [#allocation9], 1
    %s2472 = scalar_lea.sflag [#allocation9], 1
    %2473 = vsyncpa %s2472, 1
    %2474 = vsyncpa [#allocation12], 1
    %s2475 = scalar_lea.sflag [#allocation12], 1
    %2476 = vsyncpa %s2475, 1
    %2477 = vsyncpa [#allocation15], 1
    %2478 = vsyncpa [#allocation18], 1
    %2479 = vsyncpa [#allocation21], 1
    %2480 = vsyncpa [#allocation7], 1
    %s2481 = scalar_lea.sflag [#allocation7], 1
    %2482 = vsyncpa %s2481, 1

</llo_original>
